<compile_context>
chip_gen: v7x
topology: tpu7x:2x2x1
jax: 0.10.0
libtpu: 0.0.40
codegen_flags: <defaults>
</compile_context>

<pallas_src>
import functools

import jax
import jax.numpy as jnp
from jax.experimental import pallas as pl
from jax.experimental.pallas import tpu as pltpu

_VMEM_LIMIT = 32 * 1024 * 1024  # within v7x physical (64 MiB) and scoped budgets


def _round_up(x, m):
    return ((x + m - 1) // m) * m


def _pick_tile(n, pref):
    """Largest of {pref, 512, 256, 128} that divides n, else n itself."""
    for t in sorted({pref, 512, 256, 128}, reverse=True):
        if t <= n and n % t == 0:
            return t
    return n


def _pick_row_tile(n, pref):
    """Like _pick_tile but prefers >= 2 row tiles (feeds both TCs on v7x)."""
    for t in sorted({pref, 512, 256, 128}, reverse=True):
        if t <= n and n % t == 0 and n // t >= 2:
            return t
    return _pick_tile(n, pref)


# --------------------------------------------------------------------------
# Kernel 1:  acc[i] = sum_{s,k} A_s[i,k] @ W1_s[k]        (f32 accumulator)
#            finalize:  P_s[i] = relu(acc[i]) @ W2_s       for every support
# grid = (row_tiles, S, k_tiles); output block depends only on i.
# --------------------------------------------------------------------------
def gcn_layer1_kernel(a_ref, w1_ref, w2_ref, p_ref, acc_ref):
    s = pl.program_id(1)
    k = pl.program_id(2)

    @pl.when((s == 0) & (k == 0))
    def _():
        acc_ref[...] = jnp.zeros_like(acc_ref)

    a_tile = a_ref[0].astype(jnp.bfloat16)  # in-kernel cast; A stays f32 in HBM
    acc_ref[...] += jnp.dot(a_tile, w1_ref[0],
                            preferred_element_type=jnp.float32)

    @pl.when((s == pl.num_programs(1) - 1) & (k == pl.num_programs(2) - 1))
    def _():
        h_tile = jnp.maximum(acc_ref[...], 0.0).astype(jnp.bfloat16)  # (tm, Hp)
        num_supports = p_ref.shape[0]  # static
        for si in range(num_supports):
            p_ref[si] = jnp.dot(h_tile, w2_ref[si],
                                preferred_element_type=jnp.float32
                                ).astype(p_ref.dtype)


# --------------------------------------------------------------------------
# Kernel 2:  out[i] = sum_{s,k} A_s[i,k] @ P_s[k]          (pure MXU accumulate)
# --------------------------------------------------------------------------
def gcn_layer2_kernel(a_ref, p_ref, out_ref, acc_ref):
    s = pl.program_id(1)
    k = pl.program_id(2)

    @pl.when((s == 0) & (k == 0))
    def _():
        acc_ref[...] = jnp.zeros_like(acc_ref)

    a_tile = a_ref[0].astype(jnp.bfloat16)
    acc_ref[...] += jnp.dot(a_tile, p_ref[0],
                            preferred_element_type=jnp.float32)

    @pl.when((s == pl.num_programs(1) - 1) & (k == pl.num_programs(2) - 1))
    def _():
        out_ref[...] = acc_ref[...].astype(out_ref.dtype)


@functools.partial(jax.jit, static_argnames=("tm", "tk"))
def gcn_forward(supports, w1, w2, *, tm=512, tk=512):
    """supports: (S, N, N) f32, w1: (S, N, H) f32, w2: (S, H, C) f32 -> (N, C) f32."""
    S, N, _ = supports.shape
    H = w1.shape[-1]
    C = w2.shape[-1]

    # Lane-dense padded dims (zero padding is exact for this computation).
    Hp = _round_up(H, 128)
    Cp = _round_up(max(C, 128), 128)
    Np = _round_up(N, 128)

    tm = _pick_row_tile(Np, tm)
    tk = _pick_tile(Np, tk)

    a = supports
    if Np != N:
        a = jnp.pad(a, ((0, 0), (0, Np - N), (0, Np - N)))
    w1p = jnp.pad(w1, ((0, 0), (0, Np - N), (0, Hp - H))).astype(jnp.bfloat16)
    w2p = jnp.pad(w2, ((0, 0), (0, Hp - H), (0, Cp - C))).astype(jnp.bfloat16)

    grid = (Np // tm, S, Np // tk)
    nr = Np // tm
    dim_sem = ("parallel", "arbitrary", "arbitrary")
    cparams = pltpu.CompilerParams(dimension_semantics=dim_sem,
                                   vmem_limit_bytes=_VMEM_LIMIT)

    # ---------------- kernel 1: P_s = relu(sum A@W1) @ W2_s ----------------
    l1_cost = pl.CostEstimate(
        flops=int(2 * S * Np * Np * Hp + 2 * S * Np * Hp * Cp),
        transcendentals=0,
        bytes_accessed=int(S * Np * Np * 4          # A (f32, read once)
                           + nr * S * Np * Hp * 2   # W1 refetched per row tile
                           + S * Hp * Cp * 2        # W2 (resident)
                           + S * Np * Cp * 2),      # P written
    )
    p = pl.pallas_call(
        gcn_layer1_kernel,
        out_shape=jax.ShapeDtypeStruct((S, Np, Cp), jnp.bfloat16),
        grid_spec=pltpu.PrefetchScalarGridSpec(
            num_scalar_prefetch=0,
            grid=grid,
            in_specs=[
                pl.BlockSpec((1, tm, tk), lambda i, s, k: (s, i, k)),
                pl.BlockSpec((1, tk, Hp), lambda i, s, k: (s, k, 0)),
                pl.BlockSpec((S, Hp, Cp), lambda i, s, k: (0, 0, 0)),
            ],
            out_specs=pl.BlockSpec((S, tm, Cp), lambda i, s, k: (0, i, 0)),
            scratch_shapes=[pltpu.VMEM((tm, Hp), jnp.float32)],
        ),
        compiler_params=cparams,
        cost_estimate=l1_cost,
    )(a, w1p, w2p)

    # ---------------- kernel 2: out = sum_s A_s @ P_s ----------------------
    l2_cost = pl.CostEstimate(
        flops=int(2 * S * Np * Np * Cp),
        transcendentals=0,
        bytes_accessed=int(S * Np * Np * 4          # A (f32, read once)
                           + nr * S * Np * Cp * 2   # P refetched per row tile
                           + Np * Cp * 4),          # out written
    )
    out_p = pl.pallas_call(
        gcn_layer2_kernel,
        out_shape=jax.ShapeDtypeStruct((Np, Cp), jnp.float32),
        grid_spec=pltpu.PrefetchScalarGridSpec(
            num_scalar_prefetch=0,
            grid=grid,
            in_specs=[
                pl.BlockSpec((1, tm, tk), lambda i, s, k: (s, i, k)),
                pl.BlockSpec((1, tk, Cp), lambda i, s, k: (s, k, 0)),
            ],
            out_specs=pl.BlockSpec((tm, Cp), lambda i, s, k: (i, 0)),
            scratch_shapes=[pltpu.VMEM((tm, Cp), jnp.float32)],
        ),
        compiler_params=cparams,
        cost_estimate=l2_cost,
    )(a, p)

    return out_p[:N, :C]


def gcn_reference(supports, w1, w2):
    h = jnp.maximum(jnp.einsum('snm,smh->nh', supports, w1), 0.0)
    pre = jnp.einsum('nh,shc->snc', h, w2)
    return jnp.einsum('snm,smc->nc', supports, pre)


if __name__ == "__main__":
    # Shapes consistent with the module: N graph nodes == input_dim (featureless
    # layer needs support columns == input_dim), hidden = 200 (fixed by GCN),
    # num_classes = 2, S = 2 supports. N=512 exercises row/k tiling.
    S, N, H, C = 2, 512, 200, 2

    key = jax.random.PRNGKey(0)
    k_sup, k_w1, k_w2 = jax.random.split(key, 3)

    supports = jax.random.normal(k_sup, (S, N, N), dtype=jnp.float32) * 0.1
    w1 = jax.random.normal(k_w1, (S, N, H), dtype=jnp.float32)   # layer1 W_i: (input_dim, 200)
    w2 = jax.random.normal(k_w2, (S, H, C), dtype=jnp.float32)   # layer2 W_i: (200, num_classes)
    # Note: the forward's `x` input is never read (layer1 is featureless,
    # dropout_rate=0.0), so it is not materialized here.

    out = jax.block_until_ready(gcn_forward(supports, w1, w2))
    assert out.shape == (N, C)

    # Reference using the same bf16 quantization as the kernels' MXU inputs
    # (intermediates kept in f32 -> compare with a modest tolerance).
    sb = supports.astype(jnp.bfloat16).astype(jnp.float32)
    w1b = w1.astype(jnp.bfloat16).astype(jnp.float32)
    w2b = w2.astype(jnp.bfloat16).astype(jnp.float32)
    ref = gcn_reference(sb, w1b, w2b)

    max_err = float(jnp.max(jnp.abs(out - ref)))
    scale = float(jnp.max(jnp.abs(ref)))
    assert max_err <= 0.02 * scale + 1e-3, f"mismatch vs reference: {max_err} / {scale}"

    print("KERNEL_OK")
</pallas_src>

<mosaic_0001>
module attributes {stable_mosaic.version = 11 : i64} {
  func.func @gcn_layer2_kernel(%arg0: i32, %arg1: i32, %arg2: i32, %arg3: memref<1x256x512xf32, #tpu.memory_space<vmem>>, %arg4: memref<1x512x128xbf16, #tpu.memory_space<vmem>>, %arg5: memref<256x128xf32, #tpu.memory_space<vmem>>, %arg6: memref<256x128xf32, #tpu.memory_space<vmem>>) attributes {dimension_semantics = [#tpu.dimension_semantics<parallel>, #tpu.dimension_semantics<arbitrary>, #tpu.dimension_semantics<arbitrary>], iteration_bounds = array<i64: 2, 2, 1>, scalar_prefetch = 0 : i64, scratch_operands = 1 : i64, tpu.core_type = #tpu.core_type<tc>, window_params = [{transform_indices = @transform_0, window_bounds = array<i64: 1, 256, 512>}, {transform_indices = @transform_1, window_bounds = array<i64: 1, 512, 128>}, {transform_indices = @transform_2, window_bounds = array<i64: 256, 128>}]} {
    %c0_i32 = arith.constant 0 : i32
    %0 = arith.cmpi eq, %arg1, %c0_i32 : i32
    %c0_i32_0 = arith.constant 0 : i32
    %1 = arith.cmpi eq, %arg2, %c0_i32_0 : i32
    %2 = arith.andi %0, %1 : i1
    %3 = arith.extui %2 : i1 to i32
    %c0_i32_1 = arith.constant 0 : i32
    %4 = arith.cmpi ne, %3, %c0_i32_1 : i32
    scf.if %4 {
      %cst_13 = arith.constant 0.000000e+00 : f32
      %19 = vector.broadcast %cst_13 : f32 to vector<256x128xf32>
      %c0_14 = arith.constant 0 : index
      %c0_15 = arith.constant 0 : index
      %20 = vector.load %arg6[%c0_14, %c0_15] : memref<256x128xf32, #tpu.memory_space<vmem>>, vector<256x128xf32>
      tpu.vector_store %arg6[%c0_14, %c0_15], %19 {strides = array<i32>} : memref<256x128xf32, #tpu.memory_space<vmem>>, vector<256x128xf32>,
    } else {
    }
    %c0 = arith.constant 0 : index
    %c0_2 = arith.constant 0 : index
    %c0_3 = arith.constant 0 : index
    %5 = vector.load %arg3[%c0, %c0_2, %c0_3] : memref<1x256x512xf32, #tpu.memory_space<vmem>>, vector<1x256x512xf32>
    %6 = vector.shape_cast %5 : vector<1x256x512xf32> to vector<256x512xf32>
    %7 = arith.truncf %6 : vector<256x512xf32> to vector<256x512xbf16>
    %c0_4 = arith.constant 0 : index
    %c0_5 = arith.constant 0 : index
    %8 = vector.load %arg6[%c0_4, %c0_5] : memref<256x128xf32, #tpu.memory_space<vmem>>, vector<256x128xf32>
    %c0_6 = arith.constant 0 : index
    %c0_7 = arith.constant 0 : index
    %c0_8 = arith.constant 0 : index
    %9 = vector.load %arg4[%c0_6, %c0_7, %c0_8] : memref<1x512x128xbf16, #tpu.memory_space<vmem>>, vector<1x512x128xbf16>
    %10 = vector.shape_cast %9 : vector<1x512x128xbf16> to vector<512x128xbf16>
    %cst = arith.constant dense<0.000000e+00> : vector<256x128xf32>
    %11 = tpu.matmul %7, %10, %cst {dimension_numbers = #tpu.dot_dimension_numbers<[1], [0], [0], [1], [0, 0, 1, 1], [], []>} : vector<256x512xbf16>, vector<512x128xbf16>, vector<256x128xf32> -> vector<256x128xf32>
    %12 = arith.addf %8, %11 : vector<256x128xf32>
    %c0_9 = arith.constant 0 : index
    %c0_10 = arith.constant 0 : index
    %13 = vector.load %arg6[%c0_9, %c0_10] : memref<256x128xf32, #tpu.memory_space<vmem>>, vector<256x128xf32>
    tpu.vector_store %arg6[%c0_9, %c0_10], %12 {strides = array<i32>} : memref<256x128xf32, #tpu.memory_space<vmem>>, vector<256x128xf32>,
    %c1_i32 = arith.constant 1 : i32
    %14 = arith.cmpi eq, %arg1, %c1_i32 : i32
    %c0_i32_11 = arith.constant 0 : i32
    %15 = arith.cmpi eq, %arg2, %c0_i32_11 : i32
    %16 = arith.andi %14, %15 : i1
    %17 = arith.extui %16 : i1 to i32
    %c0_i32_12 = arith.constant 0 : i32
    %18 = arith.cmpi ne, %17, %c0_i32_12 : i32
    scf.if %18 {
      %c0_13 = arith.constant 0 : index
      %c0_14 = arith.constant 0 : index
      %19 = vector.load %arg6[%c0_13, %c0_14] : memref<256x128xf32, #tpu.memory_space<vmem>>, vector<256x128xf32>
      %c0_15 = arith.constant 0 : index
      %c0_16 = arith.constant 0 : index
      %20 = vector.load %arg5[%c0_15, %c0_16] : memref<256x128xf32, #tpu.memory_space<vmem>>, vector<256x128xf32>
      tpu.vector_store %arg5[%c0_15, %c0_16], %19 {strides = array<i32>} : memref<256x128xf32, #tpu.memory_space<vmem>>, vector<256x128xf32>,
    } else {
    }
    return
  }
  func.func @transform_0(%arg0: i32, %arg1: i32, %arg2: i32) -> (i32, i32, i32) {
    %c0_i32 = arith.constant 0 : i32
    return %arg1, %arg0, %arg2 : i32, i32, i32
  }
  func.func @transform_1(%arg0: i32, %arg1: i32, %arg2: i32) -> (i32, i32, i32) {
    %c0_i32 = arith.constant 0 : i32
    %c0_i32_0 = arith.constant 0 : i32
    return %arg1, %arg2, %c0_i32 : i32, i32, i32
  }
  func.func @transform_2(%arg0: i32, %arg1: i32, %arg2: i32) -> (i32, i32) {
    %c0_i32 = arith.constant 0 : i32
    %c0_i32_0 = arith.constant 0 : i32
    return %arg0, %c0_i32 : i32, i32
  }
}

module attributes {stable_mosaic.version = 11 : i64} {
  func.func @gcn_layer1_kernel(%arg0: i32, %arg1: i32, %arg2: i32, %arg3: memref<1x256x512xf32, #tpu.memory_space<vmem>>, %arg4: memref<1x512x256xbf16, #tpu.memory_space<vmem>>, %arg5: memref<2x256x128xbf16, #tpu.memory_space<vmem>>, %arg6: memref<2x256x128xbf16, #tpu.memory_space<vmem>>, %arg7: memref<256x256xf32, #tpu.memory_space<vmem>>) attributes {dimension_semantics = [#tpu.dimension_semantics<parallel>, #tpu.dimension_semantics<arbitrary>, #tpu.dimension_semantics<arbitrary>], iteration_bounds = array<i64: 2, 2, 1>, scalar_prefetch = 0 : i64, scratch_operands = 1 : i64, tpu.core_type = #tpu.core_type<tc>, window_params = [{transform_indices = @transform_0, window_bounds = array<i64: 1, 256, 512>}, {transform_indices = @transform_1, window_bounds = array<i64: 1, 512, 256>}, {pipeline_mode = #tpu.pipeline_mode<synchronous>, transform_indices = @transform_2, window_bounds = array<i64: 2, 256, 128>}, {transform_indices = @transform_3, window_bounds = array<i64: 2, 256, 128>}]} {
    %c0_i32 = arith.constant 0 : i32
    %0 = arith.cmpi eq, %arg1, %c0_i32 : i32
    %c0_i32_0 = arith.constant 0 : i32
    %1 = arith.cmpi eq, %arg2, %c0_i32_0 : i32
    %2 = arith.andi %0, %1 : i1
    %3 = arith.extui %2 : i1 to i32
    %c0_i32_1 = arith.constant 0 : i32
    %4 = arith.cmpi ne, %3, %c0_i32_1 : i32
    scf.if %4 {
      %cst_13 = arith.constant 0.000000e+00 : f32
      %19 = vector.broadcast %cst_13 : f32 to vector<256x256xf32>
      %c0_14 = arith.constant 0 : index
      %c0_15 = arith.constant 0 : index
      %20 = vector.load %arg7[%c0_14, %c0_15] : memref<256x256xf32, #tpu.memory_space<vmem>>, vector<256x256xf32>
      tpu.vector_store %arg7[%c0_14, %c0_15], %19 {strides = array<i32>} : memref<256x256xf32, #tpu.memory_space<vmem>>, vector<256x256xf32>,
    } else {
    }
    %c0 = arith.constant 0 : index
    %c0_2 = arith.constant 0 : index
    %c0_3 = arith.constant 0 : index
    %5 = vector.load %arg3[%c0, %c0_2, %c0_3] : memref<1x256x512xf32, #tpu.memory_space<vmem>>, vector<1x256x512xf32>
    %6 = vector.shape_cast %5 : vector<1x256x512xf32> to vector<256x512xf32>
    %7 = arith.truncf %6 : vector<256x512xf32> to vector<256x512xbf16>
    %c0_4 = arith.constant 0 : index
    %c0_5 = arith.constant 0 : index
    %8 = vector.load %arg7[%c0_4, %c0_5] : memref<256x256xf32, #tpu.memory_space<vmem>>, vector<256x256xf32>
    %c0_6 = arith.constant 0 : index
    %c0_7 = arith.constant 0 : index
    %c0_8 = arith.constant 0 : index
    %9 = vector.load %arg4[%c0_6, %c0_7, %c0_8] : memref<1x512x256xbf16, #tpu.memory_space<vmem>>, vector<1x512x256xbf16>
    %10 = vector.shape_cast %9 : vector<1x512x256xbf16> to vector<512x256xbf16>
    %cst = arith.constant dense<0.000000e+00> : vector<256x256xf32>
    %11 = tpu.matmul %7, %10, %cst {dimension_numbers = #tpu.dot_dimension_numbers<[1], [0], [0], [1], [0, 0, 1, 1], [], []>} : vector<256x512xbf16>, vector<512x256xbf16>, vector<256x256xf32> -> vector<256x256xf32>
    %12 = arith.addf %8, %11 : vector<256x256xf32>
    %c0_9 = arith.constant 0 : index
    %c0_10 = arith.constant 0 : index
    %13 = vector.load %arg7[%c0_9, %c0_10] : memref<256x256xf32, #tpu.memory_space<vmem>>, vector<256x256xf32>
    tpu.vector_store %arg7[%c0_9, %c0_10], %12 {strides = array<i32>} : memref<256x256xf32, #tpu.memory_space<vmem>>, vector<256x256xf32>,
    %c1_i32 = arith.constant 1 : i32
    %14 = arith.cmpi eq, %arg1, %c1_i32 : i32
    %c0_i32_11 = arith.constant 0 : i32
    %15 = arith.cmpi eq, %arg2, %c0_i32_11 : i32
    %16 = arith.andi %14, %15 : i1
    %17 = arith.extui %16 : i1 to i32
    %c0_i32_12 = arith.constant 0 : i32
    %18 = arith.cmpi ne, %17, %c0_i32_12 : i32
    scf.if %18 {
      %c0_13 = arith.constant 0 : index
      %c0_14 = arith.constant 0 : index
      %19 = vector.load %arg7[%c0_13, %c0_14] : memref<256x256xf32, #tpu.memory_space<vmem>>, vector<256x256xf32>
      %cst_15 = arith.constant 0.000000e+00 : f32
      %20 = vector.broadcast %cst_15 : f32 to vector<256x256xf32>
      %21 = arith.maximumf %19, %20 : vector<256x256xf32>
      %22 = arith.truncf %21 : vector<256x256xf32> to vector<256x256xbf16>
      %c0_16 = arith.constant 0 : index
      %c0_17 = arith.constant 0 : index
      %c0_18 = arith.constant 0 : index
      %23 = vector.load %arg5[%c0_16, %c0_17, %c0_18] : memref<2x256x128xbf16, #tpu.memory_space<vmem>>, vector<1x256x128xbf16>
      %24 = vector.shape_cast %23 : vector<1x256x128xbf16> to vector<256x128xbf16>
      %cst_19 = arith.constant dense<0.000000e+00> : vector<256x128xf32>
      %25 = tpu.matmul %22, %24, %cst_19 {dimension_numbers = #tpu.dot_dimension_numbers<[1], [0], [0], [1], [0, 0, 1, 1], [], []>} : vector<256x256xbf16>, vector<256x128xbf16>, vector<256x128xf32> -> vector<256x128xf32>
      %26 = arith.truncf %25 : vector<256x128xf32> to vector<256x128xbf16>
      %c0_20 = arith.constant 0 : index
      %c0_21 = arith.constant 0 : index
      %c0_22 = arith.constant 0 : index
      %27 = vector.load %arg6[%c0_20, %c0_21, %c0_22] : memref<2x256x128xbf16, #tpu.memory_space<vmem>>, vector<1x256x128xbf16>
      %28 = vector.shape_cast %27 : vector<1x256x128xbf16> to vector<256x128xbf16>
      %29 = vector.shape_cast %26 : vector<256x128xbf16> to vector<1x256x128xbf16>
      tpu.vector_store %arg6[%c0_20, %c0_21, %c0_22], %29 {strides = array<i32>} : memref<2x256x128xbf16, #tpu.memory_space<vmem>>, vector<1x256x128xbf16>,
      %c1 = arith.constant 1 : index
      %c0_23 = arith.constant 0 : index
      %c0_24 = arith.constant 0 : index
      %30 = vector.load %arg5[%c1, %c0_23, %c0_24] : memref<2x256x128xbf16, #tpu.memory_space<vmem>>, vector<1x256x128xbf16>
      %31 = vector.shape_cast %30 : vector<1x256x128xbf16> to vector<256x128xbf16>
      %cst_25 = arith.constant dense<0.000000e+00> : vector<256x128xf32>
      %32 = tpu.matmul %22, %31, %cst_25 {dimension_numbers = #tpu.dot_dimension_numbers<[1], [0], [0], [1], [0, 0, 1, 1], [], []>} : vector<256x256xbf16>, vector<256x128xbf16>, vector<256x128xf32> -> vector<256x128xf32>
      %33 = arith.truncf %32 : vector<256x128xf32> to vector<256x128xbf16>
      %c1_26 = arith.constant 1 : index
      %c0_27 = arith.constant 0 : index
      %c0_28 = arith.constant 0 : index
      %34 = vector.load %arg6[%c1_26, %c0_27, %c0_28] : memref<2x256x128xbf16, #tpu.memory_space<vmem>>, vector<1x256x128xbf16>
      %35 = vector.shape_cast %34 : vector<1x256x128xbf16> to vector<256x128xbf16>
      %36 = vector.shape_cast %33 : vector<256x128xbf16> to vector<1x256x128xbf16>
      tpu.vector_store %arg6[%c1_26, %c0_27, %c0_28], %36 {strides = array<i32>} : memref<2x256x128xbf16, #tpu.memory_space<vmem>>, vector<1x256x128xbf16>,
    } else {
    }
    return
  }
  func.func @transform_0(%arg0: i32, %arg1: i32, %arg2: i32) -> (i32, i32, i32) {
    %c0_i32 = arith.constant 0 : i32
    return %arg1, %arg0, %arg2 : i32, i32, i32
  }
  func.func @transform_1(%arg0: i32, %arg1: i32, %arg2: i32) -> (i32, i32, i32) {
    %c0_i32 = arith.constant 0 : i32
    %c0_i32_0 = arith.constant 0 : i32
    return %arg1, %arg2, %c0_i32 : i32, i32, i32
  }
  func.func @transform_2(%arg0: i32, %arg1: i32, %arg2: i32) -> (i32, i32, i32) {
    %c0_i32 = arith.constant 0 : i32
    %c0_i32_0 = arith.constant 0 : i32
    %c0_i32_1 = arith.constant 0 : i32
    %c0_i32_2 = arith.constant 0 : i32
    return %c0_i32, %c0_i32_0, %c0_i32_1 : i32, i32, i32
  }
  func.func @transform_3(%arg0: i32, %arg1: i32, %arg2: i32) -> (i32, i32, i32) {
    %c0_i32 = arith.constant 0 : i32
    %c0_i32_0 = arith.constant 0 : i32
    %c0_i32_1 = arith.constant 0 : i32
    return %c0_i32, %arg0, %c0_i32_0 : i32, i32, i32
  }
}

</mosaic_0001>

<llo_original>
// kernel: gcn_forward.3
$region0: #{gcn_forward.3}
  #allocation0 [shape = 'u32[]', space=smem, size = 0x4, offset = 0x4, fixed_abs, tag = 'smem constant byte address 0x4 - core index']
  #allocation1 [shape = 'u32[144,128]{1,0:T(1,128)}', space=vmem, size = 0x12000, scoped, tag = 'internal scratch']
  #allocation2 [shape = 'f32[256,128]{1,0:T(8,128)}', space=vmem, size = 0x20000, scoped, tag = 'scratch operand']
  %s0 = inlined_call_operand.vmem [shape: f32[2,512,512], index: 0, kind: input, shape index: {}]
  %s1 = inlined_call_operand.vmem [shape: bf16[2,512,128], index: 1, kind: input, shape index: {}]
  %s2 = inlined_call_operand.vmem [shape: f32[512,128], index: 2, kind: output, shape index: {}]
  %s3 = sld [smem:[#allocation0]]
  $region49: #{gcn_forward.3} parent=0
    _
  %s5 = ssub.s32 1, %s3
  %s6 = scalar_select 0, %s5, %s3
  loop: start=0, step=1, limit=6
  $region2: #{gcn_forward.3} parent=0 // loop_pre_header
    _
  $region3: #{gcn_forward.3} parent=0 // loop_header
    %s8 = sphi 0, %s12
    %p9 = scmp.ge.s32.totalorder %s8, 6
    %s15 = sphi 0, %s34
    %s16 = sphi 0, %s30
    %s17 = sphi 0, %s26
    %s18 = sphi 0, %s15
    %s19 = sphi 0, %s16
    %s20 = sphi 0, %s17
    %s21 = sphi 0, %s18
    %s22 = sphi 0, %s19
    %s23 = sphi 0, %s20
    %s41 = sphi 0, %s43
    %s44 = sphi 0, %s41
    %s45 = sphi 0, %s44
    %s61 = sphi 0, %s45
    %s69 = sphi 0, %s71
    %s72 = sphi 0, %s69
    %s73 = sphi 0, %s72
    %s89 = sphi 0, %s73
    %s95 = sphi 0, %s97
    %s98 = sphi 0, %s95
    %s99 = sphi 0, %s98
    %s115 = sphi 0, %s99
  $region4: #{gcn_forward.3} parent=0 // loop_header_branch
    %11 = sbr.rel (%p9) target = $region8
  $region5: #{gcn_forward.3} parent=0 // loop_body
    %s13 = ssub.s32 %s8, 1
    %s14 = ssub.s32 %s8, 2
    %s24 = sadd.s32 1, %s17
    %p25 = scmp.ge.s32.totalorder %s24, 1
    %s26 = scalar_select %p25, 0, %s24
    %s27 = sadd.s32 1, %s16
    %s28 = scalar_select %p25, %s27, %s16
    %p29 = scmp.ge.s32.totalorder %s28, 2
    %s30 = scalar_select %p29, 0, %s28
    %s31 = sadd.s32 1, %s15
    %s32 = scalar_select %p29, %s31, %s15
    %p33 = scmp.ge.s32.totalorder %s32, 2
    %s34 = scalar_select %p33, 0, %s32
    %s35 = ssub.s32 %s16, %s30
    %s36 = ssub.s32 %s15, %s34
    %s37 = sor.u32 %s35, %s36
    %s38 = ssub.s32 %s17, %s26
    %s39 = sor.u32 %s37, %s38
    %p40 = scmp.eq.s32.totalorder %s39, 0
    %s42 = sadd.s32 %s41, 1
    %s43 = scalar_select %p40, %s41, %s42
    %p46 = pneg %p40
    %p47 = scmp.eq.s32.totalorder %s8, 3
    %p48 = por %p46, %p47
    %p49 = scmp.ne.s32.totalorder %s41, %s44
    %p50 = scmp.eq.s32.totalorder %s8, 0
    %p51 = por %p49, %p50
    %p52 = scmp.ne.s32.totalorder %s41, %s44
    %p53 = scmp.eq.s32.totalorder %s13, 3
    %p54 = por %p52, %p53
    %p55 = scmp.ne.s32.totalorder %s44, %s45
    %p56 = scmp.eq.s32.totalorder %s13, 0
    %p57 = por %p55, %p56
    %p58 = scmp.ne.s32.totalorder %s44, %s45
    %p59 = scmp.eq.s32.totalorder %s14, 3
    %p60 = por %p58, %p59
    %p62 = scmp.ne.s32.totalorder %s45, %s61
    %p63 = scmp.eq.s32.totalorder %s14, 0
    %p64 = por %p62, %p63
    %s65 = ssub.s32 %s16, %s30
    %s66 = ssub.s32 %s17, %s26
    %s67 = sor.u32 %s65, %s66
    %p68 = scmp.eq.s32.totalorder %s67, 0
    %s70 = sadd.s32 %s69, 1
    %s71 = scalar_select %p68, %s69, %s70
    %p74 = pneg %p68
    %p75 = scmp.eq.s32.totalorder %s8, 3
    %p76 = por %p74, %p75
    %p77 = scmp.ne.s32.totalorder %s69, %s72
    %p78 = scmp.eq.s32.totalorder %s8, 0
    %p79 = por %p77, %p78
    %p80 = scmp.ne.s32.totalorder %s69, %s72
    %p81 = scmp.eq.s32.totalorder %s13, 3
    %p82 = por %p80, %p81
    %p83 = scmp.ne.s32.totalorder %s72, %s73
    %p84 = scmp.eq.s32.totalorder %s13, 0
    %p85 = por %p83, %p84
    %p86 = scmp.ne.s32.totalorder %s72, %s73
    %p87 = scmp.eq.s32.totalorder %s14, 3
    %p88 = por %p86, %p87
    %p90 = scmp.ne.s32.totalorder %s73, %s89
    %p91 = scmp.eq.s32.totalorder %s14, 0
    %p92 = por %p90, %p91
    %s93 = ssub.s32 %s15, %s34
    %p94 = scmp.eq.s32.totalorder %s93, 0
    %s96 = sadd.s32 %s95, 1
    %s97 = scalar_select %p94, %s95, %s96
    %p100 = pneg %p94
    %p101 = scmp.eq.s32.totalorder %s8, 3
    %p102 = por %p100, %p101
    %p103 = scmp.ne.s32.totalorder %s95, %s98
    %p104 = scmp.eq.s32.totalorder %s8, 0
    %p105 = por %p103, %p104
    %p106 = scmp.ne.s32.totalorder %s95, %s98
    %p107 = scmp.eq.s32.totalorder %s13, 3
    %p108 = por %p106, %p107
    %p109 = scmp.ne.s32.totalorder %s98, %s99
    %p110 = scmp.eq.s32.totalorder %s13, 0
    %p111 = por %p109, %p110
    %p112 = scmp.ne.s32.totalorder %s98, %s99
    %p113 = scmp.eq.s32.totalorder %s14, 3
    %p114 = por %p112, %p113
    %p116 = scmp.ne.s32.totalorder %s99, %s115
    %p117 = scmp.eq.s32.totalorder %s14, 0
    %p118 = por %p116, %p117
    %p119 = scmp.le.s32.totalorder 1, %s8
    %p120 = scmp.lt.s32.totalorder %s8, 5
    %p121 = pnand %p119, %p120
    %p122 = pneg %p121
    // Predicated region
    $region9: #{gcn_forward.3} parent=5 // pred_check
      _
    $region10: #{gcn_forward.3} parent=5 // pred_check_branch
      %124 = sbr.rel (%p121) target = $region12
    $region11: #{gcn_forward.3} parent=5 // pred_region
      %s125 = ssub.s32 %s8, 1
    $region12: #{gcn_forward.3} parent=5 // pred_fallthru
      _
    %p126 = scmp.lt.s32.totalorder %s8, 4
    // Predicated region
    $region13: #{gcn_forward.3} parent=5 // pred_check
      %p127 = pneg %p126
    $region14: #{gcn_forward.3} parent=5 // pred_check_branch
      %129 = sbr.rel (%p127) target = $region16
    $region15: #{gcn_forward.3} parent=5 // pred_region
      // Predicated region
      $region17: #{gcn_forward.3} parent=15 // pred_check
        %p130 = pneg %p51
      $region18: #{gcn_forward.3} parent=15 // pred_check_branch
        %132 = sbr.rel (%p130) target = $region20
      $region19: #{gcn_forward.3} parent=15 // pred_region
        %s133 = smul.u32 32, %s15
        %s134 = smul.u32 4, %s17
        %p135 = scmp.lt.s32.totalorder %s16, 1
        %s136 = scalar_select %p135, %s16, 1
        %p137 = scmp.lt.s32.totalorder %s133, 63
        %s138 = scalar_select %p137, %s133, 63
        %p139 = scmp.lt.s32.totalorder %s134, 3
        %s140 = scalar_select %p139, %s134, 3
        %s141 = smul.addr %s138, 4
        %s142 = sadd.s32 %s140, %s141
        %s143 = smul.addr %s136, 256
        %s144 = sadd.s32 %s142, %s143
        %s145 = smul.addr %s144, 8
        %s146 = scalar_lea.vmem %s0, %s145
        %s147 = smul.u32 32, %s15
        %s148 = smul.u32 4, %s17
      $region20: #{gcn_forward.3} parent=15 // pred_fallthru
        _
      // Predicated region
      $region21: #{gcn_forward.3} parent=15 // pred_check
        %p149 = pneg %p79
      $region22: #{gcn_forward.3} parent=15 // pred_check_branch
        %151 = sbr.rel (%p149) target = $region24
      $region23: #{gcn_forward.3} parent=15 // pred_region
        %s152 = smul.u32 64, %s17
        %p153 = scmp.lt.s32.totalorder %s16, 1
        %s154 = scalar_select %p153, %s16, 1
        %p155 = scmp.lt.s32.totalorder %s152, 63
        %s156 = scalar_select %p155, %s152, 63
        %s157 = smul.addr %s154, 64
        %s158 = sadd.s32 %s156, %s157
        %s159 = smul.addr %s158, 4
        %s160 = scalar_lea.vmem %s1, %s159
        %s161 = smul.u32 64, %s17
      $region24: #{gcn_forward.3} parent=15 // pred_fallthru
        _
    $region16: #{gcn_forward.3} parent=5 // pred_fallthru
      _
    %p162 = scmp.le.s32.totalorder 1, %s8
    %p163 = scmp.lt.s32.totalorder %s8, 5
    %p164 = pnand %p162, %p163
    %p165 = pneg %p164
    // Predicated region
    $region25: #{gcn_forward.3} parent=5 // pred_check
      _
    $region26: #{gcn_forward.3} parent=5 // pred_check_branch
      %167 = sbr.rel (%p164) target = $region28
    $region27: #{gcn_forward.3} parent=5 // pred_region
      %s168 = ssub.s32 %s8, 1
      %s169 = smul.u32 32, %s18
      %s170 = smul.u32 4, %s20
      %p171 = scmp.lt.s32.totalorder %s19, 1
      %s172 = scalar_select %p171, %s19, 1
      %p173 = scmp.lt.s32.totalorder %s169, 63
      %s174 = scalar_select %p173, %s169, 63
      %p175 = scmp.lt.s32.totalorder %s170, 3
      %s176 = scalar_select %p175, %s170, 3
      %s177 = smul.addr %s174, 4
      %s178 = sadd.s32 %s176, %s177
      %s179 = smul.addr %s172, 256
      %s180 = sadd.s32 %s178, %s179
      %s181 = smul.addr %s180, 8
      %s182 = scalar_lea.vmem %s0, %s181
      %p183 = pneg %p57
      %p184 = pneg %p54
      %s185 = smul.u32 64, %s20
      %p186 = scmp.lt.s32.totalorder %s19, 1
      %s187 = scalar_select %p186, %s19, 1
      %p188 = scmp.lt.s32.totalorder %s185, 63
      %s189 = scalar_select %p188, %s185, 63
      %s190 = smul.addr %s187, 64
      %s191 = sadd.s32 %s189, %s190
      %s192 = smul.addr %s191, 4
      %s193 = scalar_lea.vmem %s1, %s192
      %p194 = pneg %p85
      %p195 = pneg %p82
      %p196 = pneg %p111
      %p197 = pneg %p108
      %s198 = smul.u32 32, %s18
      %p199 = scmp.lt.s32.totalorder %s198, 63
      %s200 = scalar_select %p199, %s198, 63
      %s201 = smul.addr %s200, 8
      %s202 = scalar_lea.vmem %s2, %s201
      %s203 = smul.u32 32, %s18
      %s204 = smul.u32 4, %s20
      %p205 = scmp.lt.s32.totalorder %s19, 1
      %s206 = scalar_select %p205, %s19, 1
      %p207 = scmp.lt.s32.totalorder %s203, 63
      %s208 = scalar_select %p207, %s203, 63
      %p209 = scmp.lt.s32.totalorder %s204, 3
      %s210 = scalar_select %p209, %s204, 3
      %s211 = smul.addr %s208, 4
      %s212 = sadd.s32 %s210, %s211
      %s213 = smul.addr %s206, 256
      %s214 = sadd.s32 %s212, %s213
      %s215 = smul.addr %s214, 8
      %s216 = scalar_lea.vmem %s0, %s215
      %s217 = smul.u32 32, %s18
      %s218 = smul.u32 4, %s20
      %s219 = smul.u32 64, %s20
      %p220 = scmp.lt.s32.totalorder %s19, 1
      %s221 = scalar_select %p220, %s19, 1
      %p222 = scmp.lt.s32.totalorder %s219, 63
      %s223 = scalar_select %p222, %s219, 63
      %s224 = smul.addr %s221, 64
      %s225 = sadd.s32 %s223, %s224
      %s226 = smul.addr %s225, 4
      %s227 = scalar_lea.vmem %s1, %s226
      %s228 = smul.u32 64, %s20
      %s229 = smul.u32 32, %s18
      %p230 = scmp.lt.s32.totalorder %s229, 63
      %s231 = scalar_select %p230, %s229, 63
      %s232 = smul.addr %s231, 8
      %s233 = scalar_lea.vmem %s2, %s232
      %s234 = smul.u32 32, %s18
      %p236 = scmp.eq.s32.totalorder %s19, 0
      %p237 = scmp.eq.s32.totalorder %s20, 0
      %p238 = pnand %p236, %p237
      %p239 = pneg %p238
      // Predicated region
      $region29: #{gcn_forward.3} parent=27 // pred_check
        _
      $region30: #{gcn_forward.3} parent=27 // pred_check_branch
        %241 = sbr.rel (%p238) target = $region32
      $region31: #{gcn_forward.3} parent=27 // pred_region
        %242 = vst [vmem:[#allocation2] sm:$0xff] 0.0
        %243 = vst [vmem:[#allocation2 + $0x8] sm:$0xff] 0.0
        %244 = vst [vmem:[#allocation2 + $0x10] sm:$0xff] 0.0
        %245 = vst [vmem:[#allocation2 + $0x18] sm:$0xff] 0.0
        %246 = vst [vmem:[#allocation2 + $0x20] sm:$0xff] 0.0
        %247 = vst [vmem:[#allocation2 + $0x28] sm:$0xff] 0.0
        %248 = vst [vmem:[#allocation2 + $0x30] sm:$0xff] 0.0
        %249 = vst [vmem:[#allocation2 + $0x38] sm:$0xff] 0.0
        %250 = vst [vmem:[#allocation2 + $0x40] sm:$0xff] 0.0
        %251 = vst [vmem:[#allocation2 + $0x48] sm:$0xff] 0.0
        %252 = vst [vmem:[#allocation2 + $0x50] sm:$0xff] 0.0
        %253 = vst [vmem:[#allocation2 + $0x58] sm:$0xff] 0.0
        %254 = vst [vmem:[#allocation2 + $0x60] sm:$0xff] 0.0
        %255 = vst [vmem:[#allocation2 + $0x68] sm:$0xff] 0.0
        %256 = vst [vmem:[#allocation2 + $0x70] sm:$0xff] 0.0
        %257 = vst [vmem:[#allocation2 + $0x78] sm:$0xff] 0.0
        %258 = vst [vmem:[#allocation2 + $0x80] sm:$0xff] 0.0
        %259 = vst [vmem:[#allocation2 + $0x88] sm:$0xff] 0.0
        %260 = vst [vmem:[#allocation2 + $0x90] sm:$0xff] 0.0
        %261 = vst [vmem:[#allocation2 + $0x98] sm:$0xff] 0.0
        %262 = vst [vmem:[#allocation2 + $0xa0] sm:$0xff] 0.0
        %263 = vst [vmem:[#allocation2 + $0xa8] sm:$0xff] 0.0
        %264 = vst [vmem:[#allocation2 + $0xb0] sm:$0xff] 0.0
        %265 = vst [vmem:[#allocation2 + $0xb8] sm:$0xff] 0.0
        %266 = vst [vmem:[#allocation2 + $0xc0] sm:$0xff] 0.0
        %267 = vst [vmem:[#allocation2 + $0xc8] sm:$0xff] 0.0
        %268 = vst [vmem:[#allocation2 + $0xd0] sm:$0xff] 0.0
        %269 = vst [vmem:[#allocation2 + $0xd8] sm:$0xff] 0.0
        %270 = vst [vmem:[#allocation2 + $0xe0] sm:$0xff] 0.0
        %271 = vst [vmem:[#allocation2 + $0xe8] sm:$0xff] 0.0
        %272 = vst [vmem:[#allocation2 + $0xf0] sm:$0xff] 0.0
        %273 = vst [vmem:[#allocation2 + $0xf8] sm:$0xff] 0.0
      $region32: #{gcn_forward.3} parent=27 // pred_fallthru
        _
      %v274 = vld [vmem:[%s216] sm:$0xff]
      %v275 = vld [vmem:[%s216 + $0x8] sm:$0xff]
      %v276 = vld [vmem:[%s216 + $0x10] sm:$0xff]
      %v277 = vld [vmem:[%s216 + $0x18] sm:$0xff]
      %v278 = vld [vmem:[%s216 + $0x20] sm:$0xff]
      %v279 = vld [vmem:[%s216 + $0x28] sm:$0xff]
      %v280 = vld [vmem:[%s216 + $0x30] sm:$0xff]
      %v281 = vld [vmem:[%s216 + $0x38] sm:$0xff]
      %v282 = vld [vmem:[%s216 + $0x40] sm:$0xff]
      %v283 = vld [vmem:[%s216 + $0x48] sm:$0xff]
      %v284 = vld [vmem:[%s216 + $0x50] sm:$0xff]
      %v285 = vld [vmem:[%s216 + $0x58] sm:$0xff]
      %v286 = vld [vmem:[%s216 + $0x60] sm:$0xff]
      %v287 = vld [vmem:[%s216 + $0x68] sm:$0xff]
      %v288 = vld [vmem:[%s216 + $0x70] sm:$0xff]
      %v289 = vld [vmem:[%s216 + $0x78] sm:$0xff]
      %v290 = vld [vmem:[%s216 + $0x80] sm:$0xff]
      %v291 = vld [vmem:[%s216 + $0x88] sm:$0xff]
      %v292 = vld [vmem:[%s216 + $0x90] sm:$0xff]
      %v293 = vld [vmem:[%s216 + $0x98] sm:$0xff]
      %v294 = vld [vmem:[%s216 + $0xa0] sm:$0xff]
      %v295 = vld [vmem:[%s216 + $0xa8] sm:$0xff]
      %v296 = vld [vmem:[%s216 + $0xb0] sm:$0xff]
      %v297 = vld [vmem:[%s216 + $0xb8] sm:$0xff]
      %v298 = vld [vmem:[%s216 + $0xc0] sm:$0xff]
      %v299 = vld [vmem:[%s216 + $0xc8] sm:$0xff]
      %v300 = vld [vmem:[%s216 + $0xd0] sm:$0xff]
      %v301 = vld [vmem:[%s216 + $0xd8] sm:$0xff]
      %v302 = vld [vmem:[%s216 + $0xe0] sm:$0xff]
      %v303 = vld [vmem:[%s216 + $0xe8] sm:$0xff]
      %v304 = vld [vmem:[%s216 + $0xf0] sm:$0xff]
      %v305 = vld [vmem:[%s216 + $0xf8] sm:$0xff]
      %v306 = vld [vmem:[%s216 + $0x100] sm:$0xff]
      %v307 = vld [vmem:[%s216 + $0x108] sm:$0xff]
      %v308 = vld [vmem:[%s216 + $0x110] sm:$0xff]
      %v309 = vld [vmem:[%s216 + $0x118] sm:$0xff]
      %v310 = vld [vmem:[%s216 + $0x120] sm:$0xff]
      %v311 = vld [vmem:[%s216 + $0x128] sm:$0xff]
      %v312 = vld [vmem:[%s216 + $0x130] sm:$0xff]
      %v313 = vld [vmem:[%s216 + $0x138] sm:$0xff]
      %v314 = vld [vmem:[%s216 + $0x140] sm:$0xff]
      %v315 = vld [vmem:[%s216 + $0x148] sm:$0xff]
      %v316 = vld [vmem:[%s216 + $0x150] sm:$0xff]
      %v317 = vld [vmem:[%s216 + $0x158] sm:$0xff]
      %v318 = vld [vmem:[%s216 + $0x160] sm:$0xff]
      %v319 = vld [vmem:[%s216 + $0x168] sm:$0xff]
      %v320 = vld [vmem:[%s216 + $0x170] sm:$0xff]
      %v321 = vld [vmem:[%s216 + $0x178] sm:$0xff]
      %v322 = vld [vmem:[%s216 + $0x180] sm:$0xff]
      %v323 = vld [vmem:[%s216 + $0x188] sm:$0xff]
      %v324 = vld [vmem:[%s216 + $0x190] sm:$0xff]
      %v325 = vld [vmem:[%s216 + $0x198] sm:$0xff]
      %v326 = vld [vmem:[%s216 + $0x1a0] sm:$0xff]
      %v327 = vld [vmem:[%s216 + $0x1a8] sm:$0xff]
      %v328 = vld [vmem:[%s216 + $0x1b0] sm:$0xff]
      %v329 = vld [vmem:[%s216 + $0x1b8] sm:$0xff]
      %v330 = vld [vmem:[%s216 + $0x1c0] sm:$0xff]
      %v331 = vld [vmem:[%s216 + $0x1c8] sm:$0xff]
      %v332 = vld [vmem:[%s216 + $0x1d0] sm:$0xff]
      %v333 = vld [vmem:[%s216 + $0x1d8] sm:$0xff]
      %v334 = vld [vmem:[%s216 + $0x1e0] sm:$0xff]
      %v335 = vld [vmem:[%s216 + $0x1e8] sm:$0xff]
      %v336 = vld [vmem:[%s216 + $0x1f0] sm:$0xff]
      %v337 = vld [vmem:[%s216 + $0x1f8] sm:$0xff]
      %v338 = vld [vmem:[%s216 + $0x200] sm:$0xff]
      %v339 = vld [vmem:[%s216 + $0x208] sm:$0xff]
      %v340 = vld [vmem:[%s216 + $0x210] sm:$0xff]
      %v341 = vld [vmem:[%s216 + $0x218] sm:$0xff]
      %v342 = vld [vmem:[%s216 + $0x220] sm:$0xff]
      %v343 = vld [vmem:[%s216 + $0x228] sm:$0xff]
      %v344 = vld [vmem:[%s216 + $0x230] sm:$0xff]
      %v345 = vld [vmem:[%s216 + $0x238] sm:$0xff]
      %v346 = vld [vmem:[%s216 + $0x240] sm:$0xff]
      %v347 = vld [vmem:[%s216 + $0x248] sm:$0xff]
      %v348 = vld [vmem:[%s216 + $0x250] sm:$0xff]
      %v349 = vld [vmem:[%s216 + $0x258] sm:$0xff]
      %v350 = vld [vmem:[%s216 + $0x260] sm:$0xff]
      %v351 = vld [vmem:[%s216 + $0x268] sm:$0xff]
      %v352 = vld [vmem:[%s216 + $0x270] sm:$0xff]
      %v353 = vld [vmem:[%s216 + $0x278] sm:$0xff]
      %v354 = vld [vmem:[%s216 + $0x280] sm:$0xff]
      %v355 = vld [vmem:[%s216 + $0x288] sm:$0xff]
      %v356 = vld [vmem:[%s216 + $0x290] sm:$0xff]
      %v357 = vld [vmem:[%s216 + $0x298] sm:$0xff]
      %v358 = vld [vmem:[%s216 + $0x2a0] sm:$0xff]
      %v359 = vld [vmem:[%s216 + $0x2a8] sm:$0xff]
      %v360 = vld [vmem:[%s216 + $0x2b0] sm:$0xff]
      %v361 = vld [vmem:[%s216 + $0x2b8] sm:$0xff]
      %v362 = vld [vmem:[%s216 + $0x2c0] sm:$0xff]
      %v363 = vld [vmem:[%s216 + $0x2c8] sm:$0xff]
      %v364 = vld [vmem:[%s216 + $0x2d0] sm:$0xff]
      %v365 = vld [vmem:[%s216 + $0x2d8] sm:$0xff]
      %v366 = vld [vmem:[%s216 + $0x2e0] sm:$0xff]
      %v367 = vld [vmem:[%s216 + $0x2e8] sm:$0xff]
      %v368 = vld [vmem:[%s216 + $0x2f0] sm:$0xff]
      %v369 = vld [vmem:[%s216 + $0x2f8] sm:$0xff]
      %v370 = vld [vmem:[%s216 + $0x300] sm:$0xff]
      %v371 = vld [vmem:[%s216 + $0x308] sm:$0xff]
      %v372 = vld [vmem:[%s216 + $0x310] sm:$0xff]
      %v373 = vld [vmem:[%s216 + $0x318] sm:$0xff]
      %v374 = vld [vmem:[%s216 + $0x320] sm:$0xff]
      %v375 = vld [vmem:[%s216 + $0x328] sm:$0xff]
      %v376 = vld [vmem:[%s216 + $0x330] sm:$0xff]
      %v377 = vld [vmem:[%s216 + $0x338] sm:$0xff]
      %v378 = vld [vmem:[%s216 + $0x340] sm:$0xff]
      %v379 = vld [vmem:[%s216 + $0x348] sm:$0xff]
      %v380 = vld [vmem:[%s216 + $0x350] sm:$0xff]
      %v381 = vld [vmem:[%s216 + $0x358] sm:$0xff]
      %v382 = vld [vmem:[%s216 + $0x360] sm:$0xff]
      %v383 = vld [vmem:[%s216 + $0x368] sm:$0xff]
      %v384 = vld [vmem:[%s216 + $0x370] sm:$0xff]
      %v385 = vld [vmem:[%s216 + $0x378] sm:$0xff]
      %v386 = vld [vmem:[%s216 + $0x380] sm:$0xff]
      %v387 = vld [vmem:[%s216 + $0x388] sm:$0xff]
      %v388 = vld [vmem:[%s216 + $0x390] sm:$0xff]
      %v389 = vld [vmem:[%s216 + $0x398] sm:$0xff]
      %v390 = vld [vmem:[%s216 + $0x3a0] sm:$0xff]
      %v391 = vld [vmem:[%s216 + $0x3a8] sm:$0xff]
      %v392 = vld [vmem:[%s216 + $0x3b0] sm:$0xff]
      %v393 = vld [vmem:[%s216 + $0x3b8] sm:$0xff]
      %v394 = vld [vmem:[%s216 + $0x3c0] sm:$0xff]
      %v395 = vld [vmem:[%s216 + $0x3c8] sm:$0xff]
      %v396 = vld [vmem:[%s216 + $0x3d0] sm:$0xff]
      %v397 = vld [vmem:[%s216 + $0x3d8] sm:$0xff]
      %v398 = vld [vmem:[%s216 + $0x3e0] sm:$0xff]
      %v399 = vld [vmem:[%s216 + $0x3e8] sm:$0xff]
      %v400 = vld [vmem:[%s216 + $0x3f0] sm:$0xff]
      %v401 = vld [vmem:[%s216 + $0x3f8] sm:$0xff]
      %v402 = vpack.c.bf16 %v278, %v274
      %v403 = vpack.c.bf16 %v279, %v275
      %v404 = vpack.c.bf16 %v280, %v276
      %v405 = vpack.c.bf16 %v281, %v277
      %v406 = vpack.c.bf16 %v286, %v282
      %v407 = vpack.c.bf16 %v287, %v283
      %v408 = vpack.c.bf16 %v288, %v284
      %v409 = vpack.c.bf16 %v289, %v285
      %v410 = vpack.c.bf16 %v294, %v290
      %v411 = vpack.c.bf16 %v295, %v291
      %v412 = vpack.c.bf16 %v296, %v292
      %v413 = vpack.c.bf16 %v297, %v293
      %v414 = vpack.c.bf16 %v302, %v298
      %v415 = vpack.c.bf16 %v303, %v299
      %v416 = vpack.c.bf16 %v304, %v300
      %v417 = vpack.c.bf16 %v305, %v301
      %v418 = vpack.c.bf16 %v310, %v306
      %v419 = vpack.c.bf16 %v311, %v307
      %v420 = vpack.c.bf16 %v312, %v308
      %v421 = vpack.c.bf16 %v313, %v309
      %v422 = vpack.c.bf16 %v318, %v314
      %v423 = vpack.c.bf16 %v319, %v315
      %v424 = vpack.c.bf16 %v320, %v316
      %v425 = vpack.c.bf16 %v321, %v317
      %v426 = vpack.c.bf16 %v326, %v322
      %v427 = vpack.c.bf16 %v327, %v323
      %v428 = vpack.c.bf16 %v328, %v324
      %v429 = vpack.c.bf16 %v329, %v325
      %v430 = vpack.c.bf16 %v334, %v330
      %v431 = vpack.c.bf16 %v335, %v331
      %v432 = vpack.c.bf16 %v336, %v332
      %v433 = vpack.c.bf16 %v337, %v333
      %v434 = vpack.c.bf16 %v342, %v338
      %v435 = vpack.c.bf16 %v343, %v339
      %v436 = vpack.c.bf16 %v344, %v340
      %v437 = vpack.c.bf16 %v345, %v341
      %v438 = vpack.c.bf16 %v350, %v346
      %v439 = vpack.c.bf16 %v351, %v347
      %v440 = vpack.c.bf16 %v352, %v348
      %v441 = vpack.c.bf16 %v353, %v349
      %v442 = vpack.c.bf16 %v358, %v354
      %v443 = vpack.c.bf16 %v359, %v355
      %v444 = vpack.c.bf16 %v360, %v356
      %v445 = vpack.c.bf16 %v361, %v357
      %v446 = vpack.c.bf16 %v366, %v362
      %v447 = vpack.c.bf16 %v367, %v363
      %v448 = vpack.c.bf16 %v368, %v364
      %v449 = vpack.c.bf16 %v369, %v365
      %v450 = vpack.c.bf16 %v374, %v370
      %v451 = vpack.c.bf16 %v375, %v371
      %v452 = vpack.c.bf16 %v376, %v372
      %v453 = vpack.c.bf16 %v377, %v373
      %v454 = vpack.c.bf16 %v382, %v378
      %v455 = vpack.c.bf16 %v383, %v379
      %v456 = vpack.c.bf16 %v384, %v380
      %v457 = vpack.c.bf16 %v385, %v381
      %v458 = vpack.c.bf16 %v390, %v386
      %v459 = vpack.c.bf16 %v391, %v387
      %v460 = vpack.c.bf16 %v392, %v388
      %v461 = vpack.c.bf16 %v393, %v389
      %v462 = vpack.c.bf16 %v398, %v394
      %v463 = vpack.c.bf16 %v399, %v395
      %v464 = vpack.c.bf16 %v400, %v396
      %v465 = vpack.c.bf16 %v401, %v397
      %v466 = vld [vmem:[#allocation2] sm:$0xff]
      %v467 = vld [vmem:[#allocation2 + $0x8] sm:$0xff]
      %v468 = vld [vmem:[#allocation2 + $0x10] sm:$0xff]
      %v469 = vld [vmem:[#allocation2 + $0x18] sm:$0xff]
      %v470 = vld [vmem:[#allocation2 + $0x20] sm:$0xff]
      %v471 = vld [vmem:[#allocation2 + $0x28] sm:$0xff]
      %v472 = vld [vmem:[#allocation2 + $0x30] sm:$0xff]
      %v473 = vld [vmem:[#allocation2 + $0x38] sm:$0xff]
      %v474 = vld [vmem:[#allocation2 + $0x40] sm:$0xff]
      %v475 = vld [vmem:[#allocation2 + $0x48] sm:$0xff]
      %v476 = vld [vmem:[#allocation2 + $0x50] sm:$0xff]
      %v477 = vld [vmem:[#allocation2 + $0x58] sm:$0xff]
      %v478 = vld [vmem:[#allocation2 + $0x60] sm:$0xff]
      %v479 = vld [vmem:[#allocation2 + $0x68] sm:$0xff]
      %v480 = vld [vmem:[#allocation2 + $0x70] sm:$0xff]
      %v481 = vld [vmem:[#allocation2 + $0x78] sm:$0xff]
      %v482 = vld [vmem:[#allocation2 + $0x80] sm:$0xff]
      %v483 = vld [vmem:[#allocation2 + $0x88] sm:$0xff]
      %v484 = vld [vmem:[#allocation2 + $0x90] sm:$0xff]
      %v485 = vld [vmem:[#allocation2 + $0x98] sm:$0xff]
      %v486 = vld [vmem:[#allocation2 + $0xa0] sm:$0xff]
      %v487 = vld [vmem:[#allocation2 + $0xa8] sm:$0xff]
      %v488 = vld [vmem:[#allocation2 + $0xb0] sm:$0xff]
      %v489 = vld [vmem:[#allocation2 + $0xb8] sm:$0xff]
      %v490 = vld [vmem:[#allocation2 + $0xc0] sm:$0xff]
      %v491 = vld [vmem:[#allocation2 + $0xc8] sm:$0xff]
      %v492 = vld [vmem:[#allocation2 + $0xd0] sm:$0xff]
      %v493 = vld [vmem:[#allocation2 + $0xd8] sm:$0xff]
      %v494 = vld [vmem:[#allocation2 + $0xe0] sm:$0xff]
      %v495 = vld [vmem:[#allocation2 + $0xe8] sm:$0xff]
      %v496 = vld [vmem:[#allocation2 + $0xf0] sm:$0xff]
      %v497 = vld [vmem:[#allocation2 + $0xf8] sm:$0xff]
      %v498 = vld [vmem:[%s227] sm:$0xf]
      %v499 = vld [vmem:[%s227 + $0x4] sm:$0xf]
      %v500 = vld [vmem:[%s227 + $0x8] sm:$0xf]
      %v501 = vld [vmem:[%s227 + $0xc] sm:$0xf]
      %v502 = vld [vmem:[%s227 + $0x10] sm:$0xf]
      %v503 = vld [vmem:[%s227 + $0x14] sm:$0xf]
      %v504 = vld [vmem:[%s227 + $0x18] sm:$0xf]
      %v505 = vld [vmem:[%s227 + $0x1c] sm:$0xf]
      %v506 = vld [vmem:[%s227 + $0x20] sm:$0xf]
      %v507 = vld [vmem:[%s227 + $0x24] sm:$0xf]
      %v508 = vld [vmem:[%s227 + $0x28] sm:$0xf]
      %v509 = vld [vmem:[%s227 + $0x2c] sm:$0xf]
      %v510 = vld [vmem:[%s227 + $0x30] sm:$0xf]
      %v511 = vld [vmem:[%s227 + $0x34] sm:$0xf]
      %v512 = vld [vmem:[%s227 + $0x38] sm:$0xf]
      %v513 = vld [vmem:[%s227 + $0x3c] sm:$0xf]
      %v514 = vld [vmem:[%s227 + $0x40] sm:$0xf]
      %v515 = vld [vmem:[%s227 + $0x44] sm:$0xf]
      %v516 = vld [vmem:[%s227 + $0x48] sm:$0xf]
      %v517 = vld [vmem:[%s227 + $0x4c] sm:$0xf]
      %v518 = vld [vmem:[%s227 + $0x50] sm:$0xf]
      %v519 = vld [vmem:[%s227 + $0x54] sm:$0xf]
      %v520 = vld [vmem:[%s227 + $0x58] sm:$0xf]
      %v521 = vld [vmem:[%s227 + $0x5c] sm:$0xf]
      %v522 = vld [vmem:[%s227 + $0x60] sm:$0xf]
      %v523 = vld [vmem:[%s227 + $0x64] sm:$0xf]
      %v524 = vld [vmem:[%s227 + $0x68] sm:$0xf]
      %v525 = vld [vmem:[%s227 + $0x6c] sm:$0xf]
      %v526 = vld [vmem:[%s227 + $0x70] sm:$0xf]
      %v527 = vld [vmem:[%s227 + $0x74] sm:$0xf]
      %v528 = vld [vmem:[%s227 + $0x78] sm:$0xf]
      %v529 = vld [vmem:[%s227 + $0x7c] sm:$0xf]
      %v530 = vld [vmem:[%s227 + $0x80] sm:$0xf]
      %v531 = vld [vmem:[%s227 + $0x84] sm:$0xf]
      %v532 = vld [vmem:[%s227 + $0x88] sm:$0xf]
      %v533 = vld [vmem:[%s227 + $0x8c] sm:$0xf]
      %v534 = vld [vmem:[%s227 + $0x90] sm:$0xf]
      %v535 = vld [vmem:[%s227 + $0x94] sm:$0xf]
      %v536 = vld [vmem:[%s227 + $0x98] sm:$0xf]
      %v537 = vld [vmem:[%s227 + $0x9c] sm:$0xf]
      %v538 = vld [vmem:[%s227 + $0xa0] sm:$0xf]
      %v539 = vld [vmem:[%s227 + $0xa4] sm:$0xf]
      %v540 = vld [vmem:[%s227 + $0xa8] sm:$0xf]
      %v541 = vld [vmem:[%s227 + $0xac] sm:$0xf]
      %v542 = vld [vmem:[%s227 + $0xb0] sm:$0xf]
      %v543 = vld [vmem:[%s227 + $0xb4] sm:$0xf]
      %v544 = vld [vmem:[%s227 + $0xb8] sm:$0xf]
      %v545 = vld [vmem:[%s227 + $0xbc] sm:$0xf]
      %v546 = vld [vmem:[%s227 + $0xc0] sm:$0xf]
      %v547 = vld [vmem:[%s227 + $0xc4] sm:$0xf]
      %v548 = vld [vmem:[%s227 + $0xc8] sm:$0xf]
      %v549 = vld [vmem:[%s227 + $0xcc] sm:$0xf]
      %v550 = vld [vmem:[%s227 + $0xd0] sm:$0xf]
      %v551 = vld [vmem:[%s227 + $0xd4] sm:$0xf]
      %v552 = vld [vmem:[%s227 + $0xd8] sm:$0xf]
      %v553 = vld [vmem:[%s227 + $0xdc] sm:$0xf]
      %v554 = vld [vmem:[%s227 + $0xe0] sm:$0xf]
      %v555 = vld [vmem:[%s227 + $0xe4] sm:$0xf]
      %v556 = vld [vmem:[%s227 + $0xe8] sm:$0xf]
      %v557 = vld [vmem:[%s227 + $0xec] sm:$0xf]
      %v558 = vld [vmem:[%s227 + $0xf0] sm:$0xf]
      %v559 = vld [vmem:[%s227 + $0xf4] sm:$0xf]
      %v560 = vld [vmem:[%s227 + $0xf8] sm:$0xf]
      %v561 = vld [vmem:[%s227 + $0xfc] sm:$0xf]
      %v626 = vunpack.c.l.b16 %v498
      %v627 = vunpack.c.l.b16 %v499
      %v628 = vunpack.c.l.b16 %v500
      %v629 = vunpack.c.l.b16 %v501
      %v630 = vunpack.c.l.b16 %v502
      %v631 = vunpack.c.l.b16 %v503
      %v632 = vunpack.c.l.b16 %v504
      %v633 = vunpack.c.l.b16 %v505
      %v634 = vunpack.c.l.b16 %v506
      %v635 = vunpack.c.l.b16 %v507
      %v636 = vunpack.c.l.b16 %v508
      %v637 = vunpack.c.l.b16 %v509
      %v638 = vunpack.c.l.b16 %v510
      %v639 = vunpack.c.l.b16 %v511
      %v640 = vunpack.c.l.b16 %v512
      %v641 = vunpack.c.l.b16 %v513
      %v642 = vunpack.c.l.b16 %v514
      %v643 = vunpack.c.l.b16 %v515
      %v644 = vunpack.c.l.b16 %v516
      %v645 = vunpack.c.l.b16 %v517
      %v646 = vunpack.c.l.b16 %v518
      %v647 = vunpack.c.l.b16 %v519
      %v648 = vunpack.c.l.b16 %v520
      %v649 = vunpack.c.l.b16 %v521
      %v650 = vunpack.c.l.b16 %v522
      %v651 = vunpack.c.l.b16 %v523
      %v652 = vunpack.c.l.b16 %v524
      %v653 = vunpack.c.l.b16 %v525
      %v654 = vunpack.c.l.b16 %v526
      %v655 = vunpack.c.l.b16 %v527
      %v656 = vunpack.c.l.b16 %v528
      %v657 = vunpack.c.l.b16 %v529
      %v658 = vunpack.c.l.b16 %v530
      %v659 = vunpack.c.l.b16 %v531
      %v660 = vunpack.c.l.b16 %v532
      %v661 = vunpack.c.l.b16 %v533
      %v662 = vunpack.c.l.b16 %v534
      %v663 = vunpack.c.l.b16 %v535
      %v664 = vunpack.c.l.b16 %v536
      %v665 = vunpack.c.l.b16 %v537
      %v666 = vunpack.c.l.b16 %v538
      %v667 = vunpack.c.l.b16 %v539
      %v668 = vunpack.c.l.b16 %v540
      %v669 = vunpack.c.l.b16 %v541
      %v670 = vunpack.c.l.b16 %v542
      %v671 = vunpack.c.l.b16 %v543
      %v672 = vunpack.c.l.b16 %v544
      %v673 = vunpack.c.l.b16 %v545
      %v674 = vunpack.c.l.b16 %v546
      %v675 = vunpack.c.l.b16 %v547
      %v676 = vunpack.c.l.b16 %v548
      %v677 = vunpack.c.l.b16 %v549
      %v678 = vunpack.c.l.b16 %v550
      %v679 = vunpack.c.l.b16 %v551
      %v680 = vunpack.c.l.b16 %v552
      %v681 = vunpack.c.l.b16 %v553
      %v682 = vunpack.c.l.b16 %v554
      %v683 = vunpack.c.l.b16 %v555
      %v684 = vunpack.c.l.b16 %v556
      %v685 = vunpack.c.l.b16 %v557
      %v686 = vunpack.c.l.b16 %v558
      %v687 = vunpack.c.l.b16 %v559
      %v688 = vunpack.c.l.b16 %v560
      %v689 = vunpack.c.l.b16 %v561
      %v690 = vpack.c.b16 %v627, %v626
      %v691 = vpack.c.b16 %v629, %v628
      %v692 = vpack.c.b16 %v631, %v630
      %v693 = vpack.c.b16 %v633, %v632
      %v694 = vpack.c.b16 %v635, %v634
      %v695 = vpack.c.b16 %v637, %v636
      %v696 = vpack.c.b16 %v639, %v638
      %v697 = vpack.c.b16 %v641, %v640
      %v698 = vpack.c.b16 %v643, %v642
      %v699 = vpack.c.b16 %v645, %v644
      %v700 = vpack.c.b16 %v647, %v646
      %v701 = vpack.c.b16 %v649, %v648
      %v702 = vpack.c.b16 %v651, %v650
      %v703 = vpack.c.b16 %v653, %v652
      %v704 = vpack.c.b16 %v655, %v654
      %v705 = vpack.c.b16 %v657, %v656
      %v706 = vpack.c.b16 %v659, %v658
      %v707 = vpack.c.b16 %v661, %v660
      %v708 = vpack.c.b16 %v663, %v662
      %v709 = vpack.c.b16 %v665, %v664
      %v710 = vpack.c.b16 %v667, %v666
      %v711 = vpack.c.b16 %v669, %v668
      %v712 = vpack.c.b16 %v671, %v670
      %v713 = vpack.c.b16 %v673, %v672
      %v714 = vpack.c.b16 %v675, %v674
      %v715 = vpack.c.b16 %v677, %v676
      %v716 = vpack.c.b16 %v679, %v678
      %v717 = vpack.c.b16 %v681, %v680
      %v718 = vpack.c.b16 %v683, %v682
      %v719 = vpack.c.b16 %v685, %v684
      %v720 = vpack.c.b16 %v687, %v686
      %v721 = vpack.c.b16 %v689, %v688
      %754 = vmatprep.subr.bf16.mxu0 0
      %755 = vmatpush1.bf16.msra.mxu0 %v690
      %756 = vmatprep.subr.bf16.mxu0 0
      %757 = vmatpush1.bf16.msra.mxu0 %v691
      %758 = vmatprep.subr.bf16.mxu0 0
      %759 = vmatpush1.bf16.msra.mxu0 %v692
      %760 = vmatprep.subr.bf16.mxu0 0
      %761 = vmatpush1.bf16.msra.mxu0 %v693
      %762 = vmatprep.subr.bf16.mxu0 0
      %763 = vmatpush1.bf16.msra.mxu0 %v694
      %764 = vmatprep.subr.bf16.mxu0 0
      %765 = vmatpush1.bf16.msra.mxu0 %v695
      %766 = vmatprep.subr.bf16.mxu0 0
      %767 = vmatpush1.bf16.msra.mxu0 %v696
      %768 = vmatprep.subr.bf16.mxu0 0
      %769 = vmatpush1.bf16.msra.mxu0 %v697
      %770 = vmatprep.subr.bf16.mxu0 0
      %771 = vmatpush1.bf16.msra.mxu0 %v698
      %772 = vmatprep.subr.bf16.mxu0 0
      %773 = vmatpush1.bf16.msra.mxu0 %v699
      %774 = vmatprep.subr.bf16.mxu0 0
      %775 = vmatpush1.bf16.msra.mxu0 %v700
      %776 = vmatprep.subr.bf16.mxu0 0
      %777 = vmatpush1.bf16.msra.mxu0 %v701
      %778 = vmatprep.subr.bf16.mxu0 0
      %779 = vmatpush1.bf16.msra.mxu0 %v702
      %780 = vmatprep.subr.bf16.mxu0 0
      %781 = vmatpush1.bf16.msra.mxu0 %v703
      %782 = vmatprep.subr.bf16.mxu0 0
      %783 = vmatpush1.bf16.msra.mxu0 %v704
      %784 = vmatprep.subr.bf16.mxu0 0
      %785 = vmatpush1.bf16.msra.mxu0 %v705
      %786 = vmatprep.mubr.bf16.mxu0 %v403
      %787 = vmatmul.mubr.bf16.gmra.mrb[0].mxu0 %v402
      %v788 = vpop.f32.mrb[0].mxu0
      %v789 = vadd.f32 0.0, %v788
      %v790 = vpop.f32.mrb[0].mxu0
      %v791 = vpop.f32.mrb[0].mxu0
      %v792 = vadd.f32 0.0, %v791
      %v793 = vpop.f32.mrb[0].mxu0
      %794 = vmatprep.mubr.bf16.mxu0 %v407
      %795 = vmatmul.mubr.bf16.gmra.mrb[0].mxu0 %v406
      %v796 = vpop.f32.mrb[0].mxu0
      %v797 = vadd.f32 0.0, %v796
      %v798 = vpop.f32.mrb[0].mxu0
      %v799 = vpop.f32.mrb[0].mxu0
      %v800 = vadd.f32 0.0, %v799
      %v801 = vpop.f32.mrb[0].mxu0
      %802 = vmatprep.mubr.bf16.mxu0 %v411
      %803 = vmatmul.mubr.bf16.gmra.mrb[0].mxu0 %v410
      %v804 = vpop.f32.mrb[0].mxu0
      %v805 = vadd.f32 0.0, %v804
      %v806 = vpop.f32.mrb[0].mxu0
      %v807 = vpop.f32.mrb[0].mxu0
      %v808 = vadd.f32 0.0, %v807
      %v809 = vpop.f32.mrb[0].mxu0
      %810 = vmatprep.mubr.bf16.mxu0 %v415
      %811 = vmatmul.mubr.bf16.gmra.mrb[0].mxu0 %v414
      %v812 = vpop.f32.mrb[0].mxu0
      %v813 = vadd.f32 0.0, %v812
      %v814 = vpop.f32.mrb[0].mxu0
      %v815 = vpop.f32.mrb[0].mxu0
      %v816 = vadd.f32 0.0, %v815
      %v817 = vpop.f32.mrb[0].mxu0
      %818 = vmatprep.mubr.bf16.mxu0 %v419
      %819 = vmatmul.mubr.bf16.gmra.mrb[0].mxu0 %v418
      %v820 = vpop.f32.mrb[0].mxu0
      %v821 = vadd.f32 0.0, %v820
      %v822 = vpop.f32.mrb[0].mxu0
      %v823 = vpop.f32.mrb[0].mxu0
      %v824 = vadd.f32 0.0, %v823
      %v825 = vpop.f32.mrb[0].mxu0
      %826 = vmatprep.mubr.bf16.mxu0 %v423
      %827 = vmatmul.mubr.bf16.gmra.mrb[0].mxu0 %v422
      %v828 = vpop.f32.mrb[0].mxu0
      %v829 = vadd.f32 0.0, %v828
      %v830 = vpop.f32.mrb[0].mxu0
      %v831 = vpop.f32.mrb[0].mxu0
      %v832 = vadd.f32 0.0, %v831
      %v833 = vpop.f32.mrb[0].mxu0
      %834 = vmatprep.mubr.bf16.mxu0 %v427
      %835 = vmatmul.mubr.bf16.gmra.mrb[0].mxu0 %v426
      %v836 = vpop.f32.mrb[0].mxu0
      %v837 = vadd.f32 0.0, %v836
      %v838 = vpop.f32.mrb[0].mxu0
      %v839 = vpop.f32.mrb[0].mxu0
      %v840 = vadd.f32 0.0, %v839
      %v841 = vpop.f32.mrb[0].mxu0
      %842 = vmatprep.mubr.bf16.mxu0 %v431
      %843 = vmatmul.mubr.bf16.gmra.mrb[0].mxu0 %v430
      %v844 = vpop.f32.mrb[0].mxu0
      %v845 = vadd.f32 0.0, %v844
      %v846 = vpop.f32.mrb[0].mxu0
      %v847 = vpop.f32.mrb[0].mxu0
      %v848 = vadd.f32 0.0, %v847
      %v849 = vpop.f32.mrb[0].mxu0
      %850 = vmatprep.mubr.bf16.mxu0 %v435
      %851 = vmatmul.mubr.bf16.gmra.mrb[0].mxu0 %v434
      %v852 = vpop.f32.mrb[0].mxu0
      %v853 = vadd.f32 0.0, %v852
      %v854 = vpop.f32.mrb[0].mxu0
      %v855 = vpop.f32.mrb[0].mxu0
      %v856 = vadd.f32 0.0, %v855
      %v857 = vpop.f32.mrb[0].mxu0
      %858 = vmatprep.mubr.bf16.mxu0 %v439
      %859 = vmatmul.mubr.bf16.gmra.mrb[0].mxu0 %v438
      %v860 = vpop.f32.mrb[0].mxu0
      %v861 = vadd.f32 0.0, %v860
      %v862 = vpop.f32.mrb[0].mxu0
      %v863 = vpop.f32.mrb[0].mxu0
      %v864 = vadd.f32 0.0, %v863
      %v865 = vpop.f32.mrb[0].mxu0
      %866 = vmatprep.mubr.bf16.mxu0 %v443
      %867 = vmatmul.mubr.bf16.gmra.mrb[0].mxu0 %v442
      %v868 = vpop.f32.mrb[0].mxu0
      %v869 = vadd.f32 0.0, %v868
      %v870 = vpop.f32.mrb[0].mxu0
      %v871 = vpop.f32.mrb[0].mxu0
      %v872 = vadd.f32 0.0, %v871
      %v873 = vpop.f32.mrb[0].mxu0
      %874 = vmatprep.mubr.bf16.mxu0 %v447
      %875 = vmatmul.mubr.bf16.gmra.mrb[0].mxu0 %v446
      %v876 = vpop.f32.mrb[0].mxu0
      %v877 = vadd.f32 0.0, %v876
      %v878 = vpop.f32.mrb[0].mxu0
      %v879 = vpop.f32.mrb[0].mxu0
      %v880 = vadd.f32 0.0, %v879
      %v881 = vpop.f32.mrb[0].mxu0
      %882 = vmatprep.mubr.bf16.mxu0 %v451
      %883 = vmatmul.mubr.bf16.gmra.mrb[0].mxu0 %v450
      %v884 = vpop.f32.mrb[0].mxu0
      %v885 = vadd.f32 0.0, %v884
      %v886 = vpop.f32.mrb[0].mxu0
      %v887 = vpop.f32.mrb[0].mxu0
      %v888 = vadd.f32 0.0, %v887
      %v889 = vpop.f32.mrb[0].mxu0
      %890 = vmatprep.mubr.bf16.mxu0 %v455
      %891 = vmatmul.mubr.bf16.gmra.mrb[0].mxu0 %v454
      %v892 = vpop.f32.mrb[0].mxu0
      %v893 = vadd.f32 0.0, %v892
      %v894 = vpop.f32.mrb[0].mxu0
      %v895 = vpop.f32.mrb[0].mxu0
      %v896 = vadd.f32 0.0, %v895
      %v897 = vpop.f32.mrb[0].mxu0
      %898 = vmatprep.mubr.bf16.mxu0 %v459
      %899 = vmatmul.mubr.bf16.gmra.mrb[0].mxu0 %v458
      %v900 = vpop.f32.mrb[0].mxu0
      %v901 = vadd.f32 0.0, %v900
      %v902 = vpop.f32.mrb[0].mxu0
      %v903 = vpop.f32.mrb[0].mxu0
      %v904 = vadd.f32 0.0, %v903
      %v905 = vpop.f32.mrb[0].mxu0
      %906 = vmatprep.mubr.bf16.mxu0 %v463
      %907 = vmatmul.mubr.bf16.gmra.mrb[0].mxu0 %v462
      %v908 = vpop.f32.mrb[0].mxu0
      %v909 = vadd.f32 0.0, %v908
      %v910 = vpop.f32.mrb[0].mxu0
      %v911 = vpop.f32.mrb[0].mxu0
      %v912 = vadd.f32 0.0, %v911
      %v913 = vpop.f32.mrb[0].mxu0
      %914 = vdwg.mxu0
      %915 = vmatprep.subr.bf16.mxu0 0
      %916 = vmatpush1.bf16.msra.mxu0 %v706
      %917 = vmatprep.subr.bf16.mxu0 0
      %918 = vmatpush1.bf16.msra.mxu0 %v707
      %919 = vmatprep.subr.bf16.mxu0 0
      %920 = vmatpush1.bf16.msra.mxu0 %v708
      %921 = vmatprep.subr.bf16.mxu0 0
      %922 = vmatpush1.bf16.msra.mxu0 %v709
      %923 = vmatprep.subr.bf16.mxu0 0
      %924 = vmatpush1.bf16.msra.mxu0 %v710
      %925 = vmatprep.subr.bf16.mxu0 0
      %926 = vmatpush1.bf16.msra.mxu0 %v711
      %927 = vmatprep.subr.bf16.mxu0 0
      %928 = vmatpush1.bf16.msra.mxu0 %v712
      %929 = vmatprep.subr.bf16.mxu0 0
      %930 = vmatpush1.bf16.msra.mxu0 %v713
      %931 = vmatprep.subr.bf16.mxu0 0
      %932 = vmatpush1.bf16.msra.mxu0 %v714
      %933 = vmatprep.subr.bf16.mxu0 0
      %934 = vmatpush1.bf16.msra.mxu0 %v715
      %935 = vmatprep.subr.bf16.mxu0 0
      %936 = vmatpush1.bf16.msra.mxu0 %v716
      %937 = vmatprep.subr.bf16.mxu0 0
      %938 = vmatpush1.bf16.msra.mxu0 %v717
      %939 = vmatprep.subr.bf16.mxu0 0
      %940 = vmatpush1.bf16.msra.mxu0 %v718
      %941 = vmatprep.subr.bf16.mxu0 0
      %942 = vmatpush1.bf16.msra.mxu0 %v719
      %943 = vmatprep.subr.bf16.mxu0 0
      %944 = vmatpush1.bf16.msra.mxu0 %v720
      %945 = vmatprep.subr.bf16.mxu0 0
      %946 = vmatpush1.bf16.msra.mxu0 %v721
      %947 = vmatprep.mubr.bf16.mxu0 %v405
      %948 = vmatmul.mubr.bf16.gmra.mrb[0].mxu0 %v404
      %v949 = vpop.f32.mrb[0].mxu0
      %v950 = vadd.f32 %v789, %v949
      %v951 = vpop.f32.mrb[0].mxu0
      %v952 = vpop.f32.mrb[0].mxu0
      %v953 = vadd.f32 %v792, %v952
      %v954 = vpop.f32.mrb[0].mxu0
      %955 = vmatprep.mubr.bf16.mxu0 %v409
      %956 = vmatmul.mubr.bf16.gmra.mrb[0].mxu0 %v408
      %v957 = vpop.f32.mrb[0].mxu0
      %v958 = vadd.f32 %v797, %v957
      %v959 = vpop.f32.mrb[0].mxu0
      %v960 = vpop.f32.mrb[0].mxu0
      %v961 = vadd.f32 %v800, %v960
      %v962 = vpop.f32.mrb[0].mxu0
      %963 = vmatprep.mubr.bf16.mxu0 %v413
      %964 = vmatmul.mubr.bf16.gmra.mrb[0].mxu0 %v412
      %v965 = vpop.f32.mrb[0].mxu0
      %v966 = vadd.f32 %v805, %v965
      %v967 = vpop.f32.mrb[0].mxu0
      %v968 = vpop.f32.mrb[0].mxu0
      %v969 = vadd.f32 %v808, %v968
      %v970 = vpop.f32.mrb[0].mxu0
      %971 = vmatprep.mubr.bf16.mxu0 %v417
      %972 = vmatmul.mubr.bf16.gmra.mrb[0].mxu0 %v416
      %v973 = vpop.f32.mrb[0].mxu0
      %v974 = vadd.f32 %v813, %v973
      %v975 = vpop.f32.mrb[0].mxu0
      %v976 = vpop.f32.mrb[0].mxu0
      %v977 = vadd.f32 %v816, %v976
      %v978 = vpop.f32.mrb[0].mxu0
      %979 = vmatprep.mubr.bf16.mxu0 %v421
      %980 = vmatmul.mubr.bf16.gmra.mrb[0].mxu0 %v420
      %v981 = vpop.f32.mrb[0].mxu0
      %v982 = vadd.f32 %v821, %v981
      %v983 = vpop.f32.mrb[0].mxu0
      %v984 = vpop.f32.mrb[0].mxu0
      %v985 = vadd.f32 %v824, %v984
      %v986 = vpop.f32.mrb[0].mxu0
      %987 = vmatprep.mubr.bf16.mxu0 %v425
      %988 = vmatmul.mubr.bf16.gmra.mrb[0].mxu0 %v424
      %v989 = vpop.f32.mrb[0].mxu0
      %v990 = vadd.f32 %v829, %v989
      %v991 = vpop.f32.mrb[0].mxu0
      %v992 = vpop.f32.mrb[0].mxu0
      %v993 = vadd.f32 %v832, %v992
      %v994 = vpop.f32.mrb[0].mxu0
      %995 = vmatprep.mubr.bf16.mxu0 %v429
      %996 = vmatmul.mubr.bf16.gmra.mrb[0].mxu0 %v428
      %v997 = vpop.f32.mrb[0].mxu0
      %v998 = vadd.f32 %v837, %v997
      %v999 = vpop.f32.mrb[0].mxu0
      %v1000 = vpop.f32.mrb[0].mxu0
      %v1001 = vadd.f32 %v840, %v1000
      %v1002 = vpop.f32.mrb[0].mxu0
      %1003 = vmatprep.mubr.bf16.mxu0 %v433
      %1004 = vmatmul.mubr.bf16.gmra.mrb[0].mxu0 %v432
      %v1005 = vpop.f32.mrb[0].mxu0
      %v1006 = vadd.f32 %v845, %v1005
      %v1007 = vpop.f32.mrb[0].mxu0
      %v1008 = vpop.f32.mrb[0].mxu0
      %v1009 = vadd.f32 %v848, %v1008
      %v1010 = vpop.f32.mrb[0].mxu0
      %1011 = vmatprep.mubr.bf16.mxu0 %v437
      %1012 = vmatmul.mubr.bf16.gmra.mrb[0].mxu0 %v436
      %v1013 = vpop.f32.mrb[0].mxu0
      %v1014 = vadd.f32 %v853, %v1013
      %v1015 = vpop.f32.mrb[0].mxu0
      %v1016 = vpop.f32.mrb[0].mxu0
      %v1017 = vadd.f32 %v856, %v1016
      %v1018 = vpop.f32.mrb[0].mxu0
      %1019 = vmatprep.mubr.bf16.mxu0 %v441
      %1020 = vmatmul.mubr.bf16.gmra.mrb[0].mxu0 %v440
      %v1021 = vpop.f32.mrb[0].mxu0
      %v1022 = vadd.f32 %v861, %v1021
      %v1023 = vpop.f32.mrb[0].mxu0
      %v1024 = vpop.f32.mrb[0].mxu0
      %v1025 = vadd.f32 %v864, %v1024
      %v1026 = vpop.f32.mrb[0].mxu0
      %1027 = vmatprep.mubr.bf16.mxu0 %v445
      %1028 = vmatmul.mubr.bf16.gmra.mrb[0].mxu0 %v444
      %v1029 = vpop.f32.mrb[0].mxu0
      %v1030 = vadd.f32 %v869, %v1029
      %v1031 = vpop.f32.mrb[0].mxu0
      %v1032 = vpop.f32.mrb[0].mxu0
      %v1033 = vadd.f32 %v872, %v1032
      %v1034 = vpop.f32.mrb[0].mxu0
      %1035 = vmatprep.mubr.bf16.mxu0 %v449
      %1036 = vmatmul.mubr.bf16.gmra.mrb[0].mxu0 %v448
      %v1037 = vpop.f32.mrb[0].mxu0
      %v1038 = vadd.f32 %v877, %v1037
      %v1039 = vpop.f32.mrb[0].mxu0
      %v1040 = vpop.f32.mrb[0].mxu0
      %v1041 = vadd.f32 %v880, %v1040
      %v1042 = vpop.f32.mrb[0].mxu0
      %1043 = vmatprep.mubr.bf16.mxu0 %v453
      %1044 = vmatmul.mubr.bf16.gmra.mrb[0].mxu0 %v452
      %v1045 = vpop.f32.mrb[0].mxu0
      %v1046 = vadd.f32 %v885, %v1045
      %v1047 = vpop.f32.mrb[0].mxu0
      %v1048 = vpop.f32.mrb[0].mxu0
      %v1049 = vadd.f32 %v888, %v1048
      %v1050 = vpop.f32.mrb[0].mxu0
      %1051 = vmatprep.mubr.bf16.mxu0 %v457
      %1052 = vmatmul.mubr.bf16.gmra.mrb[0].mxu0 %v456
      %v1053 = vpop.f32.mrb[0].mxu0
      %v1054 = vadd.f32 %v893, %v1053
      %v1055 = vpop.f32.mrb[0].mxu0
      %v1056 = vpop.f32.mrb[0].mxu0
      %v1057 = vadd.f32 %v896, %v1056
      %v1058 = vpop.f32.mrb[0].mxu0
      %1059 = vmatprep.mubr.bf16.mxu0 %v461
      %1060 = vmatmul.mubr.bf16.gmra.mrb[0].mxu0 %v460
      %v1061 = vpop.f32.mrb[0].mxu0
      %v1062 = vadd.f32 %v901, %v1061
      %v1063 = vpop.f32.mrb[0].mxu0
      %v1064 = vpop.f32.mrb[0].mxu0
      %v1065 = vadd.f32 %v904, %v1064
      %v1066 = vpop.f32.mrb[0].mxu0
      %1067 = vmatprep.mubr.bf16.mxu0 %v465
      %1068 = vmatmul.mubr.bf16.gmra.mrb[0].mxu0 %v464
      %v1069 = vpop.f32.mrb[0].mxu0
      %v1070 = vadd.f32 %v909, %v1069
      %v1071 = vpop.f32.mrb[0].mxu0
      %v1072 = vpop.f32.mrb[0].mxu0
      %v1073 = vadd.f32 %v912, %v1072
      %v1074 = vpop.f32.mrb[0].mxu0
      %1075 = vdwg.mxu0
      %v1076 = vadd.f32 %v466, %v950
      %v1077 = vadd.f32 %v467, %v953
      %v1078 = vadd.f32 %v468, %v958
      %v1079 = vadd.f32 %v469, %v961
      %v1080 = vadd.f32 %v470, %v966
      %v1081 = vadd.f32 %v471, %v969
      %v1082 = vadd.f32 %v472, %v974
      %v1083 = vadd.f32 %v473, %v977
      %v1084 = vadd.f32 %v474, %v982
      %v1085 = vadd.f32 %v475, %v985
      %v1086 = vadd.f32 %v476, %v990
      %v1087 = vadd.f32 %v477, %v993
      %v1088 = vadd.f32 %v478, %v998
      %v1089 = vadd.f32 %v479, %v1001
      %v1090 = vadd.f32 %v480, %v1006
      %v1091 = vadd.f32 %v481, %v1009
      %v1092 = vadd.f32 %v482, %v1014
      %v1093 = vadd.f32 %v483, %v1017
      %v1094 = vadd.f32 %v484, %v1022
      %v1095 = vadd.f32 %v485, %v1025
      %v1096 = vadd.f32 %v486, %v1030
      %v1097 = vadd.f32 %v487, %v1033
      %v1098 = vadd.f32 %v488, %v1038
      %v1099 = vadd.f32 %v489, %v1041
      %v1100 = vadd.f32 %v490, %v1046
      %v1101 = vadd.f32 %v491, %v1049
      %v1102 = vadd.f32 %v492, %v1054
      %v1103 = vadd.f32 %v493, %v1057
      %v1104 = vadd.f32 %v494, %v1062
      %v1105 = vadd.f32 %v495, %v1065
      %v1106 = vadd.f32 %v496, %v1070
      %v1107 = vadd.f32 %v497, %v1073
      %1108 = vst [vmem:[#allocation2] sm:$0xff] %v1076
      %1109 = vst [vmem:[#allocation2 + $0x8] sm:$0xff] %v1077
      %1110 = vst [vmem:[#allocation2 + $0x10] sm:$0xff] %v1078
      %1111 = vst [vmem:[#allocation2 + $0x18] sm:$0xff] %v1079
      %1112 = vst [vmem:[#allocation2 + $0x20] sm:$0xff] %v1080
      %1113 = vst [vmem:[#allocation2 + $0x28] sm:$0xff] %v1081
      %1114 = vst [vmem:[#allocation2 + $0x30] sm:$0xff] %v1082
      %1115 = vst [vmem:[#allocation2 + $0x38] sm:$0xff] %v1083
      %1116 = vst [vmem:[#allocation2 + $0x40] sm:$0xff] %v1084
      %1117 = vst [vmem:[#allocation2 + $0x48] sm:$0xff] %v1085
      %1118 = vst [vmem:[#allocation2 + $0x50] sm:$0xff] %v1086
      %1119 = vst [vmem:[#allocation2 + $0x58] sm:$0xff] %v1087
      %1120 = vst [vmem:[#allocation2 + $0x60] sm:$0xff] %v1088
      %1121 = vst [vmem:[#allocation2 + $0x68] sm:$0xff] %v1089
      %1122 = vst [vmem:[#allocation2 + $0x70] sm:$0xff] %v1090
      %1123 = vst [vmem:[#allocation2 + $0x78] sm:$0xff] %v1091
      %1124 = vst [vmem:[#allocation2 + $0x80] sm:$0xff] %v1092
      %1125 = vst [vmem:[#allocation2 + $0x88] sm:$0xff] %v1093
      %1126 = vst [vmem:[#allocation2 + $0x90] sm:$0xff] %v1094
      %1127 = vst [vmem:[#allocation2 + $0x98] sm:$0xff] %v1095
      %1128 = vst [vmem:[#allocation2 + $0xa0] sm:$0xff] %v1096
      %1129 = vst [vmem:[#allocation2 + $0xa8] sm:$0xff] %v1097
      %1130 = vst [vmem:[#allocation2 + $0xb0] sm:$0xff] %v1098
      %1131 = vst [vmem:[#allocation2 + $0xb8] sm:$0xff] %v1099
      %1132 = vst [vmem:[#allocation2 + $0xc0] sm:$0xff] %v1100
      %1133 = vst [vmem:[#allocation2 + $0xc8] sm:$0xff] %v1101
      %1134 = vst [vmem:[#allocation2 + $0xd0] sm:$0xff] %v1102
      %1135 = vst [vmem:[#allocation2 + $0xd8] sm:$0xff] %v1103
      %1136 = vst [vmem:[#allocation2 + $0xe0] sm:$0xff] %v1104
      %1137 = vst [vmem:[#allocation2 + $0xe8] sm:$0xff] %v1105
      %1138 = vst [vmem:[#allocation2 + $0xf0] sm:$0xff] %v1106
      %1139 = vst [vmem:[#allocation2 + $0xf8] sm:$0xff] %v1107
      %p1140 = scmp.eq.s32.totalorder %s19, 1
      %p1141 = pnand %p1140, %p237
      %p1142 = pneg %p1141
      // Predicated region
      $region33: #{gcn_forward.3} parent=27 // pred_check
        _
      $region34: #{gcn_forward.3} parent=27 // pred_check_branch
        %1144 = sbr.rel (%p1141) target = $region36
      $region35: #{gcn_forward.3} parent=27 // pred_region
        %v1145 = vld [vmem:[#allocation2] sm:$0xff]
        %v1146 = vld [vmem:[#allocation2 + $0x8] sm:$0xff]
        %v1147 = vld [vmem:[#allocation2 + $0x10] sm:$0xff]
        %v1148 = vld [vmem:[#allocation2 + $0x18] sm:$0xff]
        %v1149 = vld [vmem:[#allocation2 + $0x20] sm:$0xff]
        %v1150 = vld [vmem:[#allocation2 + $0x28] sm:$0xff]
        %v1151 = vld [vmem:[#allocation2 + $0x30] sm:$0xff]
        %v1152 = vld [vmem:[#allocation2 + $0x38] sm:$0xff]
        %v1153 = vld [vmem:[#allocation2 + $0x40] sm:$0xff]
        %v1154 = vld [vmem:[#allocation2 + $0x48] sm:$0xff]
        %v1155 = vld [vmem:[#allocation2 + $0x50] sm:$0xff]
        %v1156 = vld [vmem:[#allocation2 + $0x58] sm:$0xff]
        %v1157 = vld [vmem:[#allocation2 + $0x60] sm:$0xff]
        %v1158 = vld [vmem:[#allocation2 + $0x68] sm:$0xff]
        %v1159 = vld [vmem:[#allocation2 + $0x70] sm:$0xff]
        %v1160 = vld [vmem:[#allocation2 + $0x78] sm:$0xff]
        %v1161 = vld [vmem:[#allocation2 + $0x80] sm:$0xff]
        %v1162 = vld [vmem:[#allocation2 + $0x88] sm:$0xff]
        %v1163 = vld [vmem:[#allocation2 + $0x90] sm:$0xff]
        %v1164 = vld [vmem:[#allocation2 + $0x98] sm:$0xff]
        %v1165 = vld [vmem:[#allocation2 + $0xa0] sm:$0xff]
        %v1166 = vld [vmem:[#allocation2 + $0xa8] sm:$0xff]
        %v1167 = vld [vmem:[#allocation2 + $0xb0] sm:$0xff]
        %v1168 = vld [vmem:[#allocation2 + $0xb8] sm:$0xff]
        %v1169 = vld [vmem:[#allocation2 + $0xc0] sm:$0xff]
        %v1170 = vld [vmem:[#allocation2 + $0xc8] sm:$0xff]
        %v1171 = vld [vmem:[#allocation2 + $0xd0] sm:$0xff]
        %v1172 = vld [vmem:[#allocation2 + $0xd8] sm:$0xff]
        %v1173 = vld [vmem:[#allocation2 + $0xe0] sm:$0xff]
        %v1174 = vld [vmem:[#allocation2 + $0xe8] sm:$0xff]
        %v1175 = vld [vmem:[#allocation2 + $0xf0] sm:$0xff]
        %v1176 = vld [vmem:[#allocation2 + $0xf8] sm:$0xff]
        %1177 = vst [vmem:[%s233] sm:$0xff] %v1145
        %1178 = vst [vmem:[%s233 + $0x8] sm:$0xff] %v1146
        %1179 = vst [vmem:[%s233 + $0x10] sm:$0xff] %v1147
        %1180 = vst [vmem:[%s233 + $0x18] sm:$0xff] %v1148
        %1181 = vst [vmem:[%s233 + $0x20] sm:$0xff] %v1149
        %1182 = vst [vmem:[%s233 + $0x28] sm:$0xff] %v1150
        %1183 = vst [vmem:[%s233 + $0x30] sm:$0xff] %v1151
        %1184 = vst [vmem:[%s233 + $0x38] sm:$0xff] %v1152
        %1185 = vst [vmem:[%s233 + $0x40] sm:$0xff] %v1153
        %1186 = vst [vmem:[%s233 + $0x48] sm:$0xff] %v1154
        %1187 = vst [vmem:[%s233 + $0x50] sm:$0xff] %v1155
        %1188 = vst [vmem:[%s233 + $0x58] sm:$0xff] %v1156
        %1189 = vst [vmem:[%s233 + $0x60] sm:$0xff] %v1157
        %1190 = vst [vmem:[%s233 + $0x68] sm:$0xff] %v1158
        %1191 = vst [vmem:[%s233 + $0x70] sm:$0xff] %v1159
        %1192 = vst [vmem:[%s233 + $0x78] sm:$0xff] %v1160
        %1193 = vst [vmem:[%s233 + $0x80] sm:$0xff] %v1161
        %1194 = vst [vmem:[%s233 + $0x88] sm:$0xff] %v1162
        %1195 = vst [vmem:[%s233 + $0x90] sm:$0xff] %v1163
        %1196 = vst [vmem:[%s233 + $0x98] sm:$0xff] %v1164
        %1197 = vst [vmem:[%s233 + $0xa0] sm:$0xff] %v1165
        %1198 = vst [vmem:[%s233 + $0xa8] sm:$0xff] %v1166
        %1199 = vst [vmem:[%s233 + $0xb0] sm:$0xff] %v1167
        %1200 = vst [vmem:[%s233 + $0xb8] sm:$0xff] %v1168
        %1201 = vst [vmem:[%s233 + $0xc0] sm:$0xff] %v1169
        %1202 = vst [vmem:[%s233 + $0xc8] sm:$0xff] %v1170
        %1203 = vst [vmem:[%s233 + $0xd0] sm:$0xff] %v1171
        %1204 = vst [vmem:[%s233 + $0xd8] sm:$0xff] %v1172
        %1205 = vst [vmem:[%s233 + $0xe0] sm:$0xff] %v1173
        %1206 = vst [vmem:[%s233 + $0xe8] sm:$0xff] %v1174
        %1207 = vst [vmem:[%s233 + $0xf0] sm:$0xff] %v1175
        %1208 = vst [vmem:[%s233 + $0xf8] sm:$0xff] %v1176
      $region36: #{gcn_forward.3} parent=27 // pred_fallthru
        _
      %s1209 = smul.u32 32, %s18
      %p1210 = scmp.lt.s32.totalorder %s1209, 63
      %s1211 = scalar_select %p1210, %s1209, 63
      %s1212 = smul.addr %s1211, 8
      %s1213 = scalar_lea.vmem %s2, %s1212
      // Predicated region
      $region37: #{gcn_forward.3} parent=27 // pred_check
        %p1214 = pneg %p108
      $region38: #{gcn_forward.3} parent=27 // pred_check_branch
        %1216 = sbr.rel (%p1214) target = $region40
      $region39: #{gcn_forward.3} parent=27 // pred_region
        %s1217 = smul.u32 32, %s18
      $region40: #{gcn_forward.3} parent=27 // pred_fallthru
        _
    $region28: #{gcn_forward.3} parent=5 // pred_fallthru
      _
    %p1218 = scmp.le.s32.totalorder 2, %s8
    // Predicated region
    $region41: #{gcn_forward.3} parent=5 // pred_check
      %p1219 = pneg %p1218
    $region42: #{gcn_forward.3} parent=5 // pred_check_branch
      %1221 = sbr.rel (%p1219) target = $region44
    $region43: #{gcn_forward.3} parent=5 // pred_region
      %s1222 = ssub.s32 %s8, 2
      // Predicated region
      $region45: #{gcn_forward.3} parent=43 // pred_check
        %p1223 = pneg %p114
      $region46: #{gcn_forward.3} parent=43 // pred_check_branch
        %1225 = sbr.rel (%p1223) target = $region48
      $region47: #{gcn_forward.3} parent=43 // pred_region
        %s1226 = smul.u32 32, %s21
        %p1227 = scmp.lt.s32.totalorder %s1226, 63
        %s1228 = scalar_select %p1227, %s1226, 63
        %s1229 = smul.addr %s1228, 8
        %s1230 = scalar_lea.vmem %s2, %s1229
      $region48: #{gcn_forward.3} parent=43 // pred_fallthru
        _
    $region44: #{gcn_forward.3} parent=5 // pred_fallthru
      _
  $region6: #{gcn_forward.3} parent=0 // loop_footer
    %s12 = sadd.s32 1, %s8
  $region7: #{gcn_forward.3} parent=0 // loop_footer_branch
    %7 = sbr.rel target = $region3
  $region8: #{gcn_forward.3} parent=0 // loop_exit
    _

// kernel: gcn_forward.2
$region0: #{gcn_forward.2}
  #allocation0 [shape = 'u32[]', space=smem, size = 0x4, offset = 0x4, fixed_abs, tag = 'smem constant byte address 0x4 - core index']
  #allocation1 [shape = 'u32[144,128]{1,0:T(1,128)}', space=vmem, size = 0x12000, scoped, tag = 'internal scratch']
  #allocation2 [shape = 'f32[256,256]{1,0:T(8,128)}', space=vmem, size = 0x40000, scoped, tag = 'scratch operand']
  %s0 = inlined_call_operand.vmem [shape: f32[2,512,512], index: 0, kind: input, shape index: {}]
  %s1 = inlined_call_operand.vmem [shape: bf16[2,512,256], index: 1, kind: input, shape index: {}]
  %s2 = inlined_call_operand.vmem [shape: bf16[2,256,128], index: 2, kind: input, shape index: {}]
  %s3 = inlined_call_operand.vmem [shape: bf16[2,512,128], index: 3, kind: output, shape index: {}]
  %s4 = sld [smem:[#allocation0]]
  $region90: #{gcn_forward.2} parent=0
    _
  %s6 = ssub.s32 1, %s4
  %s7 = scalar_select 0, %s6, %s4
  $region1: #{gcn_forward.2} parent=0
    #allocation3 [shape = 'u8[262144]{0}', space=vmem, size = 0x40000, scoped, tag = 'output window, operand 0']
    loop: start=0, step=1, limit=6
    $region2: #{gcn_forward.2} parent=1 // loop_pre_header
      _
    $region3: #{gcn_forward.2} parent=1 // loop_header
      %s9 = sphi 0, %s13
      %p10 = scmp.ge.s32.totalorder %s9, 6
      %s16 = sphi 0, %s35
      %s17 = sphi 0, %s31
      %s18 = sphi 0, %s27
      %s19 = sphi 0, %s16
      %s20 = sphi 0, %s17
      %s21 = sphi 0, %s18
      %s22 = sphi 0, %s19
      %s23 = sphi 0, %s20
      %s24 = sphi 0, %s21
      %s42 = sphi 0, %s44
      %s45 = sphi 0, %s42
      %s46 = sphi 0, %s45
      %s62 = sphi 0, %s46
      %s70 = sphi 0, %s72
      %s73 = sphi 0, %s70
      %s74 = sphi 0, %s73
      %s90 = sphi 0, %s74
      %s94 = sphi 0, %s94
      %s96 = sphi 0, %s94
      %s97 = sphi 0, %s96
      %s111 = sphi 0, %s97
      %s117 = sphi 0, %s119
      %s120 = sphi 0, %s117
      %s121 = sphi 0, %s120
      %s137 = sphi 0, %s121
    $region4: #{gcn_forward.2} parent=1 // loop_header_branch
      %12 = sbr.rel (%p10) target = $region8
    $region5: #{gcn_forward.2} parent=1 // loop_body
      %s14 = ssub.s32 %s9, 1
      %s15 = ssub.s32 %s9, 2
      %s25 = sadd.s32 1, %s18
      %p26 = scmp.ge.s32.totalorder %s25, 1
      %s27 = scalar_select %p26, 0, %s25
      %s28 = sadd.s32 1, %s17
      %s29 = scalar_select %p26, %s28, %s17
      %p30 = scmp.ge.s32.totalorder %s29, 2
      %s31 = scalar_select %p30, 0, %s29
      %s32 = sadd.s32 1, %s16
      %s33 = scalar_select %p30, %s32, %s16
      %p34 = scmp.ge.s32.totalorder %s33, 2
      %s35 = scalar_select %p34, 0, %s33
      %s36 = ssub.s32 %s17, %s31
      %s37 = ssub.s32 %s16, %s35
      %s38 = sor.u32 %s36, %s37
      %s39 = ssub.s32 %s18, %s27
      %s40 = sor.u32 %s38, %s39
      %p41 = scmp.eq.s32.totalorder %s40, 0
      %s43 = sadd.s32 %s42, 1
      %s44 = scalar_select %p41, %s42, %s43
      %p47 = pneg %p41
      %p48 = scmp.eq.s32.totalorder %s9, 3
      %p49 = por %p47, %p48
      %p50 = scmp.ne.s32.totalorder %s42, %s45
      %p51 = scmp.eq.s32.totalorder %s9, 0
      %p52 = por %p50, %p51
      %p53 = scmp.ne.s32.totalorder %s42, %s45
      %p54 = scmp.eq.s32.totalorder %s14, 3
      %p55 = por %p53, %p54
      %p56 = scmp.ne.s32.totalorder %s45, %s46
      %p57 = scmp.eq.s32.totalorder %s14, 0
      %p58 = por %p56, %p57
      %p59 = scmp.ne.s32.totalorder %s45, %s46
      %p60 = scmp.eq.s32.totalorder %s15, 3
      %p61 = por %p59, %p60
      %p63 = scmp.ne.s32.totalorder %s46, %s62
      %p64 = scmp.eq.s32.totalorder %s15, 0
      %p65 = por %p63, %p64
      %s66 = ssub.s32 %s17, %s31
      %s67 = ssub.s32 %s18, %s27
      %s68 = sor.u32 %s66, %s67
      %p69 = scmp.eq.s32.totalorder %s68, 0
      %s71 = sadd.s32 %s70, 1
      %s72 = scalar_select %p69, %s70, %s71
      %p75 = pneg %p69
      %p76 = scmp.eq.s32.totalorder %s9, 3
      %p77 = por %p75, %p76
      %p78 = scmp.ne.s32.totalorder %s70, %s73
      %p79 = scmp.eq.s32.totalorder %s9, 0
      %p80 = por %p78, %p79
      %p81 = scmp.ne.s32.totalorder %s70, %s73
      %p82 = scmp.eq.s32.totalorder %s14, 3
      %p83 = por %p81, %p82
      %p84 = scmp.ne.s32.totalorder %s73, %s74
      %p85 = scmp.eq.s32.totalorder %s14, 0
      %p86 = por %p84, %p85
      %p87 = scmp.ne.s32.totalorder %s73, %s74
      %p88 = scmp.eq.s32.totalorder %s15, 3
      %p89 = por %p87, %p88
      %p91 = scmp.ne.s32.totalorder %s74, %s90
      %p92 = scmp.eq.s32.totalorder %s15, 0
      %p93 = por %p91, %p92
      %s95 = sadd.s32 %s94, 1
      %p98 = scmp.eq.s32.totalorder %s9, 3
      %p99 = scmp.ne.s32.totalorder %s94, %s96
      %p100 = scmp.eq.s32.totalorder %s9, 0
      %p101 = por %p99, %p100
      %p102 = scmp.ne.s32.totalorder %s94, %s96
      %p103 = scmp.eq.s32.totalorder %s14, 3
      %p104 = por %p102, %p103
      %p105 = scmp.ne.s32.totalorder %s96, %s97
      %p106 = scmp.eq.s32.totalorder %s14, 0
      %p107 = por %p105, %p106
      %p108 = scmp.ne.s32.totalorder %s96, %s97
      %p109 = scmp.eq.s32.totalorder %s15, 3
      %p110 = por %p108, %p109
      %p112 = scmp.ne.s32.totalorder %s97, %s111
      %p113 = scmp.eq.s32.totalorder %s15, 0
      %p114 = por %p112, %p113
      %s115 = ssub.s32 %s16, %s35
      %p116 = scmp.eq.s32.totalorder %s115, 0
      %s118 = sadd.s32 %s117, 1
      %s119 = scalar_select %p116, %s117, %s118
      %p122 = pneg %p116
      %p123 = scmp.eq.s32.totalorder %s9, 3
      %p124 = por %p122, %p123
      %p125 = scmp.ne.s32.totalorder %s117, %s120
      %p126 = scmp.eq.s32.totalorder %s9, 0
      %p127 = por %p125, %p126
      %p128 = scmp.ne.s32.totalorder %s117, %s120
      %p129 = scmp.eq.s32.totalorder %s14, 3
      %p130 = por %p128, %p129
      %p131 = scmp.ne.s32.totalorder %s120, %s121
      %p132 = scmp.eq.s32.totalorder %s14, 0
      %p133 = por %p131, %p132
      %p134 = scmp.ne.s32.totalorder %s120, %s121
      %p135 = scmp.eq.s32.totalorder %s15, 3
      %p136 = por %p134, %p135
      %p138 = scmp.ne.s32.totalorder %s121, %s137
      %p139 = scmp.eq.s32.totalorder %s15, 0
      %p140 = por %p138, %p139
      %p141 = scmp.le.s32.totalorder 1, %s9
      %p142 = scmp.lt.s32.totalorder %s9, 5
      %p143 = pnand %p141, %p142
      %p144 = pneg %p143
      // Predicated region
      $region9: #{gcn_forward.2} parent=5 // pred_check
        _
      $region10: #{gcn_forward.2} parent=5 // pred_check_branch
        %146 = sbr.rel (%p143) target = $region12
      $region11: #{gcn_forward.2} parent=5 // pred_region
        %s147 = ssub.s32 %s9, 1
        // Predicated region
        $region13: #{gcn_forward.2} parent=11 // pred_check
          %p148 = pneg %p107
        $region14: #{gcn_forward.2} parent=11 // pred_check_branch
          %150 = sbr.rel (%p148) target = $region16
        $region15: #{gcn_forward.2} parent=11 // pred_region
          _
        $region16: #{gcn_forward.2} parent=11 // pred_fallthru
          _
      $region12: #{gcn_forward.2} parent=5 // pred_fallthru
        _
      %p151 = scmp.lt.s32.totalorder %s9, 4
      // Predicated region
      $region17: #{gcn_forward.2} parent=5 // pred_check
        %p152 = pneg %p151
      $region18: #{gcn_forward.2} parent=5 // pred_check_branch
        %154 = sbr.rel (%p152) target = $region20
      $region19: #{gcn_forward.2} parent=5 // pred_region
        // Predicated region
        $region21: #{gcn_forward.2} parent=19 // pred_check
          %p155 = pneg %p52
        $region22: #{gcn_forward.2} parent=19 // pred_check_branch
          %157 = sbr.rel (%p155) target = $region24
        $region23: #{gcn_forward.2} parent=19 // pred_region
          %s158 = smul.u32 32, %s16
          %s159 = smul.u32 4, %s18
          %p160 = scmp.lt.s32.totalorder %s17, 1
          %s161 = scalar_select %p160, %s17, 1
          %p162 = scmp.lt.s32.totalorder %s158, 63
          %s163 = scalar_select %p162, %s158, 63
          %p164 = scmp.lt.s32.totalorder %s159, 3
          %s165 = scalar_select %p164, %s159, 3
          %s166 = smul.addr %s163, 4
          %s167 = sadd.s32 %s165, %s166
          %s168 = smul.addr %s161, 256
          %s169 = sadd.s32 %s167, %s168
          %s170 = smul.addr %s169, 8
          %s171 = scalar_lea.vmem %s0, %s170
          %s172 = smul.u32 32, %s16
          %s173 = smul.u32 4, %s18
        $region24: #{gcn_forward.2} parent=19 // pred_fallthru
          _
        // Predicated region
        $region25: #{gcn_forward.2} parent=19 // pred_check
          %p174 = pneg %p80
        $region26: #{gcn_forward.2} parent=19 // pred_check_branch
          %176 = sbr.rel (%p174) target = $region28
        $region27: #{gcn_forward.2} parent=19 // pred_region
          %s177 = smul.u32 64, %s18
          %p178 = scmp.lt.s32.totalorder %s17, 1
          %s179 = scalar_select %p178, %s17, 1
          %p180 = scmp.lt.s32.totalorder %s177, 63
          %s181 = scalar_select %p180, %s177, 63
          %s182 = smul.addr %s181, 2
          %s183 = smul.addr %s179, 128
          %s184 = sadd.s32 %s182, %s183
          %s185 = smul.addr %s184, 4
          %s186 = scalar_lea.vmem %s1, %s185
          %s187 = smul.u32 64, %s18
        $region28: #{gcn_forward.2} parent=19 // pred_fallthru
          _
      $region20: #{gcn_forward.2} parent=5 // pred_fallthru
        _
      %p188 = scmp.le.s32.totalorder 1, %s9
      %p189 = scmp.lt.s32.totalorder %s9, 5
      %p190 = pnand %p188, %p189
      %p191 = pneg %p190
      // Predicated region
      $region29: #{gcn_forward.2} parent=5 // pred_check
        _
      $region30: #{gcn_forward.2} parent=5 // pred_check_branch
        %193 = sbr.rel (%p190) target = $region32
      $region31: #{gcn_forward.2} parent=5 // pred_region
        %s194 = ssub.s32 %s9, 1
        %s195 = smul.u32 32, %s19
        %s196 = smul.u32 4, %s21
        %p197 = scmp.lt.s32.totalorder %s20, 1
        %s198 = scalar_select %p197, %s20, 1
        %p199 = scmp.lt.s32.totalorder %s195, 63
        %s200 = scalar_select %p199, %s195, 63
        %p201 = scmp.lt.s32.totalorder %s196, 3
        %s202 = scalar_select %p201, %s196, 3
        %s203 = smul.addr %s200, 4
        %s204 = sadd.s32 %s202, %s203
        %s205 = smul.addr %s198, 256
        %s206 = sadd.s32 %s204, %s205
        %s207 = smul.addr %s206, 8
        %s208 = scalar_lea.vmem %s0, %s207
        %p209 = pneg %p58
        %p210 = pneg %p55
        %s211 = smul.u32 64, %s21
        %p212 = scmp.lt.s32.totalorder %s20, 1
        %s213 = scalar_select %p212, %s20, 1
        %p214 = scmp.lt.s32.totalorder %s211, 63
        %s215 = scalar_select %p214, %s211, 63
        %s216 = smul.addr %s215, 2
        %s217 = smul.addr %s213, 128
        %s218 = sadd.s32 %s216, %s217
        %s219 = smul.addr %s218, 4
        %s220 = scalar_lea.vmem %s1, %s219
        %p221 = pneg %p86
        %p222 = pneg %p83
        %p223 = pneg %p107
        %p224 = pneg %p104
        %p225 = pneg %p133
        %p226 = pneg %p130
        %s227 = sand.u32 %s120, 1
        %s228 = sand.u32 %s120, 1
        %s229 = smul.addr %s228, 256
        %s230 = scalar_lea.vmem [#allocation3], %s229
        %s231 = smul.u32 32, %s19
        %s232 = smul.u32 4, %s21
        %p233 = scmp.lt.s32.totalorder %s20, 1
        %s234 = scalar_select %p233, %s20, 1
        %p235 = scmp.lt.s32.totalorder %s231, 63
        %s236 = scalar_select %p235, %s231, 63
        %p237 = scmp.lt.s32.totalorder %s232, 3
        %s238 = scalar_select %p237, %s232, 3
        %s239 = smul.addr %s236, 4
        %s240 = sadd.s32 %s238, %s239
        %s241 = smul.addr %s234, 256
        %s242 = sadd.s32 %s240, %s241
        %s243 = smul.addr %s242, 8
        %s244 = scalar_lea.vmem %s0, %s243
        %s245 = smul.u32 32, %s19
        %s246 = smul.u32 4, %s21
        %s247 = smul.u32 64, %s21
        %p248 = scmp.lt.s32.totalorder %s20, 1
        %s249 = scalar_select %p248, %s20, 1
        %p250 = scmp.lt.s32.totalorder %s247, 63
        %s251 = scalar_select %p250, %s247, 63
        %s252 = smul.addr %s251, 2
        %s253 = smul.addr %s249, 128
        %s254 = sadd.s32 %s252, %s253
        %s255 = smul.addr %s254, 4
        %s256 = scalar_lea.vmem %s1, %s255
        %s257 = smul.u32 64, %s21
        %s258 = smul.u32 32, %s19
        %p260 = scmp.eq.s32.totalorder %s20, 0
        %p261 = scmp.eq.s32.totalorder %s21, 0
        %p262 = pnand %p260, %p261
        %p263 = pneg %p262
        // Predicated region
        $region33: #{gcn_forward.2} parent=31 // pred_check
          _
        $region34: #{gcn_forward.2} parent=31 // pred_check_branch
          %265 = sbr.rel (%p262) target = $region36
        $region35: #{gcn_forward.2} parent=31 // pred_region
          %266 = vst [vmem:[#allocation2] sm:$0xff] 0.0
          %267 = vst [vmem:[#allocation2 + $0x8] sm:$0xff] 0.0
          %268 = vst [vmem:[#allocation2 + $0x10] sm:$0xff] 0.0
          %269 = vst [vmem:[#allocation2 + $0x18] sm:$0xff] 0.0
          %270 = vst [vmem:[#allocation2 + $0x20] sm:$0xff] 0.0
          %271 = vst [vmem:[#allocation2 + $0x28] sm:$0xff] 0.0
          %272 = vst [vmem:[#allocation2 + $0x30] sm:$0xff] 0.0
          %273 = vst [vmem:[#allocation2 + $0x38] sm:$0xff] 0.0
          %274 = vst [vmem:[#allocation2 + $0x40] sm:$0xff] 0.0
          %275 = vst [vmem:[#allocation2 + $0x48] sm:$0xff] 0.0
          %276 = vst [vmem:[#allocation2 + $0x50] sm:$0xff] 0.0
          %277 = vst [vmem:[#allocation2 + $0x58] sm:$0xff] 0.0
          %278 = vst [vmem:[#allocation2 + $0x60] sm:$0xff] 0.0
          %279 = vst [vmem:[#allocation2 + $0x68] sm:$0xff] 0.0
          %280 = vst [vmem:[#allocation2 + $0x70] sm:$0xff] 0.0
          %281 = vst [vmem:[#allocation2 + $0x78] sm:$0xff] 0.0
          %282 = vst [vmem:[#allocation2 + $0x80] sm:$0xff] 0.0
          %283 = vst [vmem:[#allocation2 + $0x88] sm:$0xff] 0.0
          %284 = vst [vmem:[#allocation2 + $0x90] sm:$0xff] 0.0
          %285 = vst [vmem:[#allocation2 + $0x98] sm:$0xff] 0.0
          %286 = vst [vmem:[#allocation2 + $0xa0] sm:$0xff] 0.0
          %287 = vst [vmem:[#allocation2 + $0xa8] sm:$0xff] 0.0
          %288 = vst [vmem:[#allocation2 + $0xb0] sm:$0xff] 0.0
          %289 = vst [vmem:[#allocation2 + $0xb8] sm:$0xff] 0.0
          %290 = vst [vmem:[#allocation2 + $0xc0] sm:$0xff] 0.0
          %291 = vst [vmem:[#allocation2 + $0xc8] sm:$0xff] 0.0
          %292 = vst [vmem:[#allocation2 + $0xd0] sm:$0xff] 0.0
          %293 = vst [vmem:[#allocation2 + $0xd8] sm:$0xff] 0.0
          %294 = vst [vmem:[#allocation2 + $0xe0] sm:$0xff] 0.0
          %295 = vst [vmem:[#allocation2 + $0xe8] sm:$0xff] 0.0
          %296 = vst [vmem:[#allocation2 + $0xf0] sm:$0xff] 0.0
          %297 = vst [vmem:[#allocation2 + $0xf8] sm:$0xff] 0.0
          %298 = vst [vmem:[#allocation2 + $0x100] sm:$0xff] 0.0
          %299 = vst [vmem:[#allocation2 + $0x108] sm:$0xff] 0.0
          %300 = vst [vmem:[#allocation2 + $0x110] sm:$0xff] 0.0
          %301 = vst [vmem:[#allocation2 + $0x118] sm:$0xff] 0.0
          %302 = vst [vmem:[#allocation2 + $0x120] sm:$0xff] 0.0
          %303 = vst [vmem:[#allocation2 + $0x128] sm:$0xff] 0.0
          %304 = vst [vmem:[#allocation2 + $0x130] sm:$0xff] 0.0
          %305 = vst [vmem:[#allocation2 + $0x138] sm:$0xff] 0.0
          %306 = vst [vmem:[#allocation2 + $0x140] sm:$0xff] 0.0
          %307 = vst [vmem:[#allocation2 + $0x148] sm:$0xff] 0.0
          %308 = vst [vmem:[#allocation2 + $0x150] sm:$0xff] 0.0
          %309 = vst [vmem:[#allocation2 + $0x158] sm:$0xff] 0.0
          %310 = vst [vmem:[#allocation2 + $0x160] sm:$0xff] 0.0
          %311 = vst [vmem:[#allocation2 + $0x168] sm:$0xff] 0.0
          %312 = vst [vmem:[#allocation2 + $0x170] sm:$0xff] 0.0
          %313 = vst [vmem:[#allocation2 + $0x178] sm:$0xff] 0.0
          %314 = vst [vmem:[#allocation2 + $0x180] sm:$0xff] 0.0
          %315 = vst [vmem:[#allocation2 + $0x188] sm:$0xff] 0.0
          %316 = vst [vmem:[#allocation2 + $0x190] sm:$0xff] 0.0
          %317 = vst [vmem:[#allocation2 + $0x198] sm:$0xff] 0.0
          %318 = vst [vmem:[#allocation2 + $0x1a0] sm:$0xff] 0.0
          %319 = vst [vmem:[#allocation2 + $0x1a8] sm:$0xff] 0.0
          %320 = vst [vmem:[#allocation2 + $0x1b0] sm:$0xff] 0.0
          %321 = vst [vmem:[#allocation2 + $0x1b8] sm:$0xff] 0.0
          %322 = vst [vmem:[#allocation2 + $0x1c0] sm:$0xff] 0.0
          %323 = vst [vmem:[#allocation2 + $0x1c8] sm:$0xff] 0.0
          %324 = vst [vmem:[#allocation2 + $0x1d0] sm:$0xff] 0.0
          %325 = vst [vmem:[#allocation2 + $0x1d8] sm:$0xff] 0.0
          %326 = vst [vmem:[#allocation2 + $0x1e0] sm:$0xff] 0.0
          %327 = vst [vmem:[#allocation2 + $0x1e8] sm:$0xff] 0.0
          %328 = vst [vmem:[#allocation2 + $0x1f0] sm:$0xff] 0.0
          %329 = vst [vmem:[#allocation2 + $0x1f8] sm:$0xff] 0.0
        $region36: #{gcn_forward.2} parent=31 // pred_fallthru
          _
        %v330 = vld [vmem:[%s244] sm:$0xff]
        %v331 = vld [vmem:[%s244 + $0x8] sm:$0xff]
        %v332 = vld [vmem:[%s244 + $0x10] sm:$0xff]
        %v333 = vld [vmem:[%s244 + $0x18] sm:$0xff]
        %v334 = vld [vmem:[%s244 + $0x20] sm:$0xff]
        %v335 = vld [vmem:[%s244 + $0x28] sm:$0xff]
        %v336 = vld [vmem:[%s244 + $0x30] sm:$0xff]
        %v337 = vld [vmem:[%s244 + $0x38] sm:$0xff]
        %v338 = vld [vmem:[%s244 + $0x40] sm:$0xff]
        %v339 = vld [vmem:[%s244 + $0x48] sm:$0xff]
        %v340 = vld [vmem:[%s244 + $0x50] sm:$0xff]
        %v341 = vld [vmem:[%s244 + $0x58] sm:$0xff]
        %v342 = vld [vmem:[%s244 + $0x60] sm:$0xff]
        %v343 = vld [vmem:[%s244 + $0x68] sm:$0xff]
        %v344 = vld [vmem:[%s244 + $0x70] sm:$0xff]
        %v345 = vld [vmem:[%s244 + $0x78] sm:$0xff]
        %v346 = vld [vmem:[%s244 + $0x80] sm:$0xff]
        %v347 = vld [vmem:[%s244 + $0x88] sm:$0xff]
        %v348 = vld [vmem:[%s244 + $0x90] sm:$0xff]
        %v349 = vld [vmem:[%s244 + $0x98] sm:$0xff]
        %v350 = vld [vmem:[%s244 + $0xa0] sm:$0xff]
        %v351 = vld [vmem:[%s244 + $0xa8] sm:$0xff]
        %v352 = vld [vmem:[%s244 + $0xb0] sm:$0xff]
        %v353 = vld [vmem:[%s244 + $0xb8] sm:$0xff]
        %v354 = vld [vmem:[%s244 + $0xc0] sm:$0xff]
        %v355 = vld [vmem:[%s244 + $0xc8] sm:$0xff]
        %v356 = vld [vmem:[%s244 + $0xd0] sm:$0xff]
        %v357 = vld [vmem:[%s244 + $0xd8] sm:$0xff]
        %v358 = vld [vmem:[%s244 + $0xe0] sm:$0xff]
        %v359 = vld [vmem:[%s244 + $0xe8] sm:$0xff]
        %v360 = vld [vmem:[%s244 + $0xf0] sm:$0xff]
        %v361 = vld [vmem:[%s244 + $0xf8] sm:$0xff]
        %v362 = vld [vmem:[%s244 + $0x100] sm:$0xff]
        %v363 = vld [vmem:[%s244 + $0x108] sm:$0xff]
        %v364 = vld [vmem:[%s244 + $0x110] sm:$0xff]
        %v365 = vld [vmem:[%s244 + $0x118] sm:$0xff]
        %v366 = vld [vmem:[%s244 + $0x120] sm:$0xff]
        %v367 = vld [vmem:[%s244 + $0x128] sm:$0xff]
        %v368 = vld [vmem:[%s244 + $0x130] sm:$0xff]
        %v369 = vld [vmem:[%s244 + $0x138] sm:$0xff]
        %v370 = vld [vmem:[%s244 + $0x140] sm:$0xff]
        %v371 = vld [vmem:[%s244 + $0x148] sm:$0xff]
        %v372 = vld [vmem:[%s244 + $0x150] sm:$0xff]
        %v373 = vld [vmem:[%s244 + $0x158] sm:$0xff]
        %v374 = vld [vmem:[%s244 + $0x160] sm:$0xff]
        %v375 = vld [vmem:[%s244 + $0x168] sm:$0xff]
        %v376 = vld [vmem:[%s244 + $0x170] sm:$0xff]
        %v377 = vld [vmem:[%s244 + $0x178] sm:$0xff]
        %v378 = vld [vmem:[%s244 + $0x180] sm:$0xff]
        %v379 = vld [vmem:[%s244 + $0x188] sm:$0xff]
        %v380 = vld [vmem:[%s244 + $0x190] sm:$0xff]
        %v381 = vld [vmem:[%s244 + $0x198] sm:$0xff]
        %v382 = vld [vmem:[%s244 + $0x1a0] sm:$0xff]
        %v383 = vld [vmem:[%s244 + $0x1a8] sm:$0xff]
        %v384 = vld [vmem:[%s244 + $0x1b0] sm:$0xff]
        %v385 = vld [vmem:[%s244 + $0x1b8] sm:$0xff]
        %v386 = vld [vmem:[%s244 + $0x1c0] sm:$0xff]
        %v387 = vld [vmem:[%s244 + $0x1c8] sm:$0xff]
        %v388 = vld [vmem:[%s244 + $0x1d0] sm:$0xff]
        %v389 = vld [vmem:[%s244 + $0x1d8] sm:$0xff]
        %v390 = vld [vmem:[%s244 + $0x1e0] sm:$0xff]
        %v391 = vld [vmem:[%s244 + $0x1e8] sm:$0xff]
        %v392 = vld [vmem:[%s244 + $0x1f0] sm:$0xff]
        %v393 = vld [vmem:[%s244 + $0x1f8] sm:$0xff]
        %v394 = vld [vmem:[%s244 + $0x200] sm:$0xff]
        %v395 = vld [vmem:[%s244 + $0x208] sm:$0xff]
        %v396 = vld [vmem:[%s244 + $0x210] sm:$0xff]
        %v397 = vld [vmem:[%s244 + $0x218] sm:$0xff]
        %v398 = vld [vmem:[%s244 + $0x220] sm:$0xff]
        %v399 = vld [vmem:[%s244 + $0x228] sm:$0xff]
        %v400 = vld [vmem:[%s244 + $0x230] sm:$0xff]
        %v401 = vld [vmem:[%s244 + $0x238] sm:$0xff]
        %v402 = vld [vmem:[%s244 + $0x240] sm:$0xff]
        %v403 = vld [vmem:[%s244 + $0x248] sm:$0xff]
        %v404 = vld [vmem:[%s244 + $0x250] sm:$0xff]
        %v405 = vld [vmem:[%s244 + $0x258] sm:$0xff]
        %v406 = vld [vmem:[%s244 + $0x260] sm:$0xff]
        %v407 = vld [vmem:[%s244 + $0x268] sm:$0xff]
        %v408 = vld [vmem:[%s244 + $0x270] sm:$0xff]
        %v409 = vld [vmem:[%s244 + $0x278] sm:$0xff]
        %v410 = vld [vmem:[%s244 + $0x280] sm:$0xff]
        %v411 = vld [vmem:[%s244 + $0x288] sm:$0xff]
        %v412 = vld [vmem:[%s244 + $0x290] sm:$0xff]
        %v413 = vld [vmem:[%s244 + $0x298] sm:$0xff]
        %v414 = vld [vmem:[%s244 + $0x2a0] sm:$0xff]
        %v415 = vld [vmem:[%s244 + $0x2a8] sm:$0xff]
        %v416 = vld [vmem:[%s244 + $0x2b0] sm:$0xff]
        %v417 = vld [vmem:[%s244 + $0x2b8] sm:$0xff]
        %v418 = vld [vmem:[%s244 + $0x2c0] sm:$0xff]
        %v419 = vld [vmem:[%s244 + $0x2c8] sm:$0xff]
        %v420 = vld [vmem:[%s244 + $0x2d0] sm:$0xff]
        %v421 = vld [vmem:[%s244 + $0x2d8] sm:$0xff]
        %v422 = vld [vmem:[%s244 + $0x2e0] sm:$0xff]
        %v423 = vld [vmem:[%s244 + $0x2e8] sm:$0xff]
        %v424 = vld [vmem:[%s244 + $0x2f0] sm:$0xff]
        %v425 = vld [vmem:[%s244 + $0x2f8] sm:$0xff]
        %v426 = vld [vmem:[%s244 + $0x300] sm:$0xff]
        %v427 = vld [vmem:[%s244 + $0x308] sm:$0xff]
        %v428 = vld [vmem:[%s244 + $0x310] sm:$0xff]
        %v429 = vld [vmem:[%s244 + $0x318] sm:$0xff]
        %v430 = vld [vmem:[%s244 + $0x320] sm:$0xff]
        %v431 = vld [vmem:[%s244 + $0x328] sm:$0xff]
        %v432 = vld [vmem:[%s244 + $0x330] sm:$0xff]
        %v433 = vld [vmem:[%s244 + $0x338] sm:$0xff]
        %v434 = vld [vmem:[%s244 + $0x340] sm:$0xff]
        %v435 = vld [vmem:[%s244 + $0x348] sm:$0xff]
        %v436 = vld [vmem:[%s244 + $0x350] sm:$0xff]
        %v437 = vld [vmem:[%s244 + $0x358] sm:$0xff]
        %v438 = vld [vmem:[%s244 + $0x360] sm:$0xff]
        %v439 = vld [vmem:[%s244 + $0x368] sm:$0xff]
        %v440 = vld [vmem:[%s244 + $0x370] sm:$0xff]
        %v441 = vld [vmem:[%s244 + $0x378] sm:$0xff]
        %v442 = vld [vmem:[%s244 + $0x380] sm:$0xff]
        %v443 = vld [vmem:[%s244 + $0x388] sm:$0xff]
        %v444 = vld [vmem:[%s244 + $0x390] sm:$0xff]
        %v445 = vld [vmem:[%s244 + $0x398] sm:$0xff]
        %v446 = vld [vmem:[%s244 + $0x3a0] sm:$0xff]
        %v447 = vld [vmem:[%s244 + $0x3a8] sm:$0xff]
        %v448 = vld [vmem:[%s244 + $0x3b0] sm:$0xff]
        %v449 = vld [vmem:[%s244 + $0x3b8] sm:$0xff]
        %v450 = vld [vmem:[%s244 + $0x3c0] sm:$0xff]
        %v451 = vld [vmem:[%s244 + $0x3c8] sm:$0xff]
        %v452 = vld [vmem:[%s244 + $0x3d0] sm:$0xff]
        %v453 = vld [vmem:[%s244 + $0x3d8] sm:$0xff]
        %v454 = vld [vmem:[%s244 + $0x3e0] sm:$0xff]
        %v455 = vld [vmem:[%s244 + $0x3e8] sm:$0xff]
        %v456 = vld [vmem:[%s244 + $0x3f0] sm:$0xff]
        %v457 = vld [vmem:[%s244 + $0x3f8] sm:$0xff]
        %v458 = vpack.c.bf16 %v334, %v330
        %v459 = vpack.c.bf16 %v335, %v331
        %v460 = vpack.c.bf16 %v336, %v332
        %v461 = vpack.c.bf16 %v337, %v333
        %v462 = vpack.c.bf16 %v342, %v338
        %v463 = vpack.c.bf16 %v343, %v339
        %v464 = vpack.c.bf16 %v344, %v340
        %v465 = vpack.c.bf16 %v345, %v341
        %v466 = vpack.c.bf16 %v350, %v346
        %v467 = vpack.c.bf16 %v351, %v347
        %v468 = vpack.c.bf16 %v352, %v348
        %v469 = vpack.c.bf16 %v353, %v349
        %v470 = vpack.c.bf16 %v358, %v354
        %v471 = vpack.c.bf16 %v359, %v355
        %v472 = vpack.c.bf16 %v360, %v356
        %v473 = vpack.c.bf16 %v361, %v357
        %v474 = vpack.c.bf16 %v366, %v362
        %v475 = vpack.c.bf16 %v367, %v363
        %v476 = vpack.c.bf16 %v368, %v364
        %v477 = vpack.c.bf16 %v369, %v365
        %v478 = vpack.c.bf16 %v374, %v370
        %v479 = vpack.c.bf16 %v375, %v371
        %v480 = vpack.c.bf16 %v376, %v372
        %v481 = vpack.c.bf16 %v377, %v373
        %v482 = vpack.c.bf16 %v382, %v378
        %v483 = vpack.c.bf16 %v383, %v379
        %v484 = vpack.c.bf16 %v384, %v380
        %v485 = vpack.c.bf16 %v385, %v381
        %v486 = vpack.c.bf16 %v390, %v386
        %v487 = vpack.c.bf16 %v391, %v387
        %v488 = vpack.c.bf16 %v392, %v388
        %v489 = vpack.c.bf16 %v393, %v389
        %v490 = vpack.c.bf16 %v398, %v394
        %v491 = vpack.c.bf16 %v399, %v395
        %v492 = vpack.c.bf16 %v400, %v396
        %v493 = vpack.c.bf16 %v401, %v397
        %v494 = vpack.c.bf16 %v406, %v402
        %v495 = vpack.c.bf16 %v407, %v403
        %v496 = vpack.c.bf16 %v408, %v404
        %v497 = vpack.c.bf16 %v409, %v405
        %v498 = vpack.c.bf16 %v414, %v410
        %v499 = vpack.c.bf16 %v415, %v411
        %v500 = vpack.c.bf16 %v416, %v412
        %v501 = vpack.c.bf16 %v417, %v413
        %v502 = vpack.c.bf16 %v422, %v418
        %v503 = vpack.c.bf16 %v423, %v419
        %v504 = vpack.c.bf16 %v424, %v420
        %v505 = vpack.c.bf16 %v425, %v421
        %v506 = vpack.c.bf16 %v430, %v426
        %v507 = vpack.c.bf16 %v431, %v427
        %v508 = vpack.c.bf16 %v432, %v428
        %v509 = vpack.c.bf16 %v433, %v429
        %v510 = vpack.c.bf16 %v438, %v434
        %v511 = vpack.c.bf16 %v439, %v435
        %v512 = vpack.c.bf16 %v440, %v436
        %v513 = vpack.c.bf16 %v441, %v437
        %v514 = vpack.c.bf16 %v446, %v442
        %v515 = vpack.c.bf16 %v447, %v443
        %v516 = vpack.c.bf16 %v448, %v444
        %v517 = vpack.c.bf16 %v449, %v445
        %v518 = vpack.c.bf16 %v454, %v450
        %v519 = vpack.c.bf16 %v455, %v451
        %v520 = vpack.c.bf16 %v456, %v452
        %v521 = vpack.c.bf16 %v457, %v453
        %v522 = vld [vmem:[#allocation2] sm:$0xff]
        %v523 = vld [vmem:[#allocation2 + $0x8] sm:$0xff]
        %v524 = vld [vmem:[#allocation2 + $0x10] sm:$0xff]
        %v525 = vld [vmem:[#allocation2 + $0x18] sm:$0xff]
        %v526 = vld [vmem:[#allocation2 + $0x20] sm:$0xff]
        %v527 = vld [vmem:[#allocation2 + $0x28] sm:$0xff]
        %v528 = vld [vmem:[#allocation2 + $0x30] sm:$0xff]
        %v529 = vld [vmem:[#allocation2 + $0x38] sm:$0xff]
        %v530 = vld [vmem:[#allocation2 + $0x40] sm:$0xff]
        %v531 = vld [vmem:[#allocation2 + $0x48] sm:$0xff]
        %v532 = vld [vmem:[#allocation2 + $0x50] sm:$0xff]
        %v533 = vld [vmem:[#allocation2 + $0x58] sm:$0xff]
        %v534 = vld [vmem:[#allocation2 + $0x60] sm:$0xff]
        %v535 = vld [vmem:[#allocation2 + $0x68] sm:$0xff]
        %v536 = vld [vmem:[#allocation2 + $0x70] sm:$0xff]
        %v537 = vld [vmem:[#allocation2 + $0x78] sm:$0xff]
        %v538 = vld [vmem:[#allocation2 + $0x80] sm:$0xff]
        %v539 = vld [vmem:[#allocation2 + $0x88] sm:$0xff]
        %v540 = vld [vmem:[#allocation2 + $0x90] sm:$0xff]
        %v541 = vld [vmem:[#allocation2 + $0x98] sm:$0xff]
        %v542 = vld [vmem:[#allocation2 + $0xa0] sm:$0xff]
        %v543 = vld [vmem:[#allocation2 + $0xa8] sm:$0xff]
        %v544 = vld [vmem:[#allocation2 + $0xb0] sm:$0xff]
        %v545 = vld [vmem:[#allocation2 + $0xb8] sm:$0xff]
        %v546 = vld [vmem:[#allocation2 + $0xc0] sm:$0xff]
        %v547 = vld [vmem:[#allocation2 + $0xc8] sm:$0xff]
        %v548 = vld [vmem:[#allocation2 + $0xd0] sm:$0xff]
        %v549 = vld [vmem:[#allocation2 + $0xd8] sm:$0xff]
        %v550 = vld [vmem:[#allocation2 + $0xe0] sm:$0xff]
        %v551 = vld [vmem:[#allocation2 + $0xe8] sm:$0xff]
        %v552 = vld [vmem:[#allocation2 + $0xf0] sm:$0xff]
        %v553 = vld [vmem:[#allocation2 + $0xf8] sm:$0xff]
        %v554 = vld [vmem:[#allocation2 + $0x100] sm:$0xff]
        %v555 = vld [vmem:[#allocation2 + $0x108] sm:$0xff]
        %v556 = vld [vmem:[#allocation2 + $0x110] sm:$0xff]
        %v557 = vld [vmem:[#allocation2 + $0x118] sm:$0xff]
        %v558 = vld [vmem:[#allocation2 + $0x120] sm:$0xff]
        %v559 = vld [vmem:[#allocation2 + $0x128] sm:$0xff]
        %v560 = vld [vmem:[#allocation2 + $0x130] sm:$0xff]
        %v561 = vld [vmem:[#allocation2 + $0x138] sm:$0xff]
        %v562 = vld [vmem:[#allocation2 + $0x140] sm:$0xff]
        %v563 = vld [vmem:[#allocation2 + $0x148] sm:$0xff]
        %v564 = vld [vmem:[#allocation2 + $0x150] sm:$0xff]
        %v565 = vld [vmem:[#allocation2 + $0x158] sm:$0xff]
        %v566 = vld [vmem:[#allocation2 + $0x160] sm:$0xff]
        %v567 = vld [vmem:[#allocation2 + $0x168] sm:$0xff]
        %v568 = vld [vmem:[#allocation2 + $0x170] sm:$0xff]
        %v569 = vld [vmem:[#allocation2 + $0x178] sm:$0xff]
        %v570 = vld [vmem:[#allocation2 + $0x180] sm:$0xff]
        %v571 = vld [vmem:[#allocation2 + $0x188] sm:$0xff]
        %v572 = vld [vmem:[#allocation2 + $0x190] sm:$0xff]
        %v573 = vld [vmem:[#allocation2 + $0x198] sm:$0xff]
        %v574 = vld [vmem:[#allocation2 + $0x1a0] sm:$0xff]
        %v575 = vld [vmem:[#allocation2 + $0x1a8] sm:$0xff]
        %v576 = vld [vmem:[#allocation2 + $0x1b0] sm:$0xff]
        %v577 = vld [vmem:[#allocation2 + $0x1b8] sm:$0xff]
        %v578 = vld [vmem:[#allocation2 + $0x1c0] sm:$0xff]
        %v579 = vld [vmem:[#allocation2 + $0x1c8] sm:$0xff]
        %v580 = vld [vmem:[#allocation2 + $0x1d0] sm:$0xff]
        %v581 = vld [vmem:[#allocation2 + $0x1d8] sm:$0xff]
        %v582 = vld [vmem:[#allocation2 + $0x1e0] sm:$0xff]
        %v583 = vld [vmem:[#allocation2 + $0x1e8] sm:$0xff]
        %v584 = vld [vmem:[#allocation2 + $0x1f0] sm:$0xff]
        %v585 = vld [vmem:[#allocation2 + $0x1f8] sm:$0xff]
        %v586 = vld [vmem:[%s256] sm:$0xff]
        %v587 = vld [vmem:[%s256 + $0x8] sm:$0xff]
        %v588 = vld [vmem:[%s256 + $0x10] sm:$0xff]
        %v589 = vld [vmem:[%s256 + $0x18] sm:$0xff]
        %v590 = vld [vmem:[%s256 + $0x20] sm:$0xff]
        %v591 = vld [vmem:[%s256 + $0x28] sm:$0xff]
        %v592 = vld [vmem:[%s256 + $0x30] sm:$0xff]
        %v593 = vld [vmem:[%s256 + $0x38] sm:$0xff]
        %v594 = vld [vmem:[%s256 + $0x40] sm:$0xff]
        %v595 = vld [vmem:[%s256 + $0x48] sm:$0xff]
        %v596 = vld [vmem:[%s256 + $0x50] sm:$0xff]
        %v597 = vld [vmem:[%s256 + $0x58] sm:$0xff]
        %v598 = vld [vmem:[%s256 + $0x60] sm:$0xff]
        %v599 = vld [vmem:[%s256 + $0x68] sm:$0xff]
        %v600 = vld [vmem:[%s256 + $0x70] sm:$0xff]
        %v601 = vld [vmem:[%s256 + $0x78] sm:$0xff]
        %v602 = vld [vmem:[%s256 + $0x80] sm:$0xff]
        %v603 = vld [vmem:[%s256 + $0x88] sm:$0xff]
        %v604 = vld [vmem:[%s256 + $0x90] sm:$0xff]
        %v605 = vld [vmem:[%s256 + $0x98] sm:$0xff]
        %v606 = vld [vmem:[%s256 + $0xa0] sm:$0xff]
        %v607 = vld [vmem:[%s256 + $0xa8] sm:$0xff]
        %v608 = vld [vmem:[%s256 + $0xb0] sm:$0xff]
        %v609 = vld [vmem:[%s256 + $0xb8] sm:$0xff]
        %v610 = vld [vmem:[%s256 + $0xc0] sm:$0xff]
        %v611 = vld [vmem:[%s256 + $0xc8] sm:$0xff]
        %v612 = vld [vmem:[%s256 + $0xd0] sm:$0xff]
        %v613 = vld [vmem:[%s256 + $0xd8] sm:$0xff]
        %v614 = vld [vmem:[%s256 + $0xe0] sm:$0xff]
        %v615 = vld [vmem:[%s256 + $0xe8] sm:$0xff]
        %v616 = vld [vmem:[%s256 + $0xf0] sm:$0xff]
        %v617 = vld [vmem:[%s256 + $0xf8] sm:$0xff]
        %v618 = vld [vmem:[%s256 + $0x100] sm:$0xff]
        %v619 = vld [vmem:[%s256 + $0x108] sm:$0xff]
        %v620 = vld [vmem:[%s256 + $0x110] sm:$0xff]
        %v621 = vld [vmem:[%s256 + $0x118] sm:$0xff]
        %v622 = vld [vmem:[%s256 + $0x120] sm:$0xff]
        %v623 = vld [vmem:[%s256 + $0x128] sm:$0xff]
        %v624 = vld [vmem:[%s256 + $0x130] sm:$0xff]
        %v625 = vld [vmem:[%s256 + $0x138] sm:$0xff]
        %v626 = vld [vmem:[%s256 + $0x140] sm:$0xff]
        %v627 = vld [vmem:[%s256 + $0x148] sm:$0xff]
        %v628 = vld [vmem:[%s256 + $0x150] sm:$0xff]
        %v629 = vld [vmem:[%s256 + $0x158] sm:$0xff]
        %v630 = vld [vmem:[%s256 + $0x160] sm:$0xff]
        %v631 = vld [vmem:[%s256 + $0x168] sm:$0xff]
        %v632 = vld [vmem:[%s256 + $0x170] sm:$0xff]
        %v633 = vld [vmem:[%s256 + $0x178] sm:$0xff]
        %v634 = vld [vmem:[%s256 + $0x180] sm:$0xff]
        %v635 = vld [vmem:[%s256 + $0x188] sm:$0xff]
        %v636 = vld [vmem:[%s256 + $0x190] sm:$0xff]
        %v637 = vld [vmem:[%s256 + $0x198] sm:$0xff]
        %v638 = vld [vmem:[%s256 + $0x1a0] sm:$0xff]
        %v639 = vld [vmem:[%s256 + $0x1a8] sm:$0xff]
        %v640 = vld [vmem:[%s256 + $0x1b0] sm:$0xff]
        %v641 = vld [vmem:[%s256 + $0x1b8] sm:$0xff]
        %v642 = vld [vmem:[%s256 + $0x1c0] sm:$0xff]
        %v643 = vld [vmem:[%s256 + $0x1c8] sm:$0xff]
        %v644 = vld [vmem:[%s256 + $0x1d0] sm:$0xff]
        %v645 = vld [vmem:[%s256 + $0x1d8] sm:$0xff]
        %v646 = vld [vmem:[%s256 + $0x1e0] sm:$0xff]
        %v647 = vld [vmem:[%s256 + $0x1e8] sm:$0xff]
        %v648 = vld [vmem:[%s256 + $0x1f0] sm:$0xff]
        %v649 = vld [vmem:[%s256 + $0x1f8] sm:$0xff]
        %v714 = vunpack.c.l.b16 %v586
        %v715 = vunpack.c.h.b16 %v586
        %v716 = vunpack.c.l.b16 %v587
        %v717 = vunpack.c.h.b16 %v587
        %v718 = vunpack.c.l.b16 %v588
        %v719 = vunpack.c.h.b16 %v588
        %v720 = vunpack.c.l.b16 %v589
        %v721 = vunpack.c.h.b16 %v589
        %v722 = vunpack.c.l.b16 %v590
        %v723 = vunpack.c.h.b16 %v590
        %v724 = vunpack.c.l.b16 %v591
        %v725 = vunpack.c.h.b16 %v591
        %v726 = vunpack.c.l.b16 %v592
        %v727 = vunpack.c.h.b16 %v592
        %v728 = vunpack.c.l.b16 %v593
        %v729 = vunpack.c.h.b16 %v593
        %v730 = vunpack.c.l.b16 %v594
        %v731 = vunpack.c.h.b16 %v594
        %v732 = vunpack.c.l.b16 %v595
        %v733 = vunpack.c.h.b16 %v595
        %v734 = vunpack.c.l.b16 %v596
        %v735 = vunpack.c.h.b16 %v596
        %v736 = vunpack.c.l.b16 %v597
        %v737 = vunpack.c.h.b16 %v597
        %v738 = vunpack.c.l.b16 %v598
        %v739 = vunpack.c.h.b16 %v598
        %v740 = vunpack.c.l.b16 %v599
        %v741 = vunpack.c.h.b16 %v599
        %v742 = vunpack.c.l.b16 %v600
        %v743 = vunpack.c.h.b16 %v600
        %v744 = vunpack.c.l.b16 %v601
        %v745 = vunpack.c.h.b16 %v601
        %v746 = vunpack.c.l.b16 %v602
        %v747 = vunpack.c.h.b16 %v602
        %v748 = vunpack.c.l.b16 %v603
        %v749 = vunpack.c.h.b16 %v603
        %v750 = vunpack.c.l.b16 %v604
        %v751 = vunpack.c.h.b16 %v604
        %v752 = vunpack.c.l.b16 %v605
        %v753 = vunpack.c.h.b16 %v605
        %v754 = vunpack.c.l.b16 %v606
        %v755 = vunpack.c.h.b16 %v606
        %v756 = vunpack.c.l.b16 %v607
        %v757 = vunpack.c.h.b16 %v607
        %v758 = vunpack.c.l.b16 %v608
        %v759 = vunpack.c.h.b16 %v608
        %v760 = vunpack.c.l.b16 %v609
        %v761 = vunpack.c.h.b16 %v609
        %v762 = vunpack.c.l.b16 %v610
        %v763 = vunpack.c.h.b16 %v610
        %v764 = vunpack.c.l.b16 %v611
        %v765 = vunpack.c.h.b16 %v611
        %v766 = vunpack.c.l.b16 %v612
        %v767 = vunpack.c.h.b16 %v612
        %v768 = vunpack.c.l.b16 %v613
        %v769 = vunpack.c.h.b16 %v613
        %v770 = vunpack.c.l.b16 %v614
        %v771 = vunpack.c.h.b16 %v614
        %v772 = vunpack.c.l.b16 %v615
        %v773 = vunpack.c.h.b16 %v615
        %v774 = vunpack.c.l.b16 %v616
        %v775 = vunpack.c.h.b16 %v616
        %v776 = vunpack.c.l.b16 %v617
        %v777 = vunpack.c.h.b16 %v617
        %v778 = vunpack.c.l.b16 %v618
        %v779 = vunpack.c.h.b16 %v618
        %v780 = vunpack.c.l.b16 %v619
        %v781 = vunpack.c.h.b16 %v619
        %v782 = vunpack.c.l.b16 %v620
        %v783 = vunpack.c.h.b16 %v620
        %v784 = vunpack.c.l.b16 %v621
        %v785 = vunpack.c.h.b16 %v621
        %v786 = vunpack.c.l.b16 %v622
        %v787 = vunpack.c.h.b16 %v622
        %v788 = vunpack.c.l.b16 %v623
        %v789 = vunpack.c.h.b16 %v623
        %v790 = vunpack.c.l.b16 %v624
        %v791 = vunpack.c.h.b16 %v624
        %v792 = vunpack.c.l.b16 %v625
        %v793 = vunpack.c.h.b16 %v625
        %v794 = vunpack.c.l.b16 %v626
        %v795 = vunpack.c.h.b16 %v626
        %v796 = vunpack.c.l.b16 %v627
        %v797 = vunpack.c.h.b16 %v627
        %v798 = vunpack.c.l.b16 %v628
        %v799 = vunpack.c.h.b16 %v628
        %v800 = vunpack.c.l.b16 %v629
        %v801 = vunpack.c.h.b16 %v629
        %v802 = vunpack.c.l.b16 %v630
        %v803 = vunpack.c.h.b16 %v630
        %v804 = vunpack.c.l.b16 %v631
        %v805 = vunpack.c.h.b16 %v631
        %v806 = vunpack.c.l.b16 %v632
        %v807 = vunpack.c.h.b16 %v632
        %v808 = vunpack.c.l.b16 %v633
        %v809 = vunpack.c.h.b16 %v633
        %v810 = vunpack.c.l.b16 %v634
        %v811 = vunpack.c.h.b16 %v634
        %v812 = vunpack.c.l.b16 %v635
        %v813 = vunpack.c.h.b16 %v635
        %v814 = vunpack.c.l.b16 %v636
        %v815 = vunpack.c.h.b16 %v636
        %v816 = vunpack.c.l.b16 %v637
        %v817 = vunpack.c.h.b16 %v637
        %v818 = vunpack.c.l.b16 %v638
        %v819 = vunpack.c.h.b16 %v638
        %v820 = vunpack.c.l.b16 %v639
        %v821 = vunpack.c.h.b16 %v639
        %v822 = vunpack.c.l.b16 %v640
        %v823 = vunpack.c.h.b16 %v640
        %v824 = vunpack.c.l.b16 %v641
        %v825 = vunpack.c.h.b16 %v641
        %v826 = vunpack.c.l.b16 %v642
        %v827 = vunpack.c.h.b16 %v642
        %v828 = vunpack.c.l.b16 %v643
        %v829 = vunpack.c.h.b16 %v643
        %v830 = vunpack.c.l.b16 %v644
        %v831 = vunpack.c.h.b16 %v644
        %v832 = vunpack.c.l.b16 %v645
        %v833 = vunpack.c.h.b16 %v645
        %v834 = vunpack.c.l.b16 %v646
        %v835 = vunpack.c.h.b16 %v646
        %v836 = vunpack.c.l.b16 %v647
        %v837 = vunpack.c.h.b16 %v647
        %v838 = vunpack.c.l.b16 %v648
        %v839 = vunpack.c.h.b16 %v648
        %v840 = vunpack.c.l.b16 %v649
        %v841 = vunpack.c.h.b16 %v649
        %v842 = vpack.c.b16 %v716, %v714
        %v843 = vpack.c.b16 %v717, %v715
        %v844 = vpack.c.b16 %v720, %v718
        %v845 = vpack.c.b16 %v721, %v719
        %v846 = vpack.c.b16 %v724, %v722
        %v847 = vpack.c.b16 %v725, %v723
        %v848 = vpack.c.b16 %v728, %v726
        %v849 = vpack.c.b16 %v729, %v727
        %v850 = vpack.c.b16 %v732, %v730
        %v851 = vpack.c.b16 %v733, %v731
        %v852 = vpack.c.b16 %v736, %v734
        %v853 = vpack.c.b16 %v737, %v735
        %v854 = vpack.c.b16 %v740, %v738
        %v855 = vpack.c.b16 %v741, %v739
        %v856 = vpack.c.b16 %v744, %v742
        %v857 = vpack.c.b16 %v745, %v743
        %v858 = vpack.c.b16 %v748, %v746
        %v859 = vpack.c.b16 %v749, %v747
        %v860 = vpack.c.b16 %v752, %v750
        %v861 = vpack.c.b16 %v753, %v751
        %v862 = vpack.c.b16 %v756, %v754
        %v863 = vpack.c.b16 %v757, %v755
        %v864 = vpack.c.b16 %v760, %v758
        %v865 = vpack.c.b16 %v761, %v759
        %v866 = vpack.c.b16 %v764, %v762
        %v867 = vpack.c.b16 %v765, %v763
        %v868 = vpack.c.b16 %v768, %v766
        %v869 = vpack.c.b16 %v769, %v767
        %v870 = vpack.c.b16 %v772, %v770
        %v871 = vpack.c.b16 %v773, %v771
        %v872 = vpack.c.b16 %v776, %v774
        %v873 = vpack.c.b16 %v777, %v775
        %v874 = vpack.c.b16 %v780, %v778
        %v875 = vpack.c.b16 %v781, %v779
        %v876 = vpack.c.b16 %v784, %v782
        %v877 = vpack.c.b16 %v785, %v783
        %v878 = vpack.c.b16 %v788, %v786
        %v879 = vpack.c.b16 %v789, %v787
        %v880 = vpack.c.b16 %v792, %v790
        %v881 = vpack.c.b16 %v793, %v791
        %v882 = vpack.c.b16 %v796, %v794
        %v883 = vpack.c.b16 %v797, %v795
        %v884 = vpack.c.b16 %v800, %v798
        %v885 = vpack.c.b16 %v801, %v799
        %v886 = vpack.c.b16 %v804, %v802
        %v887 = vpack.c.b16 %v805, %v803
        %v888 = vpack.c.b16 %v808, %v806
        %v889 = vpack.c.b16 %v809, %v807
        %v890 = vpack.c.b16 %v812, %v810
        %v891 = vpack.c.b16 %v813, %v811
        %v892 = vpack.c.b16 %v816, %v814
        %v893 = vpack.c.b16 %v817, %v815
        %v894 = vpack.c.b16 %v820, %v818
        %v895 = vpack.c.b16 %v821, %v819
        %v896 = vpack.c.b16 %v824, %v822
        %v897 = vpack.c.b16 %v825, %v823
        %v898 = vpack.c.b16 %v828, %v826
        %v899 = vpack.c.b16 %v829, %v827
        %v900 = vpack.c.b16 %v832, %v830
        %v901 = vpack.c.b16 %v833, %v831
        %v902 = vpack.c.b16 %v836, %v834
        %v903 = vpack.c.b16 %v837, %v835
        %v904 = vpack.c.b16 %v840, %v838
        %v905 = vpack.c.b16 %v841, %v839
        %970 = vmatprep.subr.bf16.mxu0 %v843
        %971 = vmatpush1.bf16.msra.mxu0 %v842
        %972 = vmatprep.subr.bf16.mxu0 %v845
        %973 = vmatpush1.bf16.msra.mxu0 %v844
        %974 = vmatprep.subr.bf16.mxu0 %v847
        %975 = vmatpush1.bf16.msra.mxu0 %v846
        %976 = vmatprep.subr.bf16.mxu0 %v849
        %977 = vmatpush1.bf16.msra.mxu0 %v848
        %978 = vmatprep.subr.bf16.mxu0 %v851
        %979 = vmatpush1.bf16.msra.mxu0 %v850
        %980 = vmatprep.subr.bf16.mxu0 %v853
        %981 = vmatpush1.bf16.msra.mxu0 %v852
        %982 = vmatprep.subr.bf16.mxu0 %v855
        %983 = vmatpush1.bf16.msra.mxu0 %v854
        %984 = vmatprep.subr.bf16.mxu0 %v857
        %985 = vmatpush1.bf16.msra.mxu0 %v856
        %986 = vmatprep.subr.bf16.mxu0 %v859
        %987 = vmatpush1.bf16.msra.mxu0 %v858
        %988 = vmatprep.subr.bf16.mxu0 %v861
        %989 = vmatpush1.bf16.msra.mxu0 %v860
        %990 = vmatprep.subr.bf16.mxu0 %v863
        %991 = vmatpush1.bf16.msra.mxu0 %v862
        %992 = vmatprep.subr.bf16.mxu0 %v865
        %993 = vmatpush1.bf16.msra.mxu0 %v864
        %994 = vmatprep.subr.bf16.mxu0 %v867
        %995 = vmatpush1.bf16.msra.mxu0 %v866
        %996 = vmatprep.subr.bf16.mxu0 %v869
        %997 = vmatpush1.bf16.msra.mxu0 %v868
        %998 = vmatprep.subr.bf16.mxu0 %v871
        %999 = vmatpush1.bf16.msra.mxu0 %v870
        %1000 = vmatprep.subr.bf16.mxu0 %v873
        %1001 = vmatpush1.bf16.msra.mxu0 %v872
        %1002 = vmatprep.mubr.bf16.mxu0 %v459
        %1003 = vmatmul.mubr.bf16.gmra.mrb[0].mxu0 %v458
        %v1004 = vpop.f32.mrb[0].mxu0
        %v1005 = vadd.f32 0.0, %v1004
        %v1006 = vpop.f32.mrb[0].mxu0
        %v1007 = vadd.f32 0.0, %v1006
        %v1008 = vpop.f32.mrb[0].mxu0
        %v1009 = vadd.f32 0.0, %v1008
        %v1010 = vpop.f32.mrb[0].mxu0
        %v1011 = vadd.f32 0.0, %v1010
        %1012 = vmatprep.mubr.bf16.mxu0 %v463
        %1013 = vmatmul.mubr.bf16.gmra.mrb[0].mxu0 %v462
        %v1014 = vpop.f32.mrb[0].mxu0
        %v1015 = vadd.f32 0.0, %v1014
        %v1016 = vpop.f32.mrb[0].mxu0
        %v1017 = vadd.f32 0.0, %v1016
        %v1018 = vpop.f32.mrb[0].mxu0
        %v1019 = vadd.f32 0.0, %v1018
        %v1020 = vpop.f32.mrb[0].mxu0
        %v1021 = vadd.f32 0.0, %v1020
        %1022 = vmatprep.mubr.bf16.mxu0 %v467
        %1023 = vmatmul.mubr.bf16.gmra.mrb[0].mxu0 %v466
        %v1024 = vpop.f32.mrb[0].mxu0
        %v1025 = vadd.f32 0.0, %v1024
        %v1026 = vpop.f32.mrb[0].mxu0
        %v1027 = vadd.f32 0.0, %v1026
        %v1028 = vpop.f32.mrb[0].mxu0
        %v1029 = vadd.f32 0.0, %v1028
        %v1030 = vpop.f32.mrb[0].mxu0
        %v1031 = vadd.f32 0.0, %v1030
        %1032 = vmatprep.mubr.bf16.mxu0 %v471
        %1033 = vmatmul.mubr.bf16.gmra.mrb[0].mxu0 %v470
        %v1034 = vpop.f32.mrb[0].mxu0
        %v1035 = vadd.f32 0.0, %v1034
        %v1036 = vpop.f32.mrb[0].mxu0
        %v1037 = vadd.f32 0.0, %v1036
        %v1038 = vpop.f32.mrb[0].mxu0
        %v1039 = vadd.f32 0.0, %v1038
        %v1040 = vpop.f32.mrb[0].mxu0
        %v1041 = vadd.f32 0.0, %v1040
        %1042 = vmatprep.mubr.bf16.mxu0 %v475
        %1043 = vmatmul.mubr.bf16.gmra.mrb[0].mxu0 %v474
        %v1044 = vpop.f32.mrb[0].mxu0
        %v1045 = vadd.f32 0.0, %v1044
        %v1046 = vpop.f32.mrb[0].mxu0
        %v1047 = vadd.f32 0.0, %v1046
        %v1048 = vpop.f32.mrb[0].mxu0
        %v1049 = vadd.f32 0.0, %v1048
        %v1050 = vpop.f32.mrb[0].mxu0
        %v1051 = vadd.f32 0.0, %v1050
        %1052 = vmatprep.mubr.bf16.mxu0 %v479
        %1053 = vmatmul.mubr.bf16.gmra.mrb[0].mxu0 %v478
        %v1054 = vpop.f32.mrb[0].mxu0
        %v1055 = vadd.f32 0.0, %v1054
        %v1056 = vpop.f32.mrb[0].mxu0
        %v1057 = vadd.f32 0.0, %v1056
        %v1058 = vpop.f32.mrb[0].mxu0
        %v1059 = vadd.f32 0.0, %v1058
        %v1060 = vpop.f32.mrb[0].mxu0
        %v1061 = vadd.f32 0.0, %v1060
        %1062 = vmatprep.mubr.bf16.mxu0 %v483
        %1063 = vmatmul.mubr.bf16.gmra.mrb[0].mxu0 %v482
        %v1064 = vpop.f32.mrb[0].mxu0
        %v1065 = vadd.f32 0.0, %v1064
        %v1066 = vpop.f32.mrb[0].mxu0
        %v1067 = vadd.f32 0.0, %v1066
        %v1068 = vpop.f32.mrb[0].mxu0
        %v1069 = vadd.f32 0.0, %v1068
        %v1070 = vpop.f32.mrb[0].mxu0
        %v1071 = vadd.f32 0.0, %v1070
        %1072 = vmatprep.mubr.bf16.mxu0 %v487
        %1073 = vmatmul.mubr.bf16.gmra.mrb[0].mxu0 %v486
        %v1074 = vpop.f32.mrb[0].mxu0
        %v1075 = vadd.f32 0.0, %v1074
        %v1076 = vpop.f32.mrb[0].mxu0
        %v1077 = vadd.f32 0.0, %v1076
        %v1078 = vpop.f32.mrb[0].mxu0
        %v1079 = vadd.f32 0.0, %v1078
        %v1080 = vpop.f32.mrb[0].mxu0
        %v1081 = vadd.f32 0.0, %v1080
        %1082 = vmatprep.mubr.bf16.mxu0 %v491
        %1083 = vmatmul.mubr.bf16.gmra.mrb[0].mxu0 %v490
        %v1084 = vpop.f32.mrb[0].mxu0
        %v1085 = vadd.f32 0.0, %v1084
        %v1086 = vpop.f32.mrb[0].mxu0
        %v1087 = vadd.f32 0.0, %v1086
        %v1088 = vpop.f32.mrb[0].mxu0
        %v1089 = vadd.f32 0.0, %v1088
        %v1090 = vpop.f32.mrb[0].mxu0
        %v1091 = vadd.f32 0.0, %v1090
        %1092 = vmatprep.mubr.bf16.mxu0 %v495
        %1093 = vmatmul.mubr.bf16.gmra.mrb[0].mxu0 %v494
        %v1094 = vpop.f32.mrb[0].mxu0
        %v1095 = vadd.f32 0.0, %v1094
        %v1096 = vpop.f32.mrb[0].mxu0
        %v1097 = vadd.f32 0.0, %v1096
        %v1098 = vpop.f32.mrb[0].mxu0
        %v1099 = vadd.f32 0.0, %v1098
        %v1100 = vpop.f32.mrb[0].mxu0
        %v1101 = vadd.f32 0.0, %v1100
        %1102 = vmatprep.mubr.bf16.mxu0 %v499
        %1103 = vmatmul.mubr.bf16.gmra.mrb[0].mxu0 %v498
        %v1104 = vpop.f32.mrb[0].mxu0
        %v1105 = vadd.f32 0.0, %v1104
        %v1106 = vpop.f32.mrb[0].mxu0
        %v1107 = vadd.f32 0.0, %v1106
        %v1108 = vpop.f32.mrb[0].mxu0
        %v1109 = vadd.f32 0.0, %v1108
        %v1110 = vpop.f32.mrb[0].mxu0
        %v1111 = vadd.f32 0.0, %v1110
        %1112 = vmatprep.mubr.bf16.mxu0 %v503
        %1113 = vmatmul.mubr.bf16.gmra.mrb[0].mxu0 %v502
        %v1114 = vpop.f32.mrb[0].mxu0
        %v1115 = vadd.f32 0.0, %v1114
        %v1116 = vpop.f32.mrb[0].mxu0
        %v1117 = vadd.f32 0.0, %v1116
        %v1118 = vpop.f32.mrb[0].mxu0
        %v1119 = vadd.f32 0.0, %v1118
        %v1120 = vpop.f32.mrb[0].mxu0
        %v1121 = vadd.f32 0.0, %v1120
        %1122 = vmatprep.mubr.bf16.mxu0 %v507
        %1123 = vmatmul.mubr.bf16.gmra.mrb[0].mxu0 %v506
        %v1124 = vpop.f32.mrb[0].mxu0
        %v1125 = vadd.f32 0.0, %v1124
        %v1126 = vpop.f32.mrb[0].mxu0
        %v1127 = vadd.f32 0.0, %v1126
        %v1128 = vpop.f32.mrb[0].mxu0
        %v1129 = vadd.f32 0.0, %v1128
        %v1130 = vpop.f32.mrb[0].mxu0
        %v1131 = vadd.f32 0.0, %v1130
        %1132 = vmatprep.mubr.bf16.mxu0 %v511
        %1133 = vmatmul.mubr.bf16.gmra.mrb[0].mxu0 %v510
        %v1134 = vpop.f32.mrb[0].mxu0
        %v1135 = vadd.f32 0.0, %v1134
        %v1136 = vpop.f32.mrb[0].mxu0
        %v1137 = vadd.f32 0.0, %v1136
        %v1138 = vpop.f32.mrb[0].mxu0
        %v1139 = vadd.f32 0.0, %v1138
        %v1140 = vpop.f32.mrb[0].mxu0
        %v1141 = vadd.f32 0.0, %v1140
        %1142 = vmatprep.mubr.bf16.mxu0 %v515
        %1143 = vmatmul.mubr.bf16.gmra.mrb[0].mxu0 %v514
        %v1144 = vpop.f32.mrb[0].mxu0
        %v1145 = vadd.f32 0.0, %v1144
        %v1146 = vpop.f32.mrb[0].mxu0
        %v1147 = vadd.f32 0.0, %v1146
        %v1148 = vpop.f32.mrb[0].mxu0
        %v1149 = vadd.f32 0.0, %v1148
        %v1150 = vpop.f32.mrb[0].mxu0
        %v1151 = vadd.f32 0.0, %v1150
        %1152 = vmatprep.mubr.bf16.mxu0 %v519
        %1153 = vmatmul.mubr.bf16.gmra.mrb[0].mxu0 %v518
        %v1154 = vpop.f32.mrb[0].mxu0
        %v1155 = vadd.f32 0.0, %v1154
        %v1156 = vpop.f32.mrb[0].mxu0
        %v1157 = vadd.f32 0.0, %v1156
        %v1158 = vpop.f32.mrb[0].mxu0
        %v1159 = vadd.f32 0.0, %v1158
        %v1160 = vpop.f32.mrb[0].mxu0
        %v1161 = vadd.f32 0.0, %v1160
        %1162 = vdwg.mxu0
        %1163 = vmatprep.subr.bf16.mxu0 %v875
        %1164 = vmatpush1.bf16.msra.mxu0 %v874
        %1165 = vmatprep.subr.bf16.mxu0 %v877
        %1166 = vmatpush1.bf16.msra.mxu0 %v876
        %1167 = vmatprep.subr.bf16.mxu0 %v879
        %1168 = vmatpush1.bf16.msra.mxu0 %v878
        %1169 = vmatprep.subr.bf16.mxu0 %v881
        %1170 = vmatpush1.bf16.msra.mxu0 %v880
        %1171 = vmatprep.subr.bf16.mxu0 %v883
        %1172 = vmatpush1.bf16.msra.mxu0 %v882
        %1173 = vmatprep.subr.bf16.mxu0 %v885
        %1174 = vmatpush1.bf16.msra.mxu0 %v884
        %1175 = vmatprep.subr.bf16.mxu0 %v887
        %1176 = vmatpush1.bf16.msra.mxu0 %v886
        %1177 = vmatprep.subr.bf16.mxu0 %v889
        %1178 = vmatpush1.bf16.msra.mxu0 %v888
        %1179 = vmatprep.subr.bf16.mxu0 %v891
        %1180 = vmatpush1.bf16.msra.mxu0 %v890
        %1181 = vmatprep.subr.bf16.mxu0 %v893
        %1182 = vmatpush1.bf16.msra.mxu0 %v892
        %1183 = vmatprep.subr.bf16.mxu0 %v895
        %1184 = vmatpush1.bf16.msra.mxu0 %v894
        %1185 = vmatprep.subr.bf16.mxu0 %v897
        %1186 = vmatpush1.bf16.msra.mxu0 %v896
        %1187 = vmatprep.subr.bf16.mxu0 %v899
        %1188 = vmatpush1.bf16.msra.mxu0 %v898
        %1189 = vmatprep.subr.bf16.mxu0 %v901
        %1190 = vmatpush1.bf16.msra.mxu0 %v900
        %1191 = vmatprep.subr.bf16.mxu0 %v903
        %1192 = vmatpush1.bf16.msra.mxu0 %v902
        %1193 = vmatprep.subr.bf16.mxu0 %v905
        %1194 = vmatpush1.bf16.msra.mxu0 %v904
        %1195 = vmatprep.mubr.bf16.mxu0 %v461
        %1196 = vmatmul.mubr.bf16.gmra.mrb[0].mxu0 %v460
        %v1197 = vpop.f32.mrb[0].mxu0
        %v1198 = vadd.f32 %v1005, %v1197
        %v1199 = vpop.f32.mrb[0].mxu0
        %v1200 = vadd.f32 %v1007, %v1199
        %v1201 = vpop.f32.mrb[0].mxu0
        %v1202 = vadd.f32 %v1009, %v1201
        %v1203 = vpop.f32.mrb[0].mxu0
        %v1204 = vadd.f32 %v1011, %v1203
        %1205 = vmatprep.mubr.bf16.mxu0 %v465
        %1206 = vmatmul.mubr.bf16.gmra.mrb[0].mxu0 %v464
        %v1207 = vpop.f32.mrb[0].mxu0
        %v1208 = vadd.f32 %v1015, %v1207
        %v1209 = vpop.f32.mrb[0].mxu0
        %v1210 = vadd.f32 %v1017, %v1209
        %v1211 = vpop.f32.mrb[0].mxu0
        %v1212 = vadd.f32 %v1019, %v1211
        %v1213 = vpop.f32.mrb[0].mxu0
        %v1214 = vadd.f32 %v1021, %v1213
        %1215 = vmatprep.mubr.bf16.mxu0 %v469
        %1216 = vmatmul.mubr.bf16.gmra.mrb[0].mxu0 %v468
        %v1217 = vpop.f32.mrb[0].mxu0
        %v1218 = vadd.f32 %v1025, %v1217
        %v1219 = vpop.f32.mrb[0].mxu0
        %v1220 = vadd.f32 %v1027, %v1219
        %v1221 = vpop.f32.mrb[0].mxu0
        %v1222 = vadd.f32 %v1029, %v1221
        %v1223 = vpop.f32.mrb[0].mxu0
        %v1224 = vadd.f32 %v1031, %v1223
        %1225 = vmatprep.mubr.bf16.mxu0 %v473
        %1226 = vmatmul.mubr.bf16.gmra.mrb[0].mxu0 %v472
        %v1227 = vpop.f32.mrb[0].mxu0
        %v1228 = vadd.f32 %v1035, %v1227
        %v1229 = vpop.f32.mrb[0].mxu0
        %v1230 = vadd.f32 %v1037, %v1229
        %v1231 = vpop.f32.mrb[0].mxu0
        %v1232 = vadd.f32 %v1039, %v1231
        %v1233 = vpop.f32.mrb[0].mxu0
        %v1234 = vadd.f32 %v1041, %v1233
        %1235 = vmatprep.mubr.bf16.mxu0 %v477
        %1236 = vmatmul.mubr.bf16.gmra.mrb[0].mxu0 %v476
        %v1237 = vpop.f32.mrb[0].mxu0
        %v1238 = vadd.f32 %v1045, %v1237
        %v1239 = vpop.f32.mrb[0].mxu0
        %v1240 = vadd.f32 %v1047, %v1239
        %v1241 = vpop.f32.mrb[0].mxu0
        %v1242 = vadd.f32 %v1049, %v1241
        %v1243 = vpop.f32.mrb[0].mxu0
        %v1244 = vadd.f32 %v1051, %v1243
        %1245 = vmatprep.mubr.bf16.mxu0 %v481
        %1246 = vmatmul.mubr.bf16.gmra.mrb[0].mxu0 %v480
        %v1247 = vpop.f32.mrb[0].mxu0
        %v1248 = vadd.f32 %v1055, %v1247
        %v1249 = vpop.f32.mrb[0].mxu0
        %v1250 = vadd.f32 %v1057, %v1249
        %v1251 = vpop.f32.mrb[0].mxu0
        %v1252 = vadd.f32 %v1059, %v1251
        %v1253 = vpop.f32.mrb[0].mxu0
        %v1254 = vadd.f32 %v1061, %v1253
        %1255 = vmatprep.mubr.bf16.mxu0 %v485
        %1256 = vmatmul.mubr.bf16.gmra.mrb[0].mxu0 %v484
        %v1257 = vpop.f32.mrb[0].mxu0
        %v1258 = vadd.f32 %v1065, %v1257
        %v1259 = vpop.f32.mrb[0].mxu0
        %v1260 = vadd.f32 %v1067, %v1259
        %v1261 = vpop.f32.mrb[0].mxu0
        %v1262 = vadd.f32 %v1069, %v1261
        %v1263 = vpop.f32.mrb[0].mxu0
        %v1264 = vadd.f32 %v1071, %v1263
        %1265 = vmatprep.mubr.bf16.mxu0 %v489
        %1266 = vmatmul.mubr.bf16.gmra.mrb[0].mxu0 %v488
        %v1267 = vpop.f32.mrb[0].mxu0
        %v1268 = vadd.f32 %v1075, %v1267
        %v1269 = vpop.f32.mrb[0].mxu0
        %v1270 = vadd.f32 %v1077, %v1269
        %v1271 = vpop.f32.mrb[0].mxu0
        %v1272 = vadd.f32 %v1079, %v1271
        %v1273 = vpop.f32.mrb[0].mxu0
        %v1274 = vadd.f32 %v1081, %v1273
        %1275 = vmatprep.mubr.bf16.mxu0 %v493
        %1276 = vmatmul.mubr.bf16.gmra.mrb[0].mxu0 %v492
        %v1277 = vpop.f32.mrb[0].mxu0
        %v1278 = vadd.f32 %v1085, %v1277
        %v1279 = vpop.f32.mrb[0].mxu0
        %v1280 = vadd.f32 %v1087, %v1279
        %v1281 = vpop.f32.mrb[0].mxu0
        %v1282 = vadd.f32 %v1089, %v1281
        %v1283 = vpop.f32.mrb[0].mxu0
        %v1284 = vadd.f32 %v1091, %v1283
        %1285 = vmatprep.mubr.bf16.mxu0 %v497
        %1286 = vmatmul.mubr.bf16.gmra.mrb[0].mxu0 %v496
        %v1287 = vpop.f32.mrb[0].mxu0
        %v1288 = vadd.f32 %v1095, %v1287
        %v1289 = vpop.f32.mrb[0].mxu0
        %v1290 = vadd.f32 %v1097, %v1289
        %v1291 = vpop.f32.mrb[0].mxu0
        %v1292 = vadd.f32 %v1099, %v1291
        %v1293 = vpop.f32.mrb[0].mxu0
        %v1294 = vadd.f32 %v1101, %v1293
        %1295 = vmatprep.mubr.bf16.mxu0 %v501
        %1296 = vmatmul.mubr.bf16.gmra.mrb[0].mxu0 %v500
        %v1297 = vpop.f32.mrb[0].mxu0
        %v1298 = vadd.f32 %v1105, %v1297
        %v1299 = vpop.f32.mrb[0].mxu0
        %v1300 = vadd.f32 %v1107, %v1299
        %v1301 = vpop.f32.mrb[0].mxu0
        %v1302 = vadd.f32 %v1109, %v1301
        %v1303 = vpop.f32.mrb[0].mxu0
        %v1304 = vadd.f32 %v1111, %v1303
        %1305 = vmatprep.mubr.bf16.mxu0 %v505
        %1306 = vmatmul.mubr.bf16.gmra.mrb[0].mxu0 %v504
        %v1307 = vpop.f32.mrb[0].mxu0
        %v1308 = vadd.f32 %v1115, %v1307
        %v1309 = vpop.f32.mrb[0].mxu0
        %v1310 = vadd.f32 %v1117, %v1309
        %v1311 = vpop.f32.mrb[0].mxu0
        %v1312 = vadd.f32 %v1119, %v1311
        %v1313 = vpop.f32.mrb[0].mxu0
        %v1314 = vadd.f32 %v1121, %v1313
        %1315 = vmatprep.mubr.bf16.mxu0 %v509
        %1316 = vmatmul.mubr.bf16.gmra.mrb[0].mxu0 %v508
        %v1317 = vpop.f32.mrb[0].mxu0
        %v1318 = vadd.f32 %v1125, %v1317
        %v1319 = vpop.f32.mrb[0].mxu0
        %v1320 = vadd.f32 %v1127, %v1319
        %v1321 = vpop.f32.mrb[0].mxu0
        %v1322 = vadd.f32 %v1129, %v1321
        %v1323 = vpop.f32.mrb[0].mxu0
        %v1324 = vadd.f32 %v1131, %v1323
        %1325 = vmatprep.mubr.bf16.mxu0 %v513
        %1326 = vmatmul.mubr.bf16.gmra.mrb[0].mxu0 %v512
        %v1327 = vpop.f32.mrb[0].mxu0
        %v1328 = vadd.f32 %v1135, %v1327
        %v1329 = vpop.f32.mrb[0].mxu0
        %v1330 = vadd.f32 %v1137, %v1329
        %v1331 = vpop.f32.mrb[0].mxu0
        %v1332 = vadd.f32 %v1139, %v1331
        %v1333 = vpop.f32.mrb[0].mxu0
        %v1334 = vadd.f32 %v1141, %v1333
        %1335 = vmatprep.mubr.bf16.mxu0 %v517
        %1336 = vmatmul.mubr.bf16.gmra.mrb[0].mxu0 %v516
        %v1337 = vpop.f32.mrb[0].mxu0
        %v1338 = vadd.f32 %v1145, %v1337
        %v1339 = vpop.f32.mrb[0].mxu0
        %v1340 = vadd.f32 %v1147, %v1339
        %v1341 = vpop.f32.mrb[0].mxu0
        %v1342 = vadd.f32 %v1149, %v1341
        %v1343 = vpop.f32.mrb[0].mxu0
        %v1344 = vadd.f32 %v1151, %v1343
        %1345 = vmatprep.mubr.bf16.mxu0 %v521
        %1346 = vmatmul.mubr.bf16.gmra.mrb[0].mxu0 %v520
        %v1347 = vpop.f32.mrb[0].mxu0
        %v1348 = vadd.f32 %v1155, %v1347
        %v1349 = vpop.f32.mrb[0].mxu0
        %v1350 = vadd.f32 %v1157, %v1349
        %v1351 = vpop.f32.mrb[0].mxu0
        %v1352 = vadd.f32 %v1159, %v1351
        %v1353 = vpop.f32.mrb[0].mxu0
        %v1354 = vadd.f32 %v1161, %v1353
        %1355 = vdwg.mxu0
        %v1356 = vadd.f32 %v522, %v1198
        %v1357 = vadd.f32 %v523, %v1200
        %v1358 = vadd.f32 %v524, %v1202
        %v1359 = vadd.f32 %v525, %v1204
        %v1360 = vadd.f32 %v526, %v1208
        %v1361 = vadd.f32 %v527, %v1210
        %v1362 = vadd.f32 %v528, %v1212
        %v1363 = vadd.f32 %v529, %v1214
        %v1364 = vadd.f32 %v530, %v1218
        %v1365 = vadd.f32 %v531, %v1220
        %v1366 = vadd.f32 %v532, %v1222
        %v1367 = vadd.f32 %v533, %v1224
        %v1368 = vadd.f32 %v534, %v1228
        %v1369 = vadd.f32 %v535, %v1230
        %v1370 = vadd.f32 %v536, %v1232
        %v1371 = vadd.f32 %v537, %v1234
        %v1372 = vadd.f32 %v538, %v1238
        %v1373 = vadd.f32 %v539, %v1240
        %v1374 = vadd.f32 %v540, %v1242
        %v1375 = vadd.f32 %v541, %v1244
        %v1376 = vadd.f32 %v542, %v1248
        %v1377 = vadd.f32 %v543, %v1250
        %v1378 = vadd.f32 %v544, %v1252
        %v1379 = vadd.f32 %v545, %v1254
        %v1380 = vadd.f32 %v546, %v1258
        %v1381 = vadd.f32 %v547, %v1260
        %v1382 = vadd.f32 %v548, %v1262
        %v1383 = vadd.f32 %v549, %v1264
        %v1384 = vadd.f32 %v550, %v1268
        %v1385 = vadd.f32 %v551, %v1270
        %v1386 = vadd.f32 %v552, %v1272
        %v1387 = vadd.f32 %v553, %v1274
        %v1388 = vadd.f32 %v554, %v1278
        %v1389 = vadd.f32 %v555, %v1280
        %v1390 = vadd.f32 %v556, %v1282
        %v1391 = vadd.f32 %v557, %v1284
        %v1392 = vadd.f32 %v558, %v1288
        %v1393 = vadd.f32 %v559, %v1290
        %v1394 = vadd.f32 %v560, %v1292
        %v1395 = vadd.f32 %v561, %v1294
        %v1396 = vadd.f32 %v562, %v1298
        %v1397 = vadd.f32 %v563, %v1300
        %v1398 = vadd.f32 %v564, %v1302
        %v1399 = vadd.f32 %v565, %v1304
        %v1400 = vadd.f32 %v566, %v1308
        %v1401 = vadd.f32 %v567, %v1310
        %v1402 = vadd.f32 %v568, %v1312
        %v1403 = vadd.f32 %v569, %v1314
        %v1404 = vadd.f32 %v570, %v1318
        %v1405 = vadd.f32 %v571, %v1320
        %v1406 = vadd.f32 %v572, %v1322
        %v1407 = vadd.f32 %v573, %v1324
        %v1408 = vadd.f32 %v574, %v1328
        %v1409 = vadd.f32 %v575, %v1330
        %v1410 = vadd.f32 %v576, %v1332
        %v1411 = vadd.f32 %v577, %v1334
        %v1412 = vadd.f32 %v578, %v1338
        %v1413 = vadd.f32 %v579, %v1340
        %v1414 = vadd.f32 %v580, %v1342
        %v1415 = vadd.f32 %v581, %v1344
        %v1416 = vadd.f32 %v582, %v1348
        %v1417 = vadd.f32 %v583, %v1350
        %v1418 = vadd.f32 %v584, %v1352
        %v1419 = vadd.f32 %v585, %v1354
        %1420 = vst [vmem:[#allocation2] sm:$0xff] %v1356
        %1421 = vst [vmem:[#allocation2 + $0x8] sm:$0xff] %v1357
        %1422 = vst [vmem:[#allocation2 + $0x10] sm:$0xff] %v1358
        %1423 = vst [vmem:[#allocation2 + $0x18] sm:$0xff] %v1359
        %1424 = vst [vmem:[#allocation2 + $0x20] sm:$0xff] %v1360
        %1425 = vst [vmem:[#allocation2 + $0x28] sm:$0xff] %v1361
        %1426 = vst [vmem:[#allocation2 + $0x30] sm:$0xff] %v1362
        %1427 = vst [vmem:[#allocation2 + $0x38] sm:$0xff] %v1363
        %1428 = vst [vmem:[#allocation2 + $0x40] sm:$0xff] %v1364
        %1429 = vst [vmem:[#allocation2 + $0x48] sm:$0xff] %v1365
        %1430 = vst [vmem:[#allocation2 + $0x50] sm:$0xff] %v1366
        %1431 = vst [vmem:[#allocation2 + $0x58] sm:$0xff] %v1367
        %1432 = vst [vmem:[#allocation2 + $0x60] sm:$0xff] %v1368
        %1433 = vst [vmem:[#allocation2 + $0x68] sm:$0xff] %v1369
        %1434 = vst [vmem:[#allocation2 + $0x70] sm:$0xff] %v1370
        %1435 = vst [vmem:[#allocation2 + $0x78] sm:$0xff] %v1371
        %1436 = vst [vmem:[#allocation2 + $0x80] sm:$0xff] %v1372
        %1437 = vst [vmem:[#allocation2 + $0x88] sm:$0xff] %v1373
        %1438 = vst [vmem:[#allocation2 + $0x90] sm:$0xff] %v1374
        %1439 = vst [vmem:[#allocation2 + $0x98] sm:$0xff] %v1375
        %1440 = vst [vmem:[#allocation2 + $0xa0] sm:$0xff] %v1376
        %1441 = vst [vmem:[#allocation2 + $0xa8] sm:$0xff] %v1377
        %1442 = vst [vmem:[#allocation2 + $0xb0] sm:$0xff] %v1378
        %1443 = vst [vmem:[#allocation2 + $0xb8] sm:$0xff] %v1379
        %1444 = vst [vmem:[#allocation2 + $0xc0] sm:$0xff] %v1380
        %1445 = vst [vmem:[#allocation2 + $0xc8] sm:$0xff] %v1381
        %1446 = vst [vmem:[#allocation2 + $0xd0] sm:$0xff] %v1382
        %1447 = vst [vmem:[#allocation2 + $0xd8] sm:$0xff] %v1383
        %1448 = vst [vmem:[#allocation2 + $0xe0] sm:$0xff] %v1384
        %1449 = vst [vmem:[#allocation2 + $0xe8] sm:$0xff] %v1385
        %1450 = vst [vmem:[#allocation2 + $0xf0] sm:$0xff] %v1386
        %1451 = vst [vmem:[#allocation2 + $0xf8] sm:$0xff] %v1387
        %1452 = vst [vmem:[#allocation2 + $0x100] sm:$0xff] %v1388
        %1453 = vst [vmem:[#allocation2 + $0x108] sm:$0xff] %v1389
        %1454 = vst [vmem:[#allocation2 + $0x110] sm:$0xff] %v1390
        %1455 = vst [vmem:[#allocation2 + $0x118] sm:$0xff] %v1391
        %1456 = vst [vmem:[#allocation2 + $0x120] sm:$0xff] %v1392
        %1457 = vst [vmem:[#allocation2 + $0x128] sm:$0xff] %v1393
        %1458 = vst [vmem:[#allocation2 + $0x130] sm:$0xff] %v1394
        %1459 = vst [vmem:[#allocation2 + $0x138] sm:$0xff] %v1395
        %1460 = vst [vmem:[#allocation2 + $0x140] sm:$0xff] %v1396
        %1461 = vst [vmem:[#allocation2 + $0x148] sm:$0xff] %v1397
        %1462 = vst [vmem:[#allocation2 + $0x150] sm:$0xff] %v1398
        %1463 = vst [vmem:[#allocation2 + $0x158] sm:$0xff] %v1399
        %1464 = vst [vmem:[#allocation2 + $0x160] sm:$0xff] %v1400
        %1465 = vst [vmem:[#allocation2 + $0x168] sm:$0xff] %v1401
        %1466 = vst [vmem:[#allocation2 + $0x170] sm:$0xff] %v1402
        %1467 = vst [vmem:[#allocation2 + $0x178] sm:$0xff] %v1403
        %1468 = vst [vmem:[#allocation2 + $0x180] sm:$0xff] %v1404
        %1469 = vst [vmem:[#allocation2 + $0x188] sm:$0xff] %v1405
        %1470 = vst [vmem:[#allocation2 + $0x190] sm:$0xff] %v1406
        %1471 = vst [vmem:[#allocation2 + $0x198] sm:$0xff] %v1407
        %1472 = vst [vmem:[#allocation2 + $0x1a0] sm:$0xff] %v1408
        %1473 = vst [vmem:[#allocation2 + $0x1a8] sm:$0xff] %v1409
        %1474 = vst [vmem:[#allocation2 + $0x1b0] sm:$0xff] %v1410
        %1475 = vst [vmem:[#allocation2 + $0x1b8] sm:$0xff] %v1411
        %1476 = vst [vmem:[#allocation2 + $0x1c0] sm:$0xff] %v1412
        %1477 = vst [vmem:[#allocation2 + $0x1c8] sm:$0xff] %v1413
        %1478 = vst [vmem:[#allocation2 + $0x1d0] sm:$0xff] %v1414
        %1479 = vst [vmem:[#allocation2 + $0x1d8] sm:$0xff] %v1415
        %1480 = vst [vmem:[#allocation2 + $0x1e0] sm:$0xff] %v1416
        %1481 = vst [vmem:[#allocation2 + $0x1e8] sm:$0xff] %v1417
        %1482 = vst [vmem:[#allocation2 + $0x1f0] sm:$0xff] %v1418
        %1483 = vst [vmem:[#allocation2 + $0x1f8] sm:$0xff] %v1419
        %p1484 = scmp.eq.s32.totalorder %s20, 1
        %p1485 = pnand %p1484, %p261
        %p1486 = pneg %p1485
        // Predicated region
        $region37: #{gcn_forward.2} parent=31 // pred_check
          _
        $region38: #{gcn_forward.2} parent=31 // pred_check_branch
          %1488 = sbr.rel (%p1485) target = $region40
        $region39: #{gcn_forward.2} parent=31 // pred_region
          %v1489 = vld [vmem:[#allocation2] sm:$0xff]
          %v1490 = vld [vmem:[#allocation2 + $0x8] sm:$0xff]
          %v1491 = vld [vmem:[#allocation2 + $0x10] sm:$0xff]
          %v1492 = vld [vmem:[#allocation2 + $0x18] sm:$0xff]
          %v1493 = vld [vmem:[#allocation2 + $0x20] sm:$0xff]
          %v1494 = vld [vmem:[#allocation2 + $0x28] sm:$0xff]
          %v1495 = vld [vmem:[#allocation2 + $0x30] sm:$0xff]
          %v1496 = vld [vmem:[#allocation2 + $0x38] sm:$0xff]
          %v1497 = vld [vmem:[#allocation2 + $0x40] sm:$0xff]
          %v1498 = vld [vmem:[#allocation2 + $0x48] sm:$0xff]
          %v1499 = vld [vmem:[#allocation2 + $0x50] sm:$0xff]
          %v1500 = vld [vmem:[#allocation2 + $0x58] sm:$0xff]
          %v1501 = vld [vmem:[#allocation2 + $0x60] sm:$0xff]
          %v1502 = vld [vmem:[#allocation2 + $0x68] sm:$0xff]
          %v1503 = vld [vmem:[#allocation2 + $0x70] sm:$0xff]
          %v1504 = vld [vmem:[#allocation2 + $0x78] sm:$0xff]
          %v1505 = vld [vmem:[#allocation2 + $0x80] sm:$0xff]
          %v1506 = vld [vmem:[#allocation2 + $0x88] sm:$0xff]
          %v1507 = vld [vmem:[#allocation2 + $0x90] sm:$0xff]
          %v1508 = vld [vmem:[#allocation2 + $0x98] sm:$0xff]
          %v1509 = vld [vmem:[#allocation2 + $0xa0] sm:$0xff]
          %v1510 = vld [vmem:[#allocation2 + $0xa8] sm:$0xff]
          %v1511 = vld [vmem:[#allocation2 + $0xb0] sm:$0xff]
          %v1512 = vld [vmem:[#allocation2 + $0xb8] sm:$0xff]
          %v1513 = vld [vmem:[#allocation2 + $0xc0] sm:$0xff]
          %v1514 = vld [vmem:[#allocation2 + $0xc8] sm:$0xff]
          %v1515 = vld [vmem:[#allocation2 + $0xd0] sm:$0xff]
          %v1516 = vld [vmem:[#allocation2 + $0xd8] sm:$0xff]
          %v1517 = vld [vmem:[#allocation2 + $0xe0] sm:$0xff]
          %v1518 = vld [vmem:[#allocation2 + $0xe8] sm:$0xff]
          %v1519 = vld [vmem:[#allocation2 + $0xf0] sm:$0xff]
          %v1520 = vld [vmem:[#allocation2 + $0xf8] sm:$0xff]
          %v1521 = vld [vmem:[#allocation2 + $0x100] sm:$0xff]
          %v1522 = vld [vmem:[#allocation2 + $0x108] sm:$0xff]
          %v1523 = vld [vmem:[#allocation2 + $0x110] sm:$0xff]
          %v1524 = vld [vmem:[#allocation2 + $0x118] sm:$0xff]
          %v1525 = vld [vmem:[#allocation2 + $0x120] sm:$0xff]
          %v1526 = vld [vmem:[#allocation2 + $0x128] sm:$0xff]
          %v1527 = vld [vmem:[#allocation2 + $0x130] sm:$0xff]
          %v1528 = vld [vmem:[#allocation2 + $0x138] sm:$0xff]
          %v1529 = vld [vmem:[#allocation2 + $0x140] sm:$0xff]
          %v1530 = vld [vmem:[#allocation2 + $0x148] sm:$0xff]
          %v1531 = vld [vmem:[#allocation2 + $0x150] sm:$0xff]
          %v1532 = vld [vmem:[#allocation2 + $0x158] sm:$0xff]
          %v1533 = vld [vmem:[#allocation2 + $0x160] sm:$0xff]
          %v1534 = vld [vmem:[#allocation2 + $0x168] sm:$0xff]
          %v1535 = vld [vmem:[#allocation2 + $0x170] sm:$0xff]
          %v1536 = vld [vmem:[#allocation2 + $0x178] sm:$0xff]
          %v1537 = vld [vmem:[#allocation2 + $0x180] sm:$0xff]
          %v1538 = vld [vmem:[#allocation2 + $0x188] sm:$0xff]
          %v1539 = vld [vmem:[#allocation2 + $0x190] sm:$0xff]
          %v1540 = vld [vmem:[#allocation2 + $0x198] sm:$0xff]
          %v1541 = vld [vmem:[#allocation2 + $0x1a0] sm:$0xff]
          %v1542 = vld [vmem:[#allocation2 + $0x1a8] sm:$0xff]
          %v1543 = vld [vmem:[#allocation2 + $0x1b0] sm:$0xff]
          %v1544 = vld [vmem:[#allocation2 + $0x1b8] sm:$0xff]
          %v1545 = vld [vmem:[#allocation2 + $0x1c0] sm:$0xff]
          %v1546 = vld [vmem:[#allocation2 + $0x1c8] sm:$0xff]
          %v1547 = vld [vmem:[#allocation2 + $0x1d0] sm:$0xff]
          %v1548 = vld [vmem:[#allocation2 + $0x1d8] sm:$0xff]
          %v1549 = vld [vmem:[#allocation2 + $0x1e0] sm:$0xff]
          %v1550 = vld [vmem:[#allocation2 + $0x1e8] sm:$0xff]
          %v1551 = vld [vmem:[#allocation2 + $0x1f0] sm:$0xff]
          %v1552 = vld [vmem:[#allocation2 + $0x1f8] sm:$0xff]
          %v1553 = vmax.f32 %v1489, 0.0
          %v1554 = vmax.f32 %v1490, 0.0
          %v1555 = vmax.f32 %v1491, 0.0
          %v1556 = vmax.f32 %v1492, 0.0
          %v1557 = vmax.f32 %v1493, 0.0
          %v1558 = vmax.f32 %v1494, 0.0
          %v1559 = vmax.f32 %v1495, 0.0
          %v1560 = vmax.f32 %v1496, 0.0
          %v1561 = vmax.f32 %v1497, 0.0
          %v1562 = vmax.f32 %v1498, 0.0
          %v1563 = vmax.f32 %v1499, 0.0
          %v1564 = vmax.f32 %v1500, 0.0
          %v1565 = vmax.f32 %v1501, 0.0
          %v1566 = vmax.f32 %v1502, 0.0
          %v1567 = vmax.f32 %v1503, 0.0
          %v1568 = vmax.f32 %v1504, 0.0
          %v1569 = vmax.f32 %v1505, 0.0
          %v1570 = vmax.f32 %v1506, 0.0
          %v1571 = vmax.f32 %v1507, 0.0
          %v1572 = vmax.f32 %v1508, 0.0
          %v1573 = vmax.f32 %v1509, 0.0
          %v1574 = vmax.f32 %v1510, 0.0
          %v1575 = vmax.f32 %v1511, 0.0
          %v1576 = vmax.f32 %v1512, 0.0
          %v1577 = vmax.f32 %v1513, 0.0
          %v1578 = vmax.f32 %v1514, 0.0
          %v1579 = vmax.f32 %v1515, 0.0
          %v1580 = vmax.f32 %v1516, 0.0
          %v1581 = vmax.f32 %v1517, 0.0
          %v1582 = vmax.f32 %v1518, 0.0
          %v1583 = vmax.f32 %v1519, 0.0
          %v1584 = vmax.f32 %v1520, 0.0
          %v1585 = vmax.f32 %v1521, 0.0
          %v1586 = vmax.f32 %v1522, 0.0
          %v1587 = vmax.f32 %v1523, 0.0
          %v1588 = vmax.f32 %v1524, 0.0
          %v1589 = vmax.f32 %v1525, 0.0
          %v1590 = vmax.f32 %v1526, 0.0
          %v1591 = vmax.f32 %v1527, 0.0
          %v1592 = vmax.f32 %v1528, 0.0
          %v1593 = vmax.f32 %v1529, 0.0
          %v1594 = vmax.f32 %v1530, 0.0
          %v1595 = vmax.f32 %v1531, 0.0
          %v1596 = vmax.f32 %v1532, 0.0
          %v1597 = vmax.f32 %v1533, 0.0
          %v1598 = vmax.f32 %v1534, 0.0
          %v1599 = vmax.f32 %v1535, 0.0
          %v1600 = vmax.f32 %v1536, 0.0
          %v1601 = vmax.f32 %v1537, 0.0
          %v1602 = vmax.f32 %v1538, 0.0
          %v1603 = vmax.f32 %v1539, 0.0
          %v1604 = vmax.f32 %v1540, 0.0
          %v1605 = vmax.f32 %v1541, 0.0
          %v1606 = vmax.f32 %v1542, 0.0
          %v1607 = vmax.f32 %v1543, 0.0
          %v1608 = vmax.f32 %v1544, 0.0
          %v1609 = vmax.f32 %v1545, 0.0
          %v1610 = vmax.f32 %v1546, 0.0
          %v1611 = vmax.f32 %v1547, 0.0
          %v1612 = vmax.f32 %v1548, 0.0
          %v1613 = vmax.f32 %v1549, 0.0
          %v1614 = vmax.f32 %v1550, 0.0
          %v1615 = vmax.f32 %v1551, 0.0
          %v1616 = vmax.f32 %v1552, 0.0
          %v1617 = vpack.c.bf16 %v1555, %v1553
          %v1618 = vpack.c.bf16 %v1556, %v1554
          %v1619 = vpack.c.bf16 %v1559, %v1557
          %v1620 = vpack.c.bf16 %v1560, %v1558
          %v1621 = vpack.c.bf16 %v1563, %v1561
          %v1622 = vpack.c.bf16 %v1564, %v1562
          %v1623 = vpack.c.bf16 %v1567, %v1565
          %v1624 = vpack.c.bf16 %v1568, %v1566
          %v1625 = vpack.c.bf16 %v1571, %v1569
          %v1626 = vpack.c.bf16 %v1572, %v1570
          %v1627 = vpack.c.bf16 %v1575, %v1573
          %v1628 = vpack.c.bf16 %v1576, %v1574
          %v1629 = vpack.c.bf16 %v1579, %v1577
          %v1630 = vpack.c.bf16 %v1580, %v1578
          %v1631 = vpack.c.bf16 %v1583, %v1581
          %v1632 = vpack.c.bf16 %v1584, %v1582
          %v1633 = vpack.c.bf16 %v1587, %v1585
          %v1634 = vpack.c.bf16 %v1588, %v1586
          %v1635 = vpack.c.bf16 %v1591, %v1589
          %v1636 = vpack.c.bf16 %v1592, %v1590
          %v1637 = vpack.c.bf16 %v1595, %v1593
          %v1638 = vpack.c.bf16 %v1596, %v1594
          %v1639 = vpack.c.bf16 %v1599, %v1597
          %v1640 = vpack.c.bf16 %v1600, %v1598
          %v1641 = vpack.c.bf16 %v1603, %v1601
          %v1642 = vpack.c.bf16 %v1604, %v1602
          %v1643 = vpack.c.bf16 %v1607, %v1605
          %v1644 = vpack.c.bf16 %v1608, %v1606
          %v1645 = vpack.c.bf16 %v1611, %v1609
          %v1646 = vpack.c.bf16 %v1612, %v1610
          %v1647 = vpack.c.bf16 %v1615, %v1613
          %v1648 = vpack.c.bf16 %v1616, %v1614
          %v1649 = vld [vmem:[%s2] sm:$0xf]
          %v1650 = vld [vmem:[%s2 + $0x4] sm:$0xf]
          %v1651 = vld [vmem:[%s2 + $0x8] sm:$0xf]
          %v1652 = vld [vmem:[%s2 + $0xc] sm:$0xf]
          %v1653 = vld [vmem:[%s2 + $0x10] sm:$0xf]
          %v1654 = vld [vmem:[%s2 + $0x14] sm:$0xf]
          %v1655 = vld [vmem:[%s2 + $0x18] sm:$0xf]
          %v1656 = vld [vmem:[%s2 + $0x1c] sm:$0xf]
          %v1657 = vld [vmem:[%s2 + $0x20] sm:$0xf]
          %v1658 = vld [vmem:[%s2 + $0x24] sm:$0xf]
          %v1659 = vld [vmem:[%s2 + $0x28] sm:$0xf]
          %v1660 = vld [vmem:[%s2 + $0x2c] sm:$0xf]
          %v1661 = vld [vmem:[%s2 + $0x30] sm:$0xf]
          %v1662 = vld [vmem:[%s2 + $0x34] sm:$0xf]
          %v1663 = vld [vmem:[%s2 + $0x38] sm:$0xf]
          %v1664 = vld [vmem:[%s2 + $0x3c] sm:$0xf]
          %v1665 = vld [vmem:[%s2 + $0x40] sm:$0xf]
          %v1666 = vld [vmem:[%s2 + $0x44] sm:$0xf]
          %v1667 = vld [vmem:[%s2 + $0x48] sm:$0xf]
          %v1668 = vld [vmem:[%s2 + $0x4c] sm:$0xf]
          %v1669 = vld [vmem:[%s2 + $0x50] sm:$0xf]
          %v1670 = vld [vmem:[%s2 + $0x54] sm:$0xf]
          %v1671 = vld [vmem:[%s2 + $0x58] sm:$0xf]
          %v1672 = vld [vmem:[%s2 + $0x5c] sm:$0xf]
          %v1673 = vld [vmem:[%s2 + $0x60] sm:$0xf]
          %v1674 = vld [vmem:[%s2 + $0x64] sm:$0xf]
          %v1675 = vld [vmem:[%s2 + $0x68] sm:$0xf]
          %v1676 = vld [vmem:[%s2 + $0x6c] sm:$0xf]
          %v1677 = vld [vmem:[%s2 + $0x70] sm:$0xf]
          %v1678 = vld [vmem:[%s2 + $0x74] sm:$0xf]
          %v1679 = vld [vmem:[%s2 + $0x78] sm:$0xf]
          %v1680 = vld [vmem:[%s2 + $0x7c] sm:$0xf]
          %v1713 = vunpack.c.l.b16 %v1649
          %v1714 = vunpack.c.l.b16 %v1650
          %v1715 = vunpack.c.l.b16 %v1651
          %v1716 = vunpack.c.l.b16 %v1652
          %v1717 = vunpack.c.l.b16 %v1653
          %v1718 = vunpack.c.l.b16 %v1654
          %v1719 = vunpack.c.l.b16 %v1655
          %v1720 = vunpack.c.l.b16 %v1656
          %v1721 = vunpack.c.l.b16 %v1657
          %v1722 = vunpack.c.l.b16 %v1658
          %v1723 = vunpack.c.l.b16 %v1659
          %v1724 = vunpack.c.l.b16 %v1660
          %v1725 = vunpack.c.l.b16 %v1661
          %v1726 = vunpack.c.l.b16 %v1662
          %v1727 = vunpack.c.l.b16 %v1663
          %v1728 = vunpack.c.l.b16 %v1664
          %v1729 = vunpack.c.l.b16 %v1665
          %v1730 = vunpack.c.l.b16 %v1666
          %v1731 = vunpack.c.l.b16 %v1667
          %v1732 = vunpack.c.l.b16 %v1668
          %v1733 = vunpack.c.l.b16 %v1669
          %v1734 = vunpack.c.l.b16 %v1670
          %v1735 = vunpack.c.l.b16 %v1671
          %v1736 = vunpack.c.l.b16 %v1672
          %v1737 = vunpack.c.l.b16 %v1673
          %v1738 = vunpack.c.l.b16 %v1674
          %v1739 = vunpack.c.l.b16 %v1675
          %v1740 = vunpack.c.l.b16 %v1676
          %v1741 = vunpack.c.l.b16 %v1677
          %v1742 = vunpack.c.l.b16 %v1678
          %v1743 = vunpack.c.l.b16 %v1679
          %v1744 = vunpack.c.l.b16 %v1680
          %v1745 = vpack.c.b16 %v1714, %v1713
          %v1746 = vpack.c.b16 %v1716, %v1715
          %v1747 = vpack.c.b16 %v1718, %v1717
          %v1748 = vpack.c.b16 %v1720, %v1719
          %v1749 = vpack.c.b16 %v1722, %v1721
          %v1750 = vpack.c.b16 %v1724, %v1723
          %v1751 = vpack.c.b16 %v1726, %v1725
          %v1752 = vpack.c.b16 %v1728, %v1727
          %v1753 = vpack.c.b16 %v1730, %v1729
          %v1754 = vpack.c.b16 %v1732, %v1731
          %v1755 = vpack.c.b16 %v1734, %v1733
          %v1756 = vpack.c.b16 %v1736, %v1735
          %v1757 = vpack.c.b16 %v1738, %v1737
          %v1758 = vpack.c.b16 %v1740, %v1739
          %v1759 = vpack.c.b16 %v1742, %v1741
          %v1760 = vpack.c.b16 %v1744, %v1743
          %1777 = vmatprep.subr.bf16.mxu0 0
          %1778 = vmatpush1.bf16.msra.mxu0 %v1745
          %1779 = vmatprep.subr.bf16.mxu0 0
          %1780 = vmatpush1.bf16.msra.mxu0 %v1746
          %1781 = vmatprep.subr.bf16.mxu0 0
          %1782 = vmatpush1.bf16.msra.mxu0 %v1747
          %1783 = vmatprep.subr.bf16.mxu0 0
          %1784 = vmatpush1.bf16.msra.mxu0 %v1748
          %1785 = vmatprep.subr.bf16.mxu0 0
          %1786 = vmatpush1.bf16.msra.mxu0 %v1749
          %1787 = vmatprep.subr.bf16.mxu0 0
          %1788 = vmatpush1.bf16.msra.mxu0 %v1750
          %1789 = vmatprep.subr.bf16.mxu0 0
          %1790 = vmatpush1.bf16.msra.mxu0 %v1751
          %1791 = vmatprep.subr.bf16.mxu0 0
          %1792 = vmatpush1.bf16.msra.mxu0 %v1752
          %1793 = vmatprep.subr.bf16.mxu0 0
          %1794 = vmatpush1.bf16.msra.mxu0 %v1753
          %1795 = vmatprep.subr.bf16.mxu0 0
          %1796 = vmatpush1.bf16.msra.mxu0 %v1754
          %1797 = vmatprep.subr.bf16.mxu0 0
          %1798 = vmatpush1.bf16.msra.mxu0 %v1755
          %1799 = vmatprep.subr.bf16.mxu0 0
          %1800 = vmatpush1.bf16.msra.mxu0 %v1756
          %1801 = vmatprep.subr.bf16.mxu0 0
          %1802 = vmatpush1.bf16.msra.mxu0 %v1757
          %1803 = vmatprep.subr.bf16.mxu0 0
          %1804 = vmatpush1.bf16.msra.mxu0 %v1758
          %1805 = vmatprep.subr.bf16.mxu0 0
          %1806 = vmatpush1.bf16.msra.mxu0 %v1759
          %1807 = vmatprep.subr.bf16.mxu0 0
          %1808 = vmatpush1.bf16.msra.mxu0 %v1760
          %1809 = vmatprep.mubr.bf16.mxu0 %v1618
          %1810 = vmatmul.mubr.bf16.gmra.mrb[0].mxu0 %v1617
          %v1811 = vpop.f32.mrb[0].mxu0
          %v1812 = vadd.f32 0.0, %v1811
          %v1813 = vpop.f32.mrb[0].mxu0
          %v1814 = vpop.f32.mrb[0].mxu0
          %v1815 = vadd.f32 0.0, %v1814
          %v1816 = vpop.f32.mrb[0].mxu0
          %1817 = vmatprep.mubr.bf16.mxu0 %v1620
          %1818 = vmatmul.mubr.bf16.gmra.mrb[0].mxu0 %v1619
          %v1819 = vpop.f32.mrb[0].mxu0
          %v1820 = vadd.f32 0.0, %v1819
          %v1821 = vpop.f32.mrb[0].mxu0
          %v1822 = vpop.f32.mrb[0].mxu0
          %v1823 = vadd.f32 0.0, %v1822
          %v1824 = vpop.f32.mrb[0].mxu0
          %1825 = vmatprep.mubr.bf16.mxu0 %v1622
          %1826 = vmatmul.mubr.bf16.gmra.mrb[0].mxu0 %v1621
          %v1827 = vpop.f32.mrb[0].mxu0
          %v1828 = vadd.f32 0.0, %v1827
          %v1829 = vpop.f32.mrb[0].mxu0
          %v1830 = vpop.f32.mrb[0].mxu0
          %v1831 = vadd.f32 0.0, %v1830
          %v1832 = vpop.f32.mrb[0].mxu0
          %1833 = vmatprep.mubr.bf16.mxu0 %v1624
          %1834 = vmatmul.mubr.bf16.gmra.mrb[0].mxu0 %v1623
          %v1835 = vpop.f32.mrb[0].mxu0
          %v1836 = vadd.f32 0.0, %v1835
          %v1837 = vpop.f32.mrb[0].mxu0
          %v1838 = vpop.f32.mrb[0].mxu0
          %v1839 = vadd.f32 0.0, %v1838
          %v1840 = vpop.f32.mrb[0].mxu0
          %1841 = vmatprep.mubr.bf16.mxu0 %v1626
          %1842 = vmatmul.mubr.bf16.gmra.mrb[0].mxu0 %v1625
          %v1843 = vpop.f32.mrb[0].mxu0
          %v1844 = vadd.f32 0.0, %v1843
          %v1845 = vpop.f32.mrb[0].mxu0
          %v1846 = vpop.f32.mrb[0].mxu0
          %v1847 = vadd.f32 0.0, %v1846
          %v1848 = vpop.f32.mrb[0].mxu0
          %1849 = vmatprep.mubr.bf16.mxu0 %v1628
          %1850 = vmatmul.mubr.bf16.gmra.mrb[0].mxu0 %v1627
          %v1851 = vpop.f32.mrb[0].mxu0
          %v1852 = vadd.f32 0.0, %v1851
          %v1853 = vpop.f32.mrb[0].mxu0
          %v1854 = vpop.f32.mrb[0].mxu0
          %v1855 = vadd.f32 0.0, %v1854
          %v1856 = vpop.f32.mrb[0].mxu0
          %1857 = vmatprep.mubr.bf16.mxu0 %v1630
          %1858 = vmatmul.mubr.bf16.gmra.mrb[0].mxu0 %v1629
          %v1859 = vpop.f32.mrb[0].mxu0
          %v1860 = vadd.f32 0.0, %v1859
          %v1861 = vpop.f32.mrb[0].mxu0
          %v1862 = vpop.f32.mrb[0].mxu0
          %v1863 = vadd.f32 0.0, %v1862
          %v1864 = vpop.f32.mrb[0].mxu0
          %1865 = vmatprep.mubr.bf16.mxu0 %v1632
          %1866 = vmatmul.mubr.bf16.gmra.mrb[0].mxu0 %v1631
          %v1867 = vpop.f32.mrb[0].mxu0
          %v1868 = vadd.f32 0.0, %v1867
          %v1869 = vpop.f32.mrb[0].mxu0
          %v1870 = vpop.f32.mrb[0].mxu0
          %v1871 = vadd.f32 0.0, %v1870
          %v1872 = vpop.f32.mrb[0].mxu0
          %1873 = vmatprep.mubr.bf16.mxu0 %v1634
          %1874 = vmatmul.mubr.bf16.gmra.mrb[0].mxu0 %v1633
          %v1875 = vpop.f32.mrb[0].mxu0
          %v1876 = vadd.f32 0.0, %v1875
          %v1877 = vpop.f32.mrb[0].mxu0
          %v1878 = vpop.f32.mrb[0].mxu0
          %v1879 = vadd.f32 0.0, %v1878
          %v1880 = vpop.f32.mrb[0].mxu0
          %1881 = vmatprep.mubr.bf16.mxu0 %v1636
          %1882 = vmatmul.mubr.bf16.gmra.mrb[0].mxu0 %v1635
          %v1883 = vpop.f32.mrb[0].mxu0
          %v1884 = vadd.f32 0.0, %v1883
          %v1885 = vpop.f32.mrb[0].mxu0
          %v1886 = vpop.f32.mrb[0].mxu0
          %v1887 = vadd.f32 0.0, %v1886
          %v1888 = vpop.f32.mrb[0].mxu0
          %1889 = vmatprep.mubr.bf16.mxu0 %v1638
          %1890 = vmatmul.mubr.bf16.gmra.mrb[0].mxu0 %v1637
          %v1891 = vpop.f32.mrb[0].mxu0
          %v1892 = vadd.f32 0.0, %v1891
          %v1893 = vpop.f32.mrb[0].mxu0
          %v1894 = vpop.f32.mrb[0].mxu0
          %v1895 = vadd.f32 0.0, %v1894
          %v1896 = vpop.f32.mrb[0].mxu0
          %1897 = vmatprep.mubr.bf16.mxu0 %v1640
          %1898 = vmatmul.mubr.bf16.gmra.mrb[0].mxu0 %v1639
          %v1899 = vpop.f32.mrb[0].mxu0
          %v1900 = vadd.f32 0.0, %v1899
          %v1901 = vpop.f32.mrb[0].mxu0
          %v1902 = vpop.f32.mrb[0].mxu0
          %v1903 = vadd.f32 0.0, %v1902
          %v1904 = vpop.f32.mrb[0].mxu0
          %1905 = vmatprep.mubr.bf16.mxu0 %v1642
          %1906 = vmatmul.mubr.bf16.gmra.mrb[0].mxu0 %v1641
          %v1907 = vpop.f32.mrb[0].mxu0
          %v1908 = vadd.f32 0.0, %v1907
          %v1909 = vpop.f32.mrb[0].mxu0
          %v1910 = vpop.f32.mrb[0].mxu0
          %v1911 = vadd.f32 0.0, %v1910
          %v1912 = vpop.f32.mrb[0].mxu0
          %1913 = vmatprep.mubr.bf16.mxu0 %v1644
          %1914 = vmatmul.mubr.bf16.gmra.mrb[0].mxu0 %v1643
          %v1915 = vpop.f32.mrb[0].mxu0
          %v1916 = vadd.f32 0.0, %v1915
          %v1917 = vpop.f32.mrb[0].mxu0
          %v1918 = vpop.f32.mrb[0].mxu0
          %v1919 = vadd.f32 0.0, %v1918
          %v1920 = vpop.f32.mrb[0].mxu0
          %1921 = vmatprep.mubr.bf16.mxu0 %v1646
          %1922 = vmatmul.mubr.bf16.gmra.mrb[0].mxu0 %v1645
          %v1923 = vpop.f32.mrb[0].mxu0
          %v1924 = vadd.f32 0.0, %v1923
          %v1925 = vpop.f32.mrb[0].mxu0
          %v1926 = vpop.f32.mrb[0].mxu0
          %v1927 = vadd.f32 0.0, %v1926
          %v1928 = vpop.f32.mrb[0].mxu0
          %1929 = vmatprep.mubr.bf16.mxu0 %v1648
          %1930 = vmatmul.mubr.bf16.gmra.mrb[0].mxu0 %v1647
          %v1931 = vpop.f32.mrb[0].mxu0
          %v1932 = vadd.f32 0.0, %v1931
          %v1933 = vpop.f32.mrb[0].mxu0
          %v1934 = vpop.f32.mrb[0].mxu0
          %v1935 = vadd.f32 0.0, %v1934
          %v1936 = vpop.f32.mrb[0].mxu0
          %1937 = vdwg.mxu0
          %v1938 = vpack.c.bf16 %v1815, %v1812
          %v1939 = vpack.c.bf16 %v1823, %v1820
          %v1940 = vpack.c.bf16 %v1831, %v1828
          %v1941 = vpack.c.bf16 %v1839, %v1836
          %v1942 = vpack.c.bf16 %v1847, %v1844
          %v1943 = vpack.c.bf16 %v1855, %v1852
          %v1944 = vpack.c.bf16 %v1863, %v1860
          %v1945 = vpack.c.bf16 %v1871, %v1868
          %v1946 = vpack.c.bf16 %v1879, %v1876
          %v1947 = vpack.c.bf16 %v1887, %v1884
          %v1948 = vpack.c.bf16 %v1895, %v1892
          %v1949 = vpack.c.bf16 %v1903, %v1900
          %v1950 = vpack.c.bf16 %v1911, %v1908
          %v1951 = vpack.c.bf16 %v1919, %v1916
          %v1952 = vpack.c.bf16 %v1927, %v1924
          %v1953 = vpack.c.bf16 %v1935, %v1932
          %v1970 = vunpack.c.l.b16 %v1938
          %v1971 = vunpack.c.h.b16 %v1938
          %v1972 = vunpack.c.l.b16 %v1939
          %v1973 = vunpack.c.h.b16 %v1939
          %v1974 = vunpack.c.l.b16 %v1940
          %v1975 = vunpack.c.h.b16 %v1940
          %v1976 = vunpack.c.l.b16 %v1941
          %v1977 = vunpack.c.h.b16 %v1941
          %v1978 = vunpack.c.l.b16 %v1942
          %v1979 = vunpack.c.h.b16 %v1942
          %v1980 = vunpack.c.l.b16 %v1943
          %v1981 = vunpack.c.h.b16 %v1943
          %v1982 = vunpack.c.l.b16 %v1944
          %v1983 = vunpack.c.h.b16 %v1944
          %v1984 = vunpack.c.l.b16 %v1945
          %v1985 = vunpack.c.h.b16 %v1945
          %v1986 = vunpack.c.l.b16 %v1946
          %v1987 = vunpack.c.h.b16 %v1946
          %v1988 = vunpack.c.l.b16 %v1947
          %v1989 = vunpack.c.h.b16 %v1947
          %v1990 = vunpack.c.l.b16 %v1948
          %v1991 = vunpack.c.h.b16 %v1948
          %v1992 = vunpack.c.l.b16 %v1949
          %v1993 = vunpack.c.h.b16 %v1949
          %v1994 = vunpack.c.l.b16 %v1950
          %v1995 = vunpack.c.h.b16 %v1950
          %v1996 = vunpack.c.l.b16 %v1951
          %v1997 = vunpack.c.h.b16 %v1951
          %v1998 = vunpack.c.l.b16 %v1952
          %v1999 = vunpack.c.h.b16 %v1952
          %v2000 = vunpack.c.l.b16 %v1953
          %v2001 = vunpack.c.h.b16 %v1953
          %v2002 = vpack.c.b16 %v1970, %v1970
          %v2003 = vpack.c.b16 %v1971, %v1971
          %v2004 = vpack.c.b16 %v1972, %v1972
          %v2005 = vpack.c.b16 %v1973, %v1973
          %v2006 = vpack.c.b16 %v1974, %v1974
          %v2007 = vpack.c.b16 %v1975, %v1975
          %v2008 = vpack.c.b16 %v1976, %v1976
          %v2009 = vpack.c.b16 %v1977, %v1977
          %v2010 = vpack.c.b16 %v1978, %v1978
          %v2011 = vpack.c.b16 %v1979, %v1979
          %v2012 = vpack.c.b16 %v1980, %v1980
          %v2013 = vpack.c.b16 %v1981, %v1981
          %v2014 = vpack.c.b16 %v1982, %v1982
          %v2015 = vpack.c.b16 %v1983, %v1983
          %v2016 = vpack.c.b16 %v1984, %v1984
          %v2017 = vpack.c.b16 %v1985, %v1985
          %v2018 = vpack.c.b16 %v1986, %v1986
          %v2019 = vpack.c.b16 %v1987, %v1987
          %v2020 = vpack.c.b16 %v1988, %v1988
          %v2021 = vpack.c.b16 %v1989, %v1989
          %v2022 = vpack.c.b16 %v1990, %v1990
          %v2023 = vpack.c.b16 %v1991, %v1991
          %v2024 = vpack.c.b16 %v1992, %v1992
          %v2025 = vpack.c.b16 %v1993, %v1993
          %v2026 = vpack.c.b16 %v1994, %v1994
          %v2027 = vpack.c.b16 %v1995, %v1995
          %v2028 = vpack.c.b16 %v1996, %v1996
          %v2029 = vpack.c.b16 %v1997, %v1997
          %v2030 = vpack.c.b16 %v1998, %v1998
          %v2031 = vpack.c.b16 %v1999, %v1999
          %v2032 = vpack.c.b16 %v2000, %v2000
          %v2033 = vpack.c.b16 %v2001, %v2001
          %2066 = vst [vmem:[%s230] sm:$0xf] %v2002
          %2067 = vst [vmem:[%s230 + $0x4] sm:$0xf] %v2003
          %2068 = vst [vmem:[%s230 + $0x8] sm:$0xf] %v2004
          %2069 = vst [vmem:[%s230 + $0xc] sm:$0xf] %v2005
          %2070 = vst [vmem:[%s230 + $0x10] sm:$0xf] %v2006
          %2071 = vst [vmem:[%s230 + $0x14] sm:$0xf] %v2007
          %2072 = vst [vmem:[%s230 + $0x18] sm:$0xf] %v2008
          %2073 = vst [vmem:[%s230 + $0x1c] sm:$0xf] %v2009
          %2074 = vst [vmem:[%s230 + $0x20] sm:$0xf] %v2010
          %2075 = vst [vmem:[%s230 + $0x24] sm:$0xf] %v2011
          %2076 = vst [vmem:[%s230 + $0x28] sm:$0xf] %v2012
          %2077 = vst [vmem:[%s230 + $0x2c] sm:$0xf] %v2013
          %2078 = vst [vmem:[%s230 + $0x30] sm:$0xf] %v2014
          %2079 = vst [vmem:[%s230 + $0x34] sm:$0xf] %v2015
          %2080 = vst [vmem:[%s230 + $0x38] sm:$0xf] %v2016
          %2081 = vst [vmem:[%s230 + $0x3c] sm:$0xf] %v2017
          %2082 = vst [vmem:[%s230 + $0x40] sm:$0xf] %v2018
          %2083 = vst [vmem:[%s230 + $0x44] sm:$0xf] %v2019
          %2084 = vst [vmem:[%s230 + $0x48] sm:$0xf] %v2020
          %2085 = vst [vmem:[%s230 + $0x4c] sm:$0xf] %v2021
          %2086 = vst [vmem:[%s230 + $0x50] sm:$0xf] %v2022
          %2087 = vst [vmem:[%s230 + $0x54] sm:$0xf] %v2023
          %2088 = vst [vmem:[%s230 + $0x58] sm:$0xf] %v2024
          %2089 = vst [vmem:[%s230 + $0x5c] sm:$0xf] %v2025
          %2090 = vst [vmem:[%s230 + $0x60] sm:$0xf] %v2026
          %2091 = vst [vmem:[%s230 + $0x64] sm:$0xf] %v2027
          %2092 = vst [vmem:[%s230 + $0x68] sm:$0xf] %v2028
          %2093 = vst [vmem:[%s230 + $0x6c] sm:$0xf] %v2029
          %2094 = vst [vmem:[%s230 + $0x70] sm:$0xf] %v2030
          %2095 = vst [vmem:[%s230 + $0x74] sm:$0xf] %v2031
          %2096 = vst [vmem:[%s230 + $0x78] sm:$0xf] %v2032
          %2097 = vst [vmem:[%s230 + $0x7c] sm:$0xf] %v2033
          %s2098 = scalar_lea.vmem %s2, 128
          %v2099 = vld [vmem:[%s2098] sm:$0xf]
          %v2100 = vld [vmem:[%s2098 + $0x4] sm:$0xf]
          %v2101 = vld [vmem:[%s2098 + $0x8] sm:$0xf]
          %v2102 = vld [vmem:[%s2098 + $0xc] sm:$0xf]
          %v2103 = vld [vmem:[%s2098 + $0x10] sm:$0xf]
          %v2104 = vld [vmem:[%s2098 + $0x14] sm:$0xf]
          %v2105 = vld [vmem:[%s2098 + $0x18] sm:$0xf]
          %v2106 = vld [vmem:[%s2098 + $0x1c] sm:$0xf]
          %v2107 = vld [vmem:[%s2098 + $0x20] sm:$0xf]
          %v2108 = vld [vmem:[%s2098 + $0x24] sm:$0xf]
          %v2109 = vld [vmem:[%s2098 + $0x28] sm:$0xf]
          %v2110 = vld [vmem:[%s2098 + $0x2c] sm:$0xf]
          %v2111 = vld [vmem:[%s2098 + $0x30] sm:$0xf]
          %v2112 = vld [vmem:[%s2098 + $0x34] sm:$0xf]
          %v2113 = vld [vmem:[%s2098 + $0x38] sm:$0xf]
          %v2114 = vld [vmem:[%s2098 + $0x3c] sm:$0xf]
          %v2115 = vld [vmem:[%s2098 + $0x40] sm:$0xf]
          %v2116 = vld [vmem:[%s2098 + $0x44] sm:$0xf]
          %v2117 = vld [vmem:[%s2098 + $0x48] sm:$0xf]
          %v2118 = vld [vmem:[%s2098 + $0x4c] sm:$0xf]
          %v2119 = vld [vmem:[%s2098 + $0x50] sm:$0xf]
          %v2120 = vld [vmem:[%s2098 + $0x54] sm:$0xf]
          %v2121 = vld [vmem:[%s2098 + $0x58] sm:$0xf]
          %v2122 = vld [vmem:[%s2098 + $0x5c] sm:$0xf]
          %v2123 = vld [vmem:[%s2098 + $0x60] sm:$0xf]
          %v2124 = vld [vmem:[%s2098 + $0x64] sm:$0xf]
          %v2125 = vld [vmem:[%s2098 + $0x68] sm:$0xf]
          %v2126 = vld [vmem:[%s2098 + $0x6c] sm:$0xf]
          %v2127 = vld [vmem:[%s2098 + $0x70] sm:$0xf]
          %v2128 = vld [vmem:[%s2098 + $0x74] sm:$0xf]
          %v2129 = vld [vmem:[%s2098 + $0x78] sm:$0xf]
          %v2130 = vld [vmem:[%s2098 + $0x7c] sm:$0xf]
          %v2163 = vunpack.c.l.b16 %v2099
          %v2164 = vunpack.c.l.b16 %v2100
          %v2165 = vunpack.c.l.b16 %v2101
          %v2166 = vunpack.c.l.b16 %v2102
          %v2167 = vunpack.c.l.b16 %v2103
          %v2168 = vunpack.c.l.b16 %v2104
          %v2169 = vunpack.c.l.b16 %v2105
          %v2170 = vunpack.c.l.b16 %v2106
          %v2171 = vunpack.c.l.b16 %v2107
          %v2172 = vunpack.c.l.b16 %v2108
          %v2173 = vunpack.c.l.b16 %v2109
          %v2174 = vunpack.c.l.b16 %v2110
          %v2175 = vunpack.c.l.b16 %v2111
          %v2176 = vunpack.c.l.b16 %v2112
          %v2177 = vunpack.c.l.b16 %v2113
          %v2178 = vunpack.c.l.b16 %v2114
          %v2179 = vunpack.c.l.b16 %v2115
          %v2180 = vunpack.c.l.b16 %v2116
          %v2181 = vunpack.c.l.b16 %v2117
          %v2182 = vunpack.c.l.b16 %v2118
          %v2183 = vunpack.c.l.b16 %v2119
          %v2184 = vunpack.c.l.b16 %v2120
          %v2185 = vunpack.c.l.b16 %v2121
          %v2186 = vunpack.c.l.b16 %v2122
          %v2187 = vunpack.c.l.b16 %v2123
          %v2188 = vunpack.c.l.b16 %v2124
          %v2189 = vunpack.c.l.b16 %v2125
          %v2190 = vunpack.c.l.b16 %v2126
          %v2191 = vunpack.c.l.b16 %v2127
          %v2192 = vunpack.c.l.b16 %v2128
          %v2193 = vunpack.c.l.b16 %v2129
          %v2194 = vunpack.c.l.b16 %v2130
          %v2195 = vpack.c.b16 %v2164, %v2163
          %v2196 = vpack.c.b16 %v2166, %v2165
          %v2197 = vpack.c.b16 %v2168, %v2167
          %v2198 = vpack.c.b16 %v2170, %v2169
          %v2199 = vpack.c.b16 %v2172, %v2171
          %v2200 = vpack.c.b16 %v2174, %v2173
          %v2201 = vpack.c.b16 %v2176, %v2175
          %v2202 = vpack.c.b16 %v2178, %v2177
          %v2203 = vpack.c.b16 %v2180, %v2179
          %v2204 = vpack.c.b16 %v2182, %v2181
          %v2205 = vpack.c.b16 %v2184, %v2183
          %v2206 = vpack.c.b16 %v2186, %v2185
          %v2207 = vpack.c.b16 %v2188, %v2187
          %v2208 = vpack.c.b16 %v2190, %v2189
          %v2209 = vpack.c.b16 %v2192, %v2191
          %v2210 = vpack.c.b16 %v2194, %v2193
          %2227 = vmatprep.subr.bf16.mxu0 0
          %2228 = vmatpush1.bf16.msra.mxu0 %v2195
          %2229 = vmatprep.subr.bf16.mxu0 0
          %2230 = vmatpush1.bf16.msra.mxu0 %v2196
          %2231 = vmatprep.subr.bf16.mxu0 0
          %2232 = vmatpush1.bf16.msra.mxu0 %v2197
          %2233 = vmatprep.subr.bf16.mxu0 0
          %2234 = vmatpush1.bf16.msra.mxu0 %v2198
          %2235 = vmatprep.subr.bf16.mxu0 0
          %2236 = vmatpush1.bf16.msra.mxu0 %v2199
          %2237 = vmatprep.subr.bf16.mxu0 0
          %2238 = vmatpush1.bf16.msra.mxu0 %v2200
          %2239 = vmatprep.subr.bf16.mxu0 0
          %2240 = vmatpush1.bf16.msra.mxu0 %v2201
          %2241 = vmatprep.subr.bf16.mxu0 0
          %2242 = vmatpush1.bf16.msra.mxu0 %v2202
          %2243 = vmatprep.subr.bf16.mxu0 0
          %2244 = vmatpush1.bf16.msra.mxu0 %v2203
          %2245 = vmatprep.subr.bf16.mxu0 0
          %2246 = vmatpush1.bf16.msra.mxu0 %v2204
          %2247 = vmatprep.subr.bf16.mxu0 0
          %2248 = vmatpush1.bf16.msra.mxu0 %v2205
          %2249 = vmatprep.subr.bf16.mxu0 0
          %2250 = vmatpush1.bf16.msra.mxu0 %v2206
          %2251 = vmatprep.subr.bf16.mxu0 0
          %2252 = vmatpush1.bf16.msra.mxu0 %v2207
          %2253 = vmatprep.subr.bf16.mxu0 0
          %2254 = vmatpush1.bf16.msra.mxu0 %v2208
          %2255 = vmatprep.subr.bf16.mxu0 0
          %2256 = vmatpush1.bf16.msra.mxu0 %v2209
          %2257 = vmatprep.subr.bf16.mxu0 0
          %2258 = vmatpush1.bf16.msra.mxu0 %v2210
          %2259 = vmatprep.mubr.bf16.mxu0 %v1618
          %2260 = vmatmul.mubr.bf16.gmra.mrb[0].mxu0 %v1617
          %v2261 = vpop.f32.mrb[0].mxu0
          %v2262 = vadd.f32 0.0, %v2261
          %v2263 = vpop.f32.mrb[0].mxu0
          %v2264 = vpop.f32.mrb[0].mxu0
          %v2265 = vadd.f32 0.0, %v2264
          %v2266 = vpop.f32.mrb[0].mxu0
          %2267 = vmatprep.mubr.bf16.mxu0 %v1620
          %2268 = vmatmul.mubr.bf16.gmra.mrb[0].mxu0 %v1619
          %v2269 = vpop.f32.mrb[0].mxu0
          %v2270 = vadd.f32 0.0, %v2269
          %v2271 = vpop.f32.mrb[0].mxu0
          %v2272 = vpop.f32.mrb[0].mxu0
          %v2273 = vadd.f32 0.0, %v2272
          %v2274 = vpop.f32.mrb[0].mxu0
          %2275 = vmatprep.mubr.bf16.mxu0 %v1622
          %2276 = vmatmul.mubr.bf16.gmra.mrb[0].mxu0 %v1621
          %v2277 = vpop.f32.mrb[0].mxu0
          %v2278 = vadd.f32 0.0, %v2277
          %v2279 = vpop.f32.mrb[0].mxu0
          %v2280 = vpop.f32.mrb[0].mxu0
          %v2281 = vadd.f32 0.0, %v2280
          %v2282 = vpop.f32.mrb[0].mxu0
          %2283 = vmatprep.mubr.bf16.mxu0 %v1624
          %2284 = vmatmul.mubr.bf16.gmra.mrb[0].mxu0 %v1623
          %v2285 = vpop.f32.mrb[0].mxu0
          %v2286 = vadd.f32 0.0, %v2285
          %v2287 = vpop.f32.mrb[0].mxu0
          %v2288 = vpop.f32.mrb[0].mxu0
          %v2289 = vadd.f32 0.0, %v2288
          %v2290 = vpop.f32.mrb[0].mxu0
          %2291 = vmatprep.mubr.bf16.mxu0 %v1626
          %2292 = vmatmul.mubr.bf16.gmra.mrb[0].mxu0 %v1625
          %v2293 = vpop.f32.mrb[0].mxu0
          %v2294 = vadd.f32 0.0, %v2293
          %v2295 = vpop.f32.mrb[0].mxu0
          %v2296 = vpop.f32.mrb[0].mxu0
          %v2297 = vadd.f32 0.0, %v2296
          %v2298 = vpop.f32.mrb[0].mxu0
          %2299 = vmatprep.mubr.bf16.mxu0 %v1628
          %2300 = vmatmul.mubr.bf16.gmra.mrb[0].mxu0 %v1627
          %v2301 = vpop.f32.mrb[0].mxu0
          %v2302 = vadd.f32 0.0, %v2301
          %v2303 = vpop.f32.mrb[0].mxu0
          %v2304 = vpop.f32.mrb[0].mxu0
          %v2305 = vadd.f32 0.0, %v2304
          %v2306 = vpop.f32.mrb[0].mxu0
          %2307 = vmatprep.mubr.bf16.mxu0 %v1630
          %2308 = vmatmul.mubr.bf16.gmra.mrb[0].mxu0 %v1629
          %v2309 = vpop.f32.mrb[0].mxu0
          %v2310 = vadd.f32 0.0, %v2309
          %v2311 = vpop.f32.mrb[0].mxu0
          %v2312 = vpop.f32.mrb[0].mxu0
          %v2313 = vadd.f32 0.0, %v2312
          %v2314 = vpop.f32.mrb[0].mxu0
          %2315 = vmatprep.mubr.bf16.mxu0 %v1632
          %2316 = vmatmul.mubr.bf16.gmra.mrb[0].mxu0 %v1631
          %v2317 = vpop.f32.mrb[0].mxu0
          %v2318 = vadd.f32 0.0, %v2317
          %v2319 = vpop.f32.mrb[0].mxu0
          %v2320 = vpop.f32.mrb[0].mxu0
          %v2321 = vadd.f32 0.0, %v2320
          %v2322 = vpop.f32.mrb[0].mxu0
          %2323 = vmatprep.mubr.bf16.mxu0 %v1634
          %2324 = vmatmul.mubr.bf16.gmra.mrb[0].mxu0 %v1633
          %v2325 = vpop.f32.mrb[0].mxu0
          %v2326 = vadd.f32 0.0, %v2325
          %v2327 = vpop.f32.mrb[0].mxu0
          %v2328 = vpop.f32.mrb[0].mxu0
          %v2329 = vadd.f32 0.0, %v2328
          %v2330 = vpop.f32.mrb[0].mxu0
          %2331 = vmatprep.mubr.bf16.mxu0 %v1636
          %2332 = vmatmul.mubr.bf16.gmra.mrb[0].mxu0 %v1635
          %v2333 = vpop.f32.mrb[0].mxu0
          %v2334 = vadd.f32 0.0, %v2333
          %v2335 = vpop.f32.mrb[0].mxu0
          %v2336 = vpop.f32.mrb[0].mxu0
          %v2337 = vadd.f32 0.0, %v2336
          %v2338 = vpop.f32.mrb[0].mxu0
          %2339 = vmatprep.mubr.bf16.mxu0 %v1638
          %2340 = vmatmul.mubr.bf16.gmra.mrb[0].mxu0 %v1637
          %v2341 = vpop.f32.mrb[0].mxu0
          %v2342 = vadd.f32 0.0, %v2341
          %v2343 = vpop.f32.mrb[0].mxu0
          %v2344 = vpop.f32.mrb[0].mxu0
          %v2345 = vadd.f32 0.0, %v2344
          %v2346 = vpop.f32.mrb[0].mxu0
          %2347 = vmatprep.mubr.bf16.mxu0 %v1640
          %2348 = vmatmul.mubr.bf16.gmra.mrb[0].mxu0 %v1639
          %v2349 = vpop.f32.mrb[0].mxu0
          %v2350 = vadd.f32 0.0, %v2349
          %v2351 = vpop.f32.mrb[0].mxu0
          %v2352 = vpop.f32.mrb[0].mxu0
          %v2353 = vadd.f32 0.0, %v2352
          %v2354 = vpop.f32.mrb[0].mxu0
          %2355 = vmatprep.mubr.bf16.mxu0 %v1642
          %2356 = vmatmul.mubr.bf16.gmra.mrb[0].mxu0 %v1641
          %v2357 = vpop.f32.mrb[0].mxu0
          %v2358 = vadd.f32 0.0, %v2357
          %v2359 = vpop.f32.mrb[0].mxu0
          %v2360 = vpop.f32.mrb[0].mxu0
          %v2361 = vadd.f32 0.0, %v2360
          %v2362 = vpop.f32.mrb[0].mxu0
          %2363 = vmatprep.mubr.bf16.mxu0 %v1644
          %2364 = vmatmul.mubr.bf16.gmra.mrb[0].mxu0 %v1643
          %v2365 = vpop.f32.mrb[0].mxu0
          %v2366 = vadd.f32 0.0, %v2365
          %v2367 = vpop.f32.mrb[0].mxu0
          %v2368 = vpop.f32.mrb[0].mxu0
          %v2369 = vadd.f32 0.0, %v2368
          %v2370 = vpop.f32.mrb[0].mxu0
          %2371 = vmatprep.mubr.bf16.mxu0 %v1646
          %2372 = vmatmul.mubr.bf16.gmra.mrb[0].mxu0 %v1645
          %v2373 = vpop.f32.mrb[0].mxu0
          %v2374 = vadd.f32 0.0, %v2373
          %v2375 = vpop.f32.mrb[0].mxu0
          %v2376 = vpop.f32.mrb[0].mxu0
          %v2377 = vadd.f32 0.0, %v2376
          %v2378 = vpop.f32.mrb[0].mxu0
          %2379 = vmatprep.mubr.bf16.mxu0 %v1648
          %2380 = vmatmul.mubr.bf16.gmra.mrb[0].mxu0 %v1647
          %v2381 = vpop.f32.mrb[0].mxu0
          %v2382 = vadd.f32 0.0, %v2381
          %v2383 = vpop.f32.mrb[0].mxu0
          %v2384 = vpop.f32.mrb[0].mxu0
          %v2385 = vadd.f32 0.0, %v2384
          %v2386 = vpop.f32.mrb[0].mxu0
          %2387 = vdwg.mxu0
          %v2388 = vpack.c.bf16 %v2265, %v2262
          %v2389 = vpack.c.bf16 %v2273, %v2270
          %v2390 = vpack.c.bf16 %v2281, %v2278
          %v2391 = vpack.c.bf16 %v2289, %v2286
          %v2392 = vpack.c.bf16 %v2297, %v2294
          %v2393 = vpack.c.bf16 %v2305, %v2302
          %v2394 = vpack.c.bf16 %v2313, %v2310
          %v2395 = vpack.c.bf16 %v2321, %v2318
          %v2396 = vpack.c.bf16 %v2329, %v2326
          %v2397 = vpack.c.bf16 %v2337, %v2334
          %v2398 = vpack.c.bf16 %v2345, %v2342
          %v2399 = vpack.c.bf16 %v2353, %v2350
          %v2400 = vpack.c.bf16 %v2361, %v2358
          %v2401 = vpack.c.bf16 %v2369, %v2366
          %v2402 = vpack.c.bf16 %v2377, %v2374
          %v2403 = vpack.c.bf16 %v2385, %v2382
          %v2420 = vunpack.c.l.b16 %v2388
          %v2421 = vunpack.c.h.b16 %v2388
          %v2422 = vunpack.c.l.b16 %v2389
          %v2423 = vunpack.c.h.b16 %v2389
          %v2424 = vunpack.c.l.b16 %v2390
          %v2425 = vunpack.c.h.b16 %v2390
          %v2426 = vunpack.c.l.b16 %v2391
          %v2427 = vunpack.c.h.b16 %v2391
          %v2428 = vunpack.c.l.b16 %v2392
          %v2429 = vunpack.c.h.b16 %v2392
          %v2430 = vunpack.c.l.b16 %v2393
          %v2431 = vunpack.c.h.b16 %v2393
          %v2432 = vunpack.c.l.b16 %v2394
          %v2433 = vunpack.c.h.b16 %v2394
          %v2434 = vunpack.c.l.b16 %v2395
          %v2435 = vunpack.c.h.b16 %v2395
          %v2436 = vunpack.c.l.b16 %v2396
          %v2437 = vunpack.c.h.b16 %v2396
          %v2438 = vunpack.c.l.b16 %v2397
          %v2439 = vunpack.c.h.b16 %v2397
          %v2440 = vunpack.c.l.b16 %v2398
          %v2441 = vunpack.c.h.b16 %v2398
          %v2442 = vunpack.c.l.b16 %v2399
          %v2443 = vunpack.c.h.b16 %v2399
          %v2444 = vunpack.c.l.b16 %v2400
          %v2445 = vunpack.c.h.b16 %v2400
          %v2446 = vunpack.c.l.b16 %v2401
          %v2447 = vunpack.c.h.b16 %v2401
          %v2448 = vunpack.c.l.b16 %v2402
          %v2449 = vunpack.c.h.b16 %v2402
          %v2450 = vunpack.c.l.b16 %v2403
          %v2451 = vunpack.c.h.b16 %v2403
          %v2452 = vpack.c.b16 %v2420, %v2420
          %v2453 = vpack.c.b16 %v2421, %v2421
          %v2454 = vpack.c.b16 %v2422, %v2422
          %v2455 = vpack.c.b16 %v2423, %v2423
          %v2456 = vpack.c.b16 %v2424, %v2424
          %v2457 = vpack.c.b16 %v2425, %v2425
          %v2458 = vpack.c.b16 %v2426, %v2426
          %v2459 = vpack.c.b16 %v2427, %v2427
          %v2460 = vpack.c.b16 %v2428, %v2428
          %v2461 = vpack.c.b16 %v2429, %v2429
          %v2462 = vpack.c.b16 %v2430, %v2430
          %v2463 = vpack.c.b16 %v2431, %v2431
          %v2464 = vpack.c.b16 %v2432, %v2432
          %v2465 = vpack.c.b16 %v2433, %v2433
          %v2466 = vpack.c.b16 %v2434, %v2434
          %v2467 = vpack.c.b16 %v2435, %v2435
          %v2468 = vpack.c.b16 %v2436, %v2436
          %v2469 = vpack.c.b16 %v2437, %v2437
          %v2470 = vpack.c.b16 %v2438, %v2438
          %v2471 = vpack.c.b16 %v2439, %v2439
          %v2472 = vpack.c.b16 %v2440, %v2440
          %v2473 = vpack.c.b16 %v2441, %v2441
          %v2474 = vpack.c.b16 %v2442, %v2442
          %v2475 = vpack.c.b16 %v2443, %v2443
          %v2476 = vpack.c.b16 %v2444, %v2444
          %v2477 = vpack.c.b16 %v2445, %v2445
          %v2478 = vpack.c.b16 %v2446, %v2446
          %v2479 = vpack.c.b16 %v2447, %v2447
          %v2480 = vpack.c.b16 %v2448, %v2448
          %v2481 = vpack.c.b16 %v2449, %v2449
          %v2482 = vpack.c.b16 %v2450, %v2450
          %v2483 = vpack.c.b16 %v2451, %v2451
          %s2516 = scalar_lea.vmem %s230, 128 [#allocation3]
          %2517 = vst [vmem:[%s2516] sm:$0xf] %v2452
          %2518 = vst [vmem:[%s2516 + $0x4] sm:$0xf] %v2453
          %2519 = vst [vmem:[%s2516 + $0x8] sm:$0xf] %v2454
          %2520 = vst [vmem:[%s2516 + $0xc] sm:$0xf] %v2455
          %2521 = vst [vmem:[%s2516 + $0x10] sm:$0xf] %v2456
          %2522 = vst [vmem:[%s2516 + $0x14] sm:$0xf] %v2457
          %2523 = vst [vmem:[%s2516 + $0x18] sm:$0xf] %v2458
          %2524 = vst [vmem:[%s2516 + $0x1c] sm:$0xf] %v2459
          %2525 = vst [vmem:[%s2516 + $0x20] sm:$0xf] %v2460
          %2526 = vst [vmem:[%s2516 + $0x24] sm:$0xf] %v2461
          %2527 = vst [vmem:[%s2516 + $0x28] sm:$0xf] %v2462
          %2528 = vst [vmem:[%s2516 + $0x2c] sm:$0xf] %v2463
          %2529 = vst [vmem:[%s2516 + $0x30] sm:$0xf] %v2464
          %2530 = vst [vmem:[%s2516 + $0x34] sm:$0xf] %v2465
          %2531 = vst [vmem:[%s2516 + $0x38] sm:$0xf] %v2466
          %2532 = vst [vmem:[%s2516 + $0x3c] sm:$0xf] %v2467
          %2533 = vst [vmem:[%s2516 + $0x40] sm:$0xf] %v2468
          %2534 = vst [vmem:[%s2516 + $0x44] sm:$0xf] %v2469
          %2535 = vst [vmem:[%s2516 + $0x48] sm:$0xf] %v2470
          %2536 = vst [vmem:[%s2516 + $0x4c] sm:$0xf] %v2471
          %2537 = vst [vmem:[%s2516 + $0x50] sm:$0xf] %v2472
          %2538 = vst [vmem:[%s2516 + $0x54] sm:$0xf] %v2473
          %2539 = vst [vmem:[%s2516 + $0x58] sm:$0xf] %v2474
          %2540 = vst [vmem:[%s2516 + $0x5c] sm:$0xf] %v2475
          %2541 = vst [vmem:[%s2516 + $0x60] sm:$0xf] %v2476
          %2542 = vst [vmem:[%s2516 + $0x64] sm:$0xf] %v2477
          %2543 = vst [vmem:[%s2516 + $0x68] sm:$0xf] %v2478
          %2544 = vst [vmem:[%s2516 + $0x6c] sm:$0xf] %v2479
          %2545 = vst [vmem:[%s2516 + $0x70] sm:$0xf] %v2480
          %2546 = vst [vmem:[%s2516 + $0x74] sm:$0xf] %v2481
          %2547 = vst [vmem:[%s2516 + $0x78] sm:$0xf] %v2482
          %2548 = vst [vmem:[%s2516 + $0x7c] sm:$0xf] %v2483
        $region40: #{gcn_forward.2} parent=31 // pred_fallthru
          _
        %s2549 = sand.u32 %s120, 1
        %s2550 = sand.u32 %s120, 1
        %s2551 = smul.addr %s2550, 256
        %s2552 = scalar_lea.vmem [#allocation3], %s2551
        // Predicated region
        $region41: #{gcn_forward.2} parent=31 // pred_check
          %p2553 = pneg %p130
        $region42: #{gcn_forward.2} parent=31 // pred_check_branch
          %2555 = sbr.rel (%p2553) target = $region44
        $region43: #{gcn_forward.2} parent=31 // pred_region
          %s2556 = smul.u32 32, %s19
          %s2557 = smul.addr %s2556, 4
          %s2558 = scalar_lea.vmem %s3, %s2557
          // Predicated region
          $region45: #{gcn_forward.2} parent=43 // pred_check
            _
          $region46: #{gcn_forward.2} parent=43 // pred_check_branch
            %2560 = sbr.rel (0) target = $region48
          $region47: #{gcn_forward.2} parent=43 // pred_region
            // Predicated region
            $region49: #{gcn_forward.2} parent=47 // pred_check
              _
            $region50: #{gcn_forward.2} parent=47 // pred_check_branch
              %2562 = sbr.rel target = $region52
            $region51: #{gcn_forward.2} parent=47 // pred_region
              // Predicated region
              $region64: #{gcn_forward.2} parent=51 // pred_check
                _
              $region65: #{gcn_forward.2} parent=51 // pred_check_branch
                %2703 = sbr.rel (0) target = $region67
              $region66: #{gcn_forward.2} parent=51 // pred_region
                loop: start=0, step=1, limit=1
                $region68: #{gcn_forward.2} parent=66 // loop_pre_header
                  _
                $region69: #{gcn_forward.2} parent=66 // loop_header
                  %s2705 = sphi 0, %s2709
                  %p2706 = scmp.ge.s32.totalorder %s2705, 1
                  %s2710 = sphi %s2552, %s2552
                  %s2711 = sphi %s2558, %s2558
                $region70: #{gcn_forward.2} parent=66 // loop_header_branch
                  %2708 = sbr.rel (%p2706) target = $region74
                $region71: #{gcn_forward.2} parent=66 // loop_body
                  _
                $region72: #{gcn_forward.2} parent=66 // loop_footer
                  %s2709 = sadd.s32 1, %s2705
                $region73: #{gcn_forward.2} parent=66 // loop_footer_branch
                  %2704 = sbr.rel target = $region69
                $region74: #{gcn_forward.2} parent=66 // loop_exit
                  _
                loop: start=0, step=1, limit=1
                $region75: #{gcn_forward.2} parent=66 // loop_pre_header
                  _
                $region76: #{gcn_forward.2} parent=66 // loop_header
                  %s2714 = sphi 0, %s2718
                  %p2715 = scmp.ge.s32.totalorder %s2714, 1
                  %s2719 = sphi %s2552, %s2552
                  %s2720 = sphi %s2558, %s2558
                $region77: #{gcn_forward.2} parent=66 // loop_header_branch
                  %2717 = sbr.rel (%p2715) target = $region81
                $region78: #{gcn_forward.2} parent=66 // loop_body
                  %v2721 = vld [vmem:[%s2719] sm:$0xf]
                  %2722 = vst [vmem:[%s2720] sm:$0xf] %v2721
                  %v2723 = vld [vmem:[%s2719 + $0x4] sm:$0xf]
                  %2724 = vst [vmem:[%s2720 + $0x4] sm:$0xf] %v2723
                  %v2725 = vld [vmem:[%s2719 + $0x8] sm:$0xf]
                  %2726 = vst [vmem:[%s2720 + $0x8] sm:$0xf] %v2725
                  %v2727 = vld [vmem:[%s2719 + $0xc] sm:$0xf]
                  %2728 = vst [vmem:[%s2720 + $0xc] sm:$0xf] %v2727
                  %v2729 = vld [vmem:[%s2719 + $0x10] sm:$0xf]
                  %2730 = vst [vmem:[%s2720 + $0x10] sm:$0xf] %v2729
                  %v2731 = vld [vmem:[%s2719 + $0x14] sm:$0xf]
                  %2732 = vst [vmem:[%s2720 + $0x14] sm:$0xf] %v2731
                  %v2733 = vld [vmem:[%s2719 + $0x18] sm:$0xf]
                  %2734 = vst [vmem:[%s2720 + $0x18] sm:$0xf] %v2733
                  %v2735 = vld [vmem:[%s2719 + $0x1c] sm:$0xf]
                  %2736 = vst [vmem:[%s2720 + $0x1c] sm:$0xf] %v2735
                  %v2737 = vld [vmem:[%s2719 + $0x20] sm:$0xf]
                  %2738 = vst [vmem:[%s2720 + $0x20] sm:$0xf] %v2737
                  %v2739 = vld [vmem:[%s2719 + $0x24] sm:$0xf]
                  %2740 = vst [vmem:[%s2720 + $0x24] sm:$0xf] %v2739
                  %v2741 = vld [vmem:[%s2719 + $0x28] sm:$0xf]
                  %2742 = vst [vmem:[%s2720 + $0x28] sm:$0xf] %v2741
                  %v2743 = vld [vmem:[%s2719 + $0x2c] sm:$0xf]
                  %2744 = vst [vmem:[%s2720 + $0x2c] sm:$0xf] %v2743
                  %v2745 = vld [vmem:[%s2719 + $0x30] sm:$0xf]
                  %2746 = vst [vmem:[%s2720 + $0x30] sm:$0xf] %v2745
                  %v2747 = vld [vmem:[%s2719 + $0x34] sm:$0xf]
                  %2748 = vst [vmem:[%s2720 + $0x34] sm:$0xf] %v2747
                  %v2749 = vld [vmem:[%s2719 + $0x38] sm:$0xf]
                  %2750 = vst [vmem:[%s2720 + $0x38] sm:$0xf] %v2749
                  %v2751 = vld [vmem:[%s2719 + $0x3c] sm:$0xf]
                  %2752 = vst [vmem:[%s2720 + $0x3c] sm:$0xf] %v2751
                  %v2753 = vld [vmem:[%s2719 + $0x40] sm:$0xf]
                  %2754 = vst [vmem:[%s2720 + $0x40] sm:$0xf] %v2753
                  %v2755 = vld [vmem:[%s2719 + $0x44] sm:$0xf]
                  %2756 = vst [vmem:[%s2720 + $0x44] sm:$0xf] %v2755
                  %v2757 = vld [vmem:[%s2719 + $0x48] sm:$0xf]
                  %2758 = vst [vmem:[%s2720 + $0x48] sm:$0xf] %v2757
                  %v2759 = vld [vmem:[%s2719 + $0x4c] sm:$0xf]
                  %2760 = vst [vmem:[%s2720 + $0x4c] sm:$0xf] %v2759
                  %v2761 = vld [vmem:[%s2719 + $0x50] sm:$0xf]
                  %2762 = vst [vmem:[%s2720 + $0x50] sm:$0xf] %v2761
                  %v2763 = vld [vmem:[%s2719 + $0x54] sm:$0xf]
                  %2764 = vst [vmem:[%s2720 + $0x54] sm:$0xf] %v2763
                  %v2765 = vld [vmem:[%s2719 + $0x58] sm:$0xf]
                  %2766 = vst [vmem:[%s2720 + $0x58] sm:$0xf] %v2765
                  %v2767 = vld [vmem:[%s2719 + $0x5c] sm:$0xf]
                  %2768 = vst [vmem:[%s2720 + $0x5c] sm:$0xf] %v2767
                  %v2769 = vld [vmem:[%s2719 + $0x60] sm:$0xf]
                  %2770 = vst [vmem:[%s2720 + $0x60] sm:$0xf] %v2769
                  %v2771 = vld [vmem:[%s2719 + $0x64] sm:$0xf]
                  %2772 = vst [vmem:[%s2720 + $0x64] sm:$0xf] %v2771
                  %v2773 = vld [vmem:[%s2719 + $0x68] sm:$0xf]
                  %2774 = vst [vmem:[%s2720 + $0x68] sm:$0xf] %v2773
                  %v2775 = vld [vmem:[%s2719 + $0x6c] sm:$0xf]
                  %2776 = vst [vmem:[%s2720 + $0x6c] sm:$0xf] %v2775
                  %v2777 = vld [vmem:[%s2719 + $0x70] sm:$0xf]
                  %2778 = vst [vmem:[%s2720 + $0x70] sm:$0xf] %v2777
                  %v2779 = vld [vmem:[%s2719 + $0x74] sm:$0xf]
                  %2780 = vst [vmem:[%s2720 + $0x74] sm:$0xf] %v2779
                  %v2781 = vld [vmem:[%s2719 + $0x78] sm:$0xf]
                  %2782 = vst [vmem:[%s2720 + $0x78] sm:$0xf] %v2781
                  %v2783 = vld [vmem:[%s2719 + $0x7c] sm:$0xf]
                  %2784 = vst [vmem:[%s2720 + $0x7c] sm:$0xf] %v2783
                  %v2785 = vld [vmem:[%s2719 + $0x80] sm:$0xf]
                  %2786 = vst [vmem:[%s2720 + $0x100] sm:$0xf] %v2785
                  %v2787 = vld [vmem:[%s2719 + $0x84] sm:$0xf]
                  %2788 = vst [vmem:[%s2720 + $0x104] sm:$0xf] %v2787
                  %v2789 = vld [vmem:[%s2719 + $0x88] sm:$0xf]
                  %2790 = vst [vmem:[%s2720 + $0x108] sm:$0xf] %v2789
                  %v2791 = vld [vmem:[%s2719 + $0x8c] sm:$0xf]
                  %2792 = vst [vmem:[%s2720 + $0x10c] sm:$0xf] %v2791
                  %v2793 = vld [vmem:[%s2719 + $0x90] sm:$0xf]
                  %2794 = vst [vmem:[%s2720 + $0x110] sm:$0xf] %v2793
                  %v2795 = vld [vmem:[%s2719 + $0x94] sm:$0xf]
                  %2796 = vst [vmem:[%s2720 + $0x114] sm:$0xf] %v2795
                  %v2797 = vld [vmem:[%s2719 + $0x98] sm:$0xf]
                  %2798 = vst [vmem:[%s2720 + $0x118] sm:$0xf] %v2797
                  %v2799 = vld [vmem:[%s2719 + $0x9c] sm:$0xf]
                  %2800 = vst [vmem:[%s2720 + $0x11c] sm:$0xf] %v2799
                  %v2801 = vld [vmem:[%s2719 + $0xa0] sm:$0xf]
                  %2802 = vst [vmem:[%s2720 + $0x120] sm:$0xf] %v2801
                  %v2803 = vld [vmem:[%s2719 + $0xa4] sm:$0xf]
                  %2804 = vst [vmem:[%s2720 + $0x124] sm:$0xf] %v2803
                  %v2805 = vld [vmem:[%s2719 + $0xa8] sm:$0xf]
                  %2806 = vst [vmem:[%s2720 + $0x128] sm:$0xf] %v2805
                  %v2807 = vld [vmem:[%s2719 + $0xac] sm:$0xf]
                  %2808 = vst [vmem:[%s2720 + $0x12c] sm:$0xf] %v2807
                  %v2809 = vld [vmem:[%s2719 + $0xb0] sm:$0xf]
                  %2810 = vst [vmem:[%s2720 + $0x130] sm:$0xf] %v2809
                  %v2811 = vld [vmem:[%s2719 + $0xb4] sm:$0xf]
                  %2812 = vst [vmem:[%s2720 + $0x134] sm:$0xf] %v2811
                  %v2813 = vld [vmem:[%s2719 + $0xb8] sm:$0xf]
                  %2814 = vst [vmem:[%s2720 + $0x138] sm:$0xf] %v2813
                  %v2815 = vld [vmem:[%s2719 + $0xbc] sm:$0xf]
                  %2816 = vst [vmem:[%s2720 + $0x13c] sm:$0xf] %v2815
                  %v2817 = vld [vmem:[%s2719 + $0xc0] sm:$0xf]
                  %2818 = vst [vmem:[%s2720 + $0x140] sm:$0xf] %v2817
                  %v2819 = vld [vmem:[%s2719 + $0xc4] sm:$0xf]
                  %2820 = vst [vmem:[%s2720 + $0x144] sm:$0xf] %v2819
                  %v2821 = vld [vmem:[%s2719 + $0xc8] sm:$0xf]
                  %2822 = vst [vmem:[%s2720 + $0x148] sm:$0xf] %v2821
                  %v2823 = vld [vmem:[%s2719 + $0xcc] sm:$0xf]
                  %2824 = vst [vmem:[%s2720 + $0x14c] sm:$0xf] %v2823
                  %v2825 = vld [vmem:[%s2719 + $0xd0] sm:$0xf]
                  %2826 = vst [vmem:[%s2720 + $0x150] sm:$0xf] %v2825
                  %v2827 = vld [vmem:[%s2719 + $0xd4] sm:$0xf]
                  %2828 = vst [vmem:[%s2720 + $0x154] sm:$0xf] %v2827
                  %v2829 = vld [vmem:[%s2719 + $0xd8] sm:$0xf]
                  %2830 = vst [vmem:[%s2720 + $0x158] sm:$0xf] %v2829
                  %v2831 = vld [vmem:[%s2719 + $0xdc] sm:$0xf]
                  %2832 = vst [vmem:[%s2720 + $0x15c] sm:$0xf] %v2831
                  %v2833 = vld [vmem:[%s2719 + $0xe0] sm:$0xf]
                  %2834 = vst [vmem:[%s2720 + $0x160] sm:$0xf] %v2833
                  %v2835 = vld [vmem:[%s2719 + $0xe4] sm:$0xf]
                  %2836 = vst [vmem:[%s2720 + $0x164] sm:$0xf] %v2835
                  %v2837 = vld [vmem:[%s2719 + $0xe8] sm:$0xf]
                  %2838 = vst [vmem:[%s2720 + $0x168] sm:$0xf] %v2837
                  %v2839 = vld [vmem:[%s2719 + $0xec] sm:$0xf]
                  %2840 = vst [vmem:[%s2720 + $0x16c] sm:$0xf] %v2839
                  %v2841 = vld [vmem:[%s2719 + $0xf0] sm:$0xf]
                  %2842 = vst [vmem:[%s2720 + $0x170] sm:$0xf] %v2841
                  %v2843 = vld [vmem:[%s2719 + $0xf4] sm:$0xf]
                  %2844 = vst [vmem:[%s2720 + $0x174] sm:$0xf] %v2843
                  %v2845 = vld [vmem:[%s2719 + $0xf8] sm:$0xf]
                  %2846 = vst [vmem:[%s2720 + $0x178] sm:$0xf] %v2845
                  %v2847 = vld [vmem:[%s2719 + $0xfc] sm:$0xf]
                  %2848 = vst [vmem:[%s2720 + $0x17c] sm:$0xf] %v2847
                $region79: #{gcn_forward.2} parent=66 // loop_footer
                  %s2718 = sadd.s32 1, %s2714
                $region80: #{gcn_forward.2} parent=66 // loop_footer_branch
                  %2713 = sbr.rel target = $region76
                $region81: #{gcn_forward.2} parent=66 // loop_exit
                  _
              $region67: #{gcn_forward.2} parent=51 // pred_fallthru
                _
            $region52: #{gcn_forward.2} parent=47 // pred_fallthru
              _
            // Predicated region
            $region53: #{gcn_forward.2} parent=47 // pred_check
              _
            $region54: #{gcn_forward.2} parent=47 // pred_check_branch
              %2564 = sbr.rel (0) target = $region56
            $region55: #{gcn_forward.2} parent=47 // pred_region
              loop: start=0, step=1, limit=1
              $region57: #{gcn_forward.2} parent=55 // loop_pre_header
                _
              $region58: #{gcn_forward.2} parent=55 // loop_header
                %s2567 = sphi 0, %s2571
                %p2568 = scmp.ge.s32.totalorder %s2567, 1
                %s2572 = sphi %s2552, %s2552
                %s2573 = sphi %s2558, %s2558
              $region59: #{gcn_forward.2} parent=55 // loop_header_branch
                %2570 = sbr.rel (%p2568) target = $region63
              $region60: #{gcn_forward.2} parent=55 // loop_body
                %v2574 = vld [vmem:[%s2572] sm:$0xf]
                %2575 = vst [vmem:[%s2573] sm:$0xf] %v2574
                %v2576 = vld [vmem:[%s2572 + $0x4] sm:$0xf]
                %2577 = vst [vmem:[%s2573 + $0x4] sm:$0xf] %v2576
                %v2578 = vld [vmem:[%s2572 + $0x8] sm:$0xf]
                %2579 = vst [vmem:[%s2573 + $0x8] sm:$0xf] %v2578
                %v2580 = vld [vmem:[%s2572 + $0xc] sm:$0xf]
                %2581 = vst [vmem:[%s2573 + $0xc] sm:$0xf] %v2580
                %v2582 = vld [vmem:[%s2572 + $0x10] sm:$0xf]
                %2583 = vst [vmem:[%s2573 + $0x10] sm:$0xf] %v2582
                %v2584 = vld [vmem:[%s2572 + $0x14] sm:$0xf]
                %2585 = vst [vmem:[%s2573 + $0x14] sm:$0xf] %v2584
                %v2586 = vld [vmem:[%s2572 + $0x18] sm:$0xf]
                %2587 = vst [vmem:[%s2573 + $0x18] sm:$0xf] %v2586
                %v2588 = vld [vmem:[%s2572 + $0x1c] sm:$0xf]
                %2589 = vst [vmem:[%s2573 + $0x1c] sm:$0xf] %v2588
                %v2590 = vld [vmem:[%s2572 + $0x20] sm:$0xf]
                %2591 = vst [vmem:[%s2573 + $0x20] sm:$0xf] %v2590
                %v2592 = vld [vmem:[%s2572 + $0x24] sm:$0xf]
                %2593 = vst [vmem:[%s2573 + $0x24] sm:$0xf] %v2592
                %v2594 = vld [vmem:[%s2572 + $0x28] sm:$0xf]
                %2595 = vst [vmem:[%s2573 + $0x28] sm:$0xf] %v2594
                %v2596 = vld [vmem:[%s2572 + $0x2c] sm:$0xf]
                %2597 = vst [vmem:[%s2573 + $0x2c] sm:$0xf] %v2596
                %v2598 = vld [vmem:[%s2572 + $0x30] sm:$0xf]
                %2599 = vst [vmem:[%s2573 + $0x30] sm:$0xf] %v2598
                %v2600 = vld [vmem:[%s2572 + $0x34] sm:$0xf]
                %2601 = vst [vmem:[%s2573 + $0x34] sm:$0xf] %v2600
                %v2602 = vld [vmem:[%s2572 + $0x38] sm:$0xf]
                %2603 = vst [vmem:[%s2573 + $0x38] sm:$0xf] %v2602
                %v2604 = vld [vmem:[%s2572 + $0x3c] sm:$0xf]
                %2605 = vst [vmem:[%s2573 + $0x3c] sm:$0xf] %v2604
                %v2606 = vld [vmem:[%s2572 + $0x40] sm:$0xf]
                %2607 = vst [vmem:[%s2573 + $0x40] sm:$0xf] %v2606
                %v2608 = vld [vmem:[%s2572 + $0x44] sm:$0xf]
                %2609 = vst [vmem:[%s2573 + $0x44] sm:$0xf] %v2608
                %v2610 = vld [vmem:[%s2572 + $0x48] sm:$0xf]
                %2611 = vst [vmem:[%s2573 + $0x48] sm:$0xf] %v2610
                %v2612 = vld [vmem:[%s2572 + $0x4c] sm:$0xf]
                %2613 = vst [vmem:[%s2573 + $0x4c] sm:$0xf] %v2612
                %v2614 = vld [vmem:[%s2572 + $0x50] sm:$0xf]
                %2615 = vst [vmem:[%s2573 + $0x50] sm:$0xf] %v2614
                %v2616 = vld [vmem:[%s2572 + $0x54] sm:$0xf]
                %2617 = vst [vmem:[%s2573 + $0x54] sm:$0xf] %v2616
                %v2618 = vld [vmem:[%s2572 + $0x58] sm:$0xf]
                %2619 = vst [vmem:[%s2573 + $0x58] sm:$0xf] %v2618
                %v2620 = vld [vmem:[%s2572 + $0x5c] sm:$0xf]
                %2621 = vst [vmem:[%s2573 + $0x5c] sm:$0xf] %v2620
                %v2622 = vld [vmem:[%s2572 + $0x60] sm:$0xf]
                %2623 = vst [vmem:[%s2573 + $0x60] sm:$0xf] %v2622
                %v2624 = vld [vmem:[%s2572 + $0x64] sm:$0xf]
                %2625 = vst [vmem:[%s2573 + $0x64] sm:$0xf] %v2624
                %v2626 = vld [vmem:[%s2572 + $0x68] sm:$0xf]
                %2627 = vst [vmem:[%s2573 + $0x68] sm:$0xf] %v2626
                %v2628 = vld [vmem:[%s2572 + $0x6c] sm:$0xf]
                %2629 = vst [vmem:[%s2573 + $0x6c] sm:$0xf] %v2628
                %v2630 = vld [vmem:[%s2572 + $0x70] sm:$0xf]
                %2631 = vst [vmem:[%s2573 + $0x70] sm:$0xf] %v2630
                %v2632 = vld [vmem:[%s2572 + $0x74] sm:$0xf]
                %2633 = vst [vmem:[%s2573 + $0x74] sm:$0xf] %v2632
                %v2634 = vld [vmem:[%s2572 + $0x78] sm:$0xf]
                %2635 = vst [vmem:[%s2573 + $0x78] sm:$0xf] %v2634
                %v2636 = vld [vmem:[%s2572 + $0x7c] sm:$0xf]
                %2637 = vst [vmem:[%s2573 + $0x7c] sm:$0xf] %v2636
                %v2638 = vld [vmem:[%s2572 + $0x80] sm:$0xf]
                %2639 = vst [vmem:[%s2573 + $0x100] sm:$0xf] %v2638
                %v2640 = vld [vmem:[%s2572 + $0x84] sm:$0xf]
                %2641 = vst [vmem:[%s2573 + $0x104] sm:$0xf] %v2640
                %v2642 = vld [vmem:[%s2572 + $0x88] sm:$0xf]
                %2643 = vst [vmem:[%s2573 + $0x108] sm:$0xf] %v2642
                %v2644 = vld [vmem:[%s2572 + $0x8c] sm:$0xf]
                %2645 = vst [vmem:[%s2573 + $0x10c] sm:$0xf] %v2644
                %v2646 = vld [vmem:[%s2572 + $0x90] sm:$0xf]
                %2647 = vst [vmem:[%s2573 + $0x110] sm:$0xf] %v2646
                %v2648 = vld [vmem:[%s2572 + $0x94] sm:$0xf]
                %2649 = vst [vmem:[%s2573 + $0x114] sm:$0xf] %v2648
                %v2650 = vld [vmem:[%s2572 + $0x98] sm:$0xf]
                %2651 = vst [vmem:[%s2573 + $0x118] sm:$0xf] %v2650
                %v2652 = vld [vmem:[%s2572 + $0x9c] sm:$0xf]
                %2653 = vst [vmem:[%s2573 + $0x11c] sm:$0xf] %v2652
                %v2654 = vld [vmem:[%s2572 + $0xa0] sm:$0xf]
                %2655 = vst [vmem:[%s2573 + $0x120] sm:$0xf] %v2654
                %v2656 = vld [vmem:[%s2572 + $0xa4] sm:$0xf]
                %2657 = vst [vmem:[%s2573 + $0x124] sm:$0xf] %v2656
                %v2658 = vld [vmem:[%s2572 + $0xa8] sm:$0xf]
                %2659 = vst [vmem:[%s2573 + $0x128] sm:$0xf] %v2658
                %v2660 = vld [vmem:[%s2572 + $0xac] sm:$0xf]
                %2661 = vst [vmem:[%s2573 + $0x12c] sm:$0xf] %v2660
                %v2662 = vld [vmem:[%s2572 + $0xb0] sm:$0xf]
                %2663 = vst [vmem:[%s2573 + $0x130] sm:$0xf] %v2662
                %v2664 = vld [vmem:[%s2572 + $0xb4] sm:$0xf]
                %2665 = vst [vmem:[%s2573 + $0x134] sm:$0xf] %v2664
                %v2666 = vld [vmem:[%s2572 + $0xb8] sm:$0xf]
                %2667 = vst [vmem:[%s2573 + $0x138] sm:$0xf] %v2666
                %v2668 = vld [vmem:[%s2572 + $0xbc] sm:$0xf]
                %2669 = vst [vmem:[%s2573 + $0x13c] sm:$0xf] %v2668
                %v2670 = vld [vmem:[%s2572 + $0xc0] sm:$0xf]
                %2671 = vst [vmem:[%s2573 + $0x140] sm:$0xf] %v2670
                %v2672 = vld [vmem:[%s2572 + $0xc4] sm:$0xf]
                %2673 = vst [vmem:[%s2573 + $0x144] sm:$0xf] %v2672
                %v2674 = vld [vmem:[%s2572 + $0xc8] sm:$0xf]
                %2675 = vst [vmem:[%s2573 + $0x148] sm:$0xf] %v2674
                %v2676 = vld [vmem:[%s2572 + $0xcc] sm:$0xf]
                %2677 = vst [vmem:[%s2573 + $0x14c] sm:$0xf] %v2676
                %v2678 = vld [vmem:[%s2572 + $0xd0] sm:$0xf]
                %2679 = vst [vmem:[%s2573 + $0x150] sm:$0xf] %v2678
                %v2680 = vld [vmem:[%s2572 + $0xd4] sm:$0xf]
                %2681 = vst [vmem:[%s2573 + $0x154] sm:$0xf] %v2680
                %v2682 = vld [vmem:[%s2572 + $0xd8] sm:$0xf]
                %2683 = vst [vmem:[%s2573 + $0x158] sm:$0xf] %v2682
                %v2684 = vld [vmem:[%s2572 + $0xdc] sm:$0xf]
                %2685 = vst [vmem:[%s2573 + $0x15c] sm:$0xf] %v2684
                %v2686 = vld [vmem:[%s2572 + $0xe0] sm:$0xf]
                %2687 = vst [vmem:[%s2573 + $0x160] sm:$0xf] %v2686
                %v2688 = vld [vmem:[%s2572 + $0xe4] sm:$0xf]
                %2689 = vst [vmem:[%s2573 + $0x164] sm:$0xf] %v2688
                %v2690 = vld [vmem:[%s2572 + $0xe8] sm:$0xf]
                %2691 = vst [vmem:[%s2573 + $0x168] sm:$0xf] %v2690
                %v2692 = vld [vmem:[%s2572 + $0xec] sm:$0xf]
                %2693 = vst [vmem:[%s2573 + $0x16c] sm:$0xf] %v2692
                %v2694 = vld [vmem:[%s2572 + $0xf0] sm:$0xf]
                %2695 = vst [vmem:[%s2573 + $0x170] sm:$0xf] %v2694
                %v2696 = vld [vmem:[%s2572 + $0xf4] sm:$0xf]
                %2697 = vst [vmem:[%s2573 + $0x174] sm:$0xf] %v2696
                %v2698 = vld [vmem:[%s2572 + $0xf8] sm:$0xf]
                %2699 = vst [vmem:[%s2573 + $0x178] sm:$0xf] %v2698
                %v2700 = vld [vmem:[%s2572 + $0xfc] sm:$0xf]
                %2701 = vst [vmem:[%s2573 + $0x17c] sm:$0xf] %v2700
              $region61: #{gcn_forward.2} parent=55 // loop_footer
                %s2571 = sadd.s32 1, %s2567
              $region62: #{gcn_forward.2} parent=55 // loop_footer_branch
                %2566 = sbr.rel target = $region58
              $region63: #{gcn_forward.2} parent=55 // loop_exit
                _
            $region56: #{gcn_forward.2} parent=47 // pred_fallthru
              _
          $region48: #{gcn_forward.2} parent=43 // pred_fallthru
            _
          %2849 = vnop
        $region44: #{gcn_forward.2} parent=31 // pred_fallthru
          _
      $region32: #{gcn_forward.2} parent=5 // pred_fallthru
        _
      %p2850 = scmp.le.s32.totalorder 2, %s9
      // Predicated region
      $region82: #{gcn_forward.2} parent=5 // pred_check
        %p2851 = pneg %p2850
      $region83: #{gcn_forward.2} parent=5 // pred_check_branch
        %2853 = sbr.rel (%p2851) target = $region85
      $region84: #{gcn_forward.2} parent=5 // pred_region
        %s2854 = ssub.s32 %s9, 2
        // Predicated region
        $region86: #{gcn_forward.2} parent=84 // pred_check
          %p2855 = pneg %p136
        $region87: #{gcn_forward.2} parent=84 // pred_check_branch
          %2857 = sbr.rel (%p2855) target = $region89
        $region88: #{gcn_forward.2} parent=84 // pred_region
          %s2858 = sand.u32 %s121, 1
          %s2859 = sand.u32 %s121, 1
          %s2860 = smul.addr %s2859, 256
          %s2861 = scalar_lea.vmem [#allocation3], %s2860
        $region89: #{gcn_forward.2} parent=84 // pred_fallthru
          _
      $region85: #{gcn_forward.2} parent=5 // pred_fallthru
        _
    $region6: #{gcn_forward.2} parent=1 // loop_footer
      %s13 = sadd.s32 1, %s9
    $region7: #{gcn_forward.2} parent=1 // loop_footer_branch
      %8 = sbr.rel target = $region3
    $region8: #{gcn_forward.2} parent=1 // loop_exit
      _

</llo_original>
